<compile_context>
chip_gen: v5e
topology: v5e:2x2
jax: 0.10.0
libtpu: 0.0.40
codegen_flags: <defaults>
</compile_context>

<pallas_src>
import functools

import jax
import jax.numpy as jnp
from jax.experimental import pallas as pl
from jax.experimental.pallas import tpu as pltpu

F32 = jnp.float32
BF16 = jnp.bfloat16

# Architectural constants fixed by the module (feat_map -> 32x8x8, two 3x3 transposed convs).
FM_C, FM_H, FM_W = 32, 8, 8      # feat_map output (C, H, W)
D1_H, D1_W = 10, 10              # ConvTranspose2d(32,32,k3,s1): 8 -> 10
Q_H, Q_W = 21, 21                # ConvTranspose2d(k3,s2):      10 -> 21
QE_H, QO_H = 11, 10              # even / odd Qaux output rows
HEAD_LANES = 128                 # lane-dense packed [policy | value | reward | 0] row


# ----------------------------------------------------------------------------
# Fused kernel: encoder + policy/value/reward heads + feat_map + deconvs + Qaux
# ----------------------------------------------------------------------------
def unreal_fused_kernel(
        # inputs
        x_ref, enc_w_ref, enc_b_ref, hw_ref, hb_ref, r1_w_ref, r1_b_ref, r2w_ref,
        fm_w_ref, fm_b_ref, t1_ref, b1_ref, w2q_ref, bq_ref,
        # outputs
        heads_ref, enc_ref, qe_ref, qo_ref,
        *, action_size):
    TB = x_ref.shape[0]              # batch-tile size (multiple of 8 sublanes)
    NQ = w2q_ref.shape[2]            # lane-padded Qaux width (128)
    KW = t1_ref.shape[2]             # D1_W * FM_C = 320
    RB = FM_W * FM_C                 # one feat-map row = 256 lanes

    # ---- encoder (stand-in for self.policy.model): relu(x @ We + be) --------
    h = jnp.maximum(
        jnp.dot(x_ref[...].astype(BF16), enc_w_ref[...],
                preferred_element_type=F32) + enc_b_ref[...], 0.0)
    enc_ref[...] = h

    # ---- policy / value / reward heads packed into ONE lane-dense 128 row ---
    #   heads[:, 0:A]     = softmax(policy logits)
    #   heads[:, A]       = V
    #   heads[:, A+1:A+4] = reward-prediction logits (r2(relu(r1(enc))))
    r1 = jnp.maximum(
        jnp.dot(h, r1_w_ref[...], preferred_element_type=F32) + r1_b_ref[...], 0.0)
    hp = (jnp.dot(h, hw_ref[...], preferred_element_type=F32)
          + jnp.dot(r1, r2w_ref[...], preferred_element_type=F32)
          + hb_ref[...])                                            # (TB, 128)
    lane = jax.lax.broadcasted_iota(jnp.int32, hp.shape, 1)
    logits = jnp.where(lane < action_size, hp, -1e30)
    mx = jnp.max(logits, axis=-1, keepdims=True)
    e = jnp.exp(logits - mx)
    pi = e / jnp.sum(e, axis=-1, keepdims=True)                     # exact softmax
    heads_ref[...] = jnp.where(lane < action_size, pi, hp)

    # ---- Qaux: feat_map Linear + ReLU (columns already NHWC row-flat) -------
    fm = jnp.maximum(
        jnp.dot(h.astype(BF16), fm_w_ref[...],
                preferred_element_type=F32) + fm_b_ref[...], 0.0)   # (TB, 8*256)
    # stack the 8 feat-map rows of every sample along sublanes: row y*TB + b
    fm2d = jnp.concatenate(
        [fm[:, y * RB:(y + 1) * RB] for y in range(FM_H)], axis=0).astype(BF16)

    # deconv1 (ConvTranspose2d 32->32, k3, s1): 3 whole-tile row-Toeplitz matmuls
    # (W taps / W padding folded into t1) + sublane-shifted adds for the H taps.
    f0 = jnp.dot(fm2d, t1_ref[0], preferred_element_type=F32)       # (8*TB, 320)
    f1 = jnp.dot(fm2d, t1_ref[1], preferred_element_type=F32)
    f2 = jnp.dot(fm2d, t1_ref[2], preferred_element_type=F32)
    z1 = jnp.zeros((TB, KW), F32)
    z2 = jnp.zeros((2 * TB, KW), F32)
    d1 = (jnp.concatenate([z2, f0], axis=0)
          + jnp.concatenate([z1, f1, z1], axis=0)
          + jnp.concatenate([f2, z2], axis=0))                      # (10*TB, 320), row oy*TB+b
    d1 = jnp.maximum(d1 + b1_ref[...], 0.0).astype(BF16)

    # fused (advantage, value, V + A - mean_c A) stride-2 transposed conv:
    # the stride-2 zero dilation, W padding, kernel flip and channel-mean subtraction are
    # folded into w2q, so this is 3 whole-tile matmuls + shifted-row adds.
    p0 = jnp.dot(d1, w2q_ref[0], preferred_element_type=F32)        # (10*TB, 128)
    p1 = jnp.dot(d1, w2q_ref[1], preferred_element_type=F32)
    p2 = jnp.dot(d1, w2q_ref[2], preferred_element_type=F32)
    zq = jnp.zeros((TB, NQ), F32)
    bq = bq_ref[...]
    # even Qaux output rows oy = 2m  (row order m*TB + b) -> one dense 128-lane store
    qe_ref[...] = (jnp.concatenate([zq, p0], axis=0)
                   + jnp.concatenate([p2, zq], axis=0) + bq)        # (11*TB, 128)
    # odd Qaux output rows  oy = 2m+1
    qo_ref[...] = p1 + bq                                           # (10*TB, 128)


# ----------------------------------------------------------------------------
# Wrapper
# ----------------------------------------------------------------------------
def unreal_forward(x_flat, p, batch_tile=8):
    """Returns (policy, value, enc_state, Qaux [B,A,21,21] NCHW, reward_logits)."""
    B, IN = x_flat.shape
    D = p['enc_w'].shape[1]
    A = p['pi_w'].shape[1]
    NQ = p['w2q_k'].shape[2]
    TB = batch_tile
    G = -(-B // TB)                       # batch tiles = grid size
    B_pad = G * TB                        # pad batch to sublane-aligned tiles
    x_in = x_flat if B_pad == B else jnp.concatenate(
        [x_flat, jnp.zeros((B_pad - B, IN), x_flat.dtype)], axis=0)

    ins = (x_in, p['enc_w_k'], p['enc_b'], p['hw'], p['hb'],
           p['r1_w'], p['r1_b'], p['r2w_pad'],
           p['fm_w_k'], p['fm_b_k'], p['t1'], p['b1_row'], p['w2q_k'], p['bq_row'])

    flops = 2 * B_pad * (IN * D + D * HEAD_LANES + D * 128 + 128 * HEAD_LANES
                         + D * FM_C * FM_H * FM_W
                         + 3 * FM_H * FM_W * FM_C * D1_W * FM_C
                         + 3 * D1_H * D1_W * FM_C * NQ)
    out_elems = B_pad * (HEAD_LANES + D) + B_pad * (QE_H + QO_H) * NQ
    cost = pl.CostEstimate(
        flops=flops, transcendentals=B_pad * HEAD_LANES,
        bytes_accessed=sum(int(a.size) * a.dtype.itemsize for a in ins) + 4 * out_elems)

    def _resident(a):                     # whole weight, VMEM-resident across the grid
        nd = a.ndim
        return pl.BlockSpec(a.shape, lambda i: (0,) * nd)

    heads, enc, qe, qo = pl.pallas_call(
        functools.partial(unreal_fused_kernel, action_size=A),
        grid=(G,),
        out_shape=(jax.ShapeDtypeStruct((B_pad, HEAD_LANES), F32),
                   jax.ShapeDtypeStruct((B_pad, D), F32),
                   jax.ShapeDtypeStruct((G * QE_H * TB, NQ), F32),
                   jax.ShapeDtypeStruct((G * QO_H * TB, NQ), F32)),
        in_specs=[pl.BlockSpec((TB, IN), lambda i: (i, 0))]
                 + [_resident(a) for a in ins[1:]],
        out_specs=(pl.BlockSpec((TB, HEAD_LANES), lambda i: (i, 0)),
                   pl.BlockSpec((TB, D), lambda i: (i, 0)),
                   pl.BlockSpec((QE_H * TB, NQ), lambda i: (i, 0)),
                   pl.BlockSpec((QO_H * TB, NQ), lambda i: (i, 0))),
        compiler_params=pltpu.CompilerParams(
            dimension_semantics=("parallel",),        # batch tiles across cores (v7x 2 TCs)
            vmem_limit_bytes=32 * 1024 * 1024),
        cost_estimate=cost,
    )(*ins)

    # ---- wrapper glue (plain XLA): unpack heads, interleave even/odd Q rows --
    pi = heads[:B, :A]
    v = heads[:B, A:A + 1]
    rew = heads[:B, A + 1:A + 4]
    enc = enc[:B]

    qe = qe[:, :A * Q_W].reshape(G, QE_H, TB, A, Q_W).transpose(0, 2, 3, 1, 4)
    qo = qo[:, :A * Q_W].reshape(G, QO_H, TB, A, Q_W).transpose(0, 2, 3, 1, 4)
    qe = qe.reshape(B_pad, A, QE_H, Q_W)[:B]
    qo = qo.reshape(B_pad, A, QO_H, Q_W)[:B]
    q = jnp.zeros((B, A, Q_H, Q_W), F32)
    q = q.at[:, :, 0::2, :].set(qe).at[:, :, 1::2, :].set(qo)
    return pi, v, enc, q, rew


# ----------------------------------------------------------------------------
# Parameter init + kernel-layout weight preparation (pure glue, runs once)
# ----------------------------------------------------------------------------
def _flip_transpose(w_pt):
    # torch ConvTranspose2d weight (Cin, Cout, kH, kW) -> conv weight (kH, kW, Cin, Cout),
    # spatially flipped (transposed conv == conv of zero-dilated/padded input, flipped kernel)
    return jnp.transpose(w_pt[:, :, ::-1, ::-1], (2, 3, 0, 1))


def init_params(key, in_features, dense_size, action_size):
    assert action_size + 4 <= HEAD_LANES
    A = action_size
    ks = jax.random.split(key, 18)

    def lin(kw, kb, fi, fo):
        return (jax.random.normal(kw, (fi, fo), F32) / jnp.sqrt(float(fi)),
                0.05 * jax.random.normal(kb, (1, fo), F32))

    enc_w, enc_b = lin(ks[0], ks[1], in_features, dense_size)
    pi_w, pi_b = lin(ks[2], ks[3], dense_size, A)
    v_w, v_b = lin(ks[4], ks[5], dense_size, 1)
    fm_w, fm_b = lin(ks[6], ks[7], dense_size, FM_C * FM_H * FM_W)
    sc = 1.0 / jnp.sqrt(float(FM_C) * 9.0)
    d1_w = sc * jax.random.normal(ks[8], (FM_C, FM_C, 3, 3), F32)   # torch (Cin,Cout,kH,kW)
    d1_b = 0.05 * jax.random.normal(ks[9], (FM_C,), F32)
    adv_w = sc * jax.random.normal(ks[10], (FM_C, A, 3, 3), F32)
    adv_b = 0.05 * jax.random.normal(ks[11], (A,), F32)
    val_w = sc * jax.random.normal(ks[12], (FM_C, 1, 3, 3), F32)
    val_b = 0.05 * jax.random.normal(ks[13], (1,), F32)
    r1_w, r1_b = lin(ks[14], ks[15], dense_size, 128)
    r2_w, r2_b = lin(ks[16], ks[17], 128, 3)

    p = dict(enc_w=enc_w, enc_b=enc_b, pi_w=pi_w, pi_b=pi_b, v_w=v_w, v_b=v_b,
             fm_w=fm_w, fm_b=fm_b, d1_w=d1_w, d1_b=d1_b,
             adv_w=adv_w, adv_b=adv_b, val_w=val_w, val_b=val_b,
             r1_w=r1_w, r1_b=r1_b, r2_w=r2_w, r2_b=r2_b)

    # ----- kernel-layout weights (built once; big MXU operands stored as bf16) -----
    p['enc_w_k'] = enc_w.astype(BF16)

    # policy/value/reward packed into one 128-lane head row:
    #   heads_pre = h @ hw + relu(h @ r1_w + r1_b) @ r2w_pad + hb
    hw = jnp.zeros((dense_size, HEAD_LANES), F32)
    p['hw'] = hw.at[:, :A].set(pi_w).at[:, A:A + 1].set(v_w)
    hb = jnp.zeros((1, HEAD_LANES), F32)
    p['hb'] = hb.at[:, :A].set(pi_b).at[:, A:A + 1].set(v_b).at[:, A + 1:A + 4].set(r2_b)
    p['r2w_pad'] = jnp.zeros((128, HEAD_LANES), F32).at[:, A + 1:A + 4].set(r2_w)

    # feat_map columns permuted: torch col c*64+y*8+x  ->  NHWC row-flat y*256+x*32+c
    yy, xx, cc = jnp.meshgrid(jnp.arange(FM_H), jnp.arange(FM_W), jnp.arange(FM_C),
                              indexing='ij')
    perm = (cc * (FM_H * FM_W) + yy * FM_W + xx).reshape(-1)
    p['fm_w_k'] = fm_w[:, perm].astype(BF16)
    p['fm_b_k'] = fm_b[:, perm]

    # deconv1 row-Toeplitz weights: T1[ky] in (8*32, 10*32)
    #   T1[ky][xf*32+ci, ox*32+co] = w1f[ky, xf+2-ox, ci, co]   (only 0<=kx<=2)
    w1f = _flip_transpose(d1_w)                                      # (3,3,32,32)
    xf = jnp.arange(FM_W)[:, None]
    ox1 = jnp.arange(D1_W)[None, :]
    kx1 = xf + 2 - ox1
    ok1 = (kx1 >= 0) & (kx1 <= 2)
    blk1 = jnp.where(ok1[None, :, :, None, None], w1f[:, jnp.clip(kx1, 0, 2)], 0.0)
    p['t1'] = blk1.transpose(0, 1, 3, 2, 4).reshape(
        3, FM_W * FM_C, D1_W * FM_C).astype(BF16)
    p['b1_row'] = jnp.tile(d1_b, D1_W).reshape(1, D1_W * FM_C)       # column index ox*32+co

    # fused Qaux weights: q = V + A - mean_c(A) is linear in deconv1 -> fold into one conv
    # (stride-2 zero dilation, W padding and kernel flip absorbed into the weight).
    wadv_f = _flip_transpose(adv_w)                                  # (3,3,32,A)
    wval_f = _flip_transpose(val_w)                                  # (3,3,32,1)
    wq = wval_f + wadv_f - jnp.mean(wadv_f, axis=-1, keepdims=True)  # (3,3,32,A)
    #   W2q[ky] in (10*32, A*21): W2q[ky][x*32+ci, a*21+ox] = wq[ky, 2+2x-ox, ci, a]
    x2 = jnp.arange(D1_W)[:, None]
    ox2 = jnp.arange(Q_W)[None, :]
    kx2 = 2 + 2 * x2 - ox2
    ok2 = (kx2 >= 0) & (kx2 <= 2)
    blk2 = jnp.where(ok2[None, :, :, None, None], wq[:, jnp.clip(kx2, 0, 2)], 0.0)
    w2q = blk2.transpose(0, 1, 3, 4, 2).reshape(3, D1_W * FM_C, A * Q_W)
    bqv = val_b[0] + adv_b - jnp.mean(adv_b)                         # (A,)
    bq_row = jnp.repeat(bqv, Q_W).reshape(1, A * Q_W)                # column index a*21+ox
    # lane-pad the Qaux columns (A*21 = 84) up to a multiple of 128 for dense stores.
    # TODO(synk): t1/w2q keep ~2/3 structural zeros from the Toeplitz folding; revisit
    #             (per-kx dense weights) only if large-batch profiles become MXU-bound.
    nq = -(-A * Q_W // 128) * 128
    p['w2q_k'] = jnp.pad(w2q, ((0, 0), (0, 0), (0, nq - A * Q_W))).astype(BF16)
    p['bq_row'] = jnp.pad(bq_row, ((0, 0), (0, nq - A * Q_W)))
    return p


# ----------------------------------------------------------------------------
# Pure-JAX references (exact torch semantics, HIGHEST precision) for validation
# ----------------------------------------------------------------------------
_HP = jax.lax.Precision.HIGHEST


def _conv_transpose2d_ref(x, w, b, stride):
    # x NCHW, w (Cin, Cout, 3, 3), padding=0
    B, Cin, H, W = x.shape
    Cout = w.shape[1]
    Ho, Wo = (H - 1) * stride + 3, (W - 1) * stride + 3
    out = jnp.zeros((B, Cout, Ho, Wo), F32)
    for ky in range(3):
        for kx in range(3):
            c = jnp.einsum('bchw,cd->bdhw', x, w[:, :, ky, kx], precision=_HP)
            out = out.at[:, :, ky:ky + (H - 1) * stride + 1:stride,
                         kx:kx + (W - 1) * stride + 1:stride].add(c)
    return out + b.reshape(1, Cout, 1, 1)


def forward_ref(x_flat, p):
    h = jnp.maximum(jnp.dot(x_flat, p['enc_w'], precision=_HP) + p['enc_b'], 0.0)
    logits = jnp.dot(h, p['pi_w'], precision=_HP) + p['pi_b']
    pi = jax.nn.softmax(logits, axis=-1)
    v = jnp.dot(h, p['v_w'], precision=_HP) + p['v_b']
    return pi, v, h


def qaux_ref(enc, p):
    B = enc.shape[0]
    fm = jnp.maximum(jnp.dot(enc, p['fm_w'], precision=_HP) + p['fm_b'], 0.0)
    fm = fm.reshape(B, FM_C, FM_H, FM_W)
    d1 = jnp.maximum(_conv_transpose2d_ref(fm, p['d1_w'], p['d1_b'], 1), 0.0)
    adv = _conv_transpose2d_ref(d1, p['adv_w'], p['adv_b'], 2)
    val = _conv_transpose2d_ref(d1, p['val_w'], p['val_b'], 2)
    return val + adv - jnp.mean(adv, axis=1, keepdims=True)


def reward_ref(enc, p):
    r1 = jnp.maximum(jnp.dot(enc, p['r1_w'], precision=_HP) + p['r1_b'], 0.0)
    return jnp.dot(r1, p['r2_w'], precision=_HP) + p['r2_b']


# ----------------------------------------------------------------------------
if __name__ == "__main__":
    B, C, H, W = 2, 4, 16, 16
    action_size = 4
    dense_size = 128

    root = jax.random.PRNGKey(0)
    pkey, skey = jax.random.split(root)
    params = init_params(pkey, C * H * W, dense_size, action_size)
    state = jax.random.normal(skey, (B, C, H, W), F32)      # NCHW like the torch module
    x_flat = state.reshape(B, -1)                           # policy_model stand-in flattens NCHW

    run = jax.jit(unreal_forward)
    pi, v, enc, q, rew = run(x_flat, params)                # forward() + Qaux() + r2(r1(enc))
    jax.block_until_ready((pi, v, enc, q, rew))

    # references (HIGHEST precision, exact torch semantics)
    pi_r, v_r, enc_r = forward_ref(x_flat, params)
    q_r = qaux_ref(enc_r, params)
    rew_r = reward_ref(enc_r, params)

    assert pi.shape == (B, action_size) and v.shape == (B, 1) and enc.shape == (B, dense_size)
    assert q.shape == (B, action_size, 21, 21)
    assert rew.shape == (B, 3)

    # Tolerance covers bf16 MXU operands (perf review item) vs the Precision.HIGHEST
    # reference compounding through encoder -> feat_map -> deconv1 -> Qaux;
    # real layout bugs would show up as O(0.1-1) errors.
    tol = dict(atol=2e-2, rtol=2e-2)
    assert jnp.allclose(pi, pi_r, **tol), "policy mismatch"
    assert jnp.allclose(v, v_r, **tol), "value mismatch"
    assert jnp.allclose(enc, enc_r, **tol), "encoder mismatch"
    assert jnp.allclose(q, q_r, **tol), "Qaux mismatch"
    assert jnp.allclose(rew, rew_r, **tol), "reward head mismatch"

    print("KERNEL_OK")
</pallas_src>

<mosaic_0001>
module attributes {stable_mosaic.version = 11 : i64} {
  func.func @unreal_fused_kernel(%arg0: i32, %arg1: memref<8x1024xf32, #tpu.memory_space<vmem>>, %arg2: memref<1024x128xbf16, #tpu.memory_space<vmem>>, %arg3: memref<1x128xf32, #tpu.memory_space<vmem>>, %arg4: memref<128x128xf32, #tpu.memory_space<vmem>>, %arg5: memref<1x128xf32, #tpu.memory_space<vmem>>, %arg6: memref<128x128xf32, #tpu.memory_space<vmem>>, %arg7: memref<1x128xf32, #tpu.memory_space<vmem>>, %arg8: memref<128x128xf32, #tpu.memory_space<vmem>>, %arg9: memref<128x2048xbf16, #tpu.memory_space<vmem>>, %arg10: memref<1x2048xf32, #tpu.memory_space<vmem>>, %arg11: memref<3x256x320xbf16, #tpu.memory_space<vmem>>, %arg12: memref<1x320xf32, #tpu.memory_space<vmem>>, %arg13: memref<3x320x128xbf16, #tpu.memory_space<vmem>>, %arg14: memref<1x128xf32, #tpu.memory_space<vmem>>, %arg15: memref<8x128xf32, #tpu.memory_space<vmem>>, %arg16: memref<8x128xf32, #tpu.memory_space<vmem>>, %arg17: memref<88x128xf32, #tpu.memory_space<vmem>>, %arg18: memref<80x128xf32, #tpu.memory_space<vmem>>) attributes {dimension_semantics = [#tpu.dimension_semantics<parallel>], iteration_bounds = array<i64: 1>, scalar_prefetch = 0 : i64, scratch_operands = 0 : i64, tpu.core_type = #tpu.core_type<tc>, window_params = [{transform_indices = @transform_0, window_bounds = array<i64: 8, 1024>}, {pipeline_mode = #tpu.pipeline_mode<synchronous>, transform_indices = @transform_1, window_bounds = array<i64: 1024, 128>}, {pipeline_mode = #tpu.pipeline_mode<synchronous>, transform_indices = @transform_2, window_bounds = array<i64: 1, 128>}, {pipeline_mode = #tpu.pipeline_mode<synchronous>, transform_indices = @transform_3, window_bounds = array<i64: 128, 128>}, {pipeline_mode = #tpu.pipeline_mode<synchronous>, transform_indices = @transform_4, window_bounds = array<i64: 1, 128>}, {pipeline_mode = #tpu.pipeline_mode<synchronous>, transform_indices = @transform_5, window_bounds = array<i64: 128, 128>}, {pipeline_mode = #tpu.pipeline_mode<synchronous>, transform_indices = @transform_6, window_bounds = array<i64: 1, 128>}, {pipeline_mode = #tpu.pipeline_mode<synchronous>, transform_indices = @transform_7, window_bounds = array<i64: 128, 128>}, {pipeline_mode = #tpu.pipeline_mode<synchronous>, transform_indices = @transform_8, window_bounds = array<i64: 128, 2048>}, {pipeline_mode = #tpu.pipeline_mode<synchronous>, transform_indices = @transform_9, window_bounds = array<i64: 1, 2048>}, {pipeline_mode = #tpu.pipeline_mode<synchronous>, transform_indices = @transform_10, window_bounds = array<i64: 3, 256, 320>}, {pipeline_mode = #tpu.pipeline_mode<synchronous>, transform_indices = @transform_11, window_bounds = array<i64: 1, 320>}, {pipeline_mode = #tpu.pipeline_mode<synchronous>, transform_indices = @transform_12, window_bounds = array<i64: 3, 320, 128>}, {pipeline_mode = #tpu.pipeline_mode<synchronous>, transform_indices = @transform_13, window_bounds = array<i64: 1, 128>}, {transform_indices = @transform_14, window_bounds = array<i64: 8, 128>}, {transform_indices = @transform_15, window_bounds = array<i64: 8, 128>}, {transform_indices = @transform_16, window_bounds = array<i64: 88, 128>}, {transform_indices = @transform_17, window_bounds = array<i64: 80, 128>}]} {
    %c0 = arith.constant 0 : index
    %c0_0 = arith.constant 0 : index
    %0 = vector.load %arg1[%c0, %c0_0] : memref<8x1024xf32, #tpu.memory_space<vmem>>, vector<8x1024xf32>
    %1 = arith.truncf %0 : vector<8x1024xf32> to vector<8x1024xbf16>
    %c0_1 = arith.constant 0 : index
    %c0_2 = arith.constant 0 : index
    %2 = vector.load %arg2[%c0_1, %c0_2] : memref<1024x128xbf16, #tpu.memory_space<vmem>>, vector<1024x128xbf16>
    %cst = arith.constant dense<0.000000e+00> : vector<8x128xf32>
    %3 = tpu.matmul %1, %2, %cst {dimension_numbers = #tpu.dot_dimension_numbers<[1], [0], [0], [1], [0, 0, 1, 1], [], []>} : vector<8x1024xbf16>, vector<1024x128xbf16>, vector<8x128xf32> -> vector<8x128xf32>
    %c0_3 = arith.constant 0 : index
    %c0_4 = arith.constant 0 : index
    %4 = vector.load %arg3[%c0_3, %c0_4] : memref<1x128xf32, #tpu.memory_space<vmem>>, vector<1x128xf32>
    %5 = vector.broadcast %4 : vector<1x128xf32> to vector<8x128xf32>
    %6 = arith.addf %3, %5 : vector<8x128xf32>
    %cst_5 = arith.constant 0.000000e+00 : f32
    %7 = vector.broadcast %cst_5 : f32 to vector<8x128xf32>
    %8 = arith.maximumf %6, %7 : vector<8x128xf32>
    %c0_6 = arith.constant 0 : index
    %c0_7 = arith.constant 0 : index
    %9 = vector.load %arg16[%c0_6, %c0_7] : memref<8x128xf32, #tpu.memory_space<vmem>>, vector<8x128xf32>
    tpu.vector_store %arg16[%c0_6, %c0_7], %8 {strides = array<i32>} : memref<8x128xf32, #tpu.memory_space<vmem>>, vector<8x128xf32>,
    %c0_8 = arith.constant 0 : index
    %c0_9 = arith.constant 0 : index
    %10 = vector.load %arg6[%c0_8, %c0_9] : memref<128x128xf32, #tpu.memory_space<vmem>>, vector<128x128xf32>
    %cst_10 = arith.constant dense<0.000000e+00> : vector<8x128xf32>
    %11 = tpu.matmul %8, %10, %cst_10 {dimension_numbers = #tpu.dot_dimension_numbers<[1], [0], [0], [1], [0, 0, 1, 1], [], []>} : vector<8x128xf32>, vector<128x128xf32>, vector<8x128xf32> -> vector<8x128xf32>
    %c0_11 = arith.constant 0 : index
    %c0_12 = arith.constant 0 : index
    %12 = vector.load %arg7[%c0_11, %c0_12] : memref<1x128xf32, #tpu.memory_space<vmem>>, vector<1x128xf32>
    %13 = vector.broadcast %12 : vector<1x128xf32> to vector<8x128xf32>
    %14 = arith.addf %11, %13 : vector<8x128xf32>
    %cst_13 = arith.constant 0.000000e+00 : f32
    %15 = vector.broadcast %cst_13 : f32 to vector<8x128xf32>
    %16 = arith.maximumf %14, %15 : vector<8x128xf32>
    %c0_14 = arith.constant 0 : index
    %c0_15 = arith.constant 0 : index
    %17 = vector.load %arg4[%c0_14, %c0_15] : memref<128x128xf32, #tpu.memory_space<vmem>>, vector<128x128xf32>
    %cst_16 = arith.constant dense<0.000000e+00> : vector<8x128xf32>
    %18 = tpu.matmul %8, %17, %cst_16 {dimension_numbers = #tpu.dot_dimension_numbers<[1], [0], [0], [1], [0, 0, 1, 1], [], []>} : vector<8x128xf32>, vector<128x128xf32>, vector<8x128xf32> -> vector<8x128xf32>
    %c0_17 = arith.constant 0 : index
    %c0_18 = arith.constant 0 : index
    %19 = vector.load %arg8[%c0_17, %c0_18] : memref<128x128xf32, #tpu.memory_space<vmem>>, vector<128x128xf32>
    %cst_19 = arith.constant dense<0.000000e+00> : vector<8x128xf32>
    %20 = tpu.matmul %16, %19, %cst_19 {dimension_numbers = #tpu.dot_dimension_numbers<[1], [0], [0], [1], [0, 0, 1, 1], [], []>} : vector<8x128xf32>, vector<128x128xf32>, vector<8x128xf32> -> vector<8x128xf32>
    %21 = arith.addf %18, %20 : vector<8x128xf32>
    %c0_20 = arith.constant 0 : index
    %c0_21 = arith.constant 0 : index
    %22 = vector.load %arg5[%c0_20, %c0_21] : memref<1x128xf32, #tpu.memory_space<vmem>>, vector<1x128xf32>
    %23 = vector.broadcast %22 : vector<1x128xf32> to vector<8x128xf32>
    %24 = arith.addf %21, %23 : vector<8x128xf32>
    %25 = tpu.iota {dimensions = array<i32: 1>} : vector<8x128xi32>
    %c4_i32 = arith.constant 4 : i32
    %26 = vector.broadcast %c4_i32 : i32 to vector<8x128xi32>
    %27 = arith.cmpi slt, %25, %26 : vector<8x128xi32>
    %cst_22 = arith.constant -1.000000e+30 : f32
    %28 = vector.broadcast %cst_22 : f32 to vector<8x128xf32>
    %29 = arith.select %27, %24, %28 : vector<8x128xi1>, vector<8x128xf32>
    %cst_23 = arith.constant dense<0xFF800000> : vector<8xf32>
    %30 = vector.multi_reduction <maximumf>, %29, %cst_23 [1] : vector<8x128xf32> to vector<8xf32>
    %31 = vector.shape_cast %30 : vector<8xf32> to vector<8x1xf32>
    %32 = vector.broadcast %31 : vector<8x1xf32> to vector<8x128xf32>
    %33 = arith.subf %29, %32 : vector<8x128xf32>
    %34 = math.exp %33 : vector<8x128xf32>
    %cst_24 = arith.constant dense<0.000000e+00> : vector<8xf32>
    %35 = vector.multi_reduction <add>, %34, %cst_24 [1] : vector<8x128xf32> to vector<8xf32>
    %36 = vector.shape_cast %35 : vector<8xf32> to vector<8x1xf32>
    %37 = vector.broadcast %36 : vector<8x1xf32> to vector<8x128xf32>
    %38 = arith.divf %34, %37 : vector<8x128xf32>
    %c4_i32_25 = arith.constant 4 : i32
    %39 = vector.broadcast %c4_i32_25 : i32 to vector<8x128xi32>
    %40 = arith.cmpi slt, %25, %39 : vector<8x128xi32>
    %41 = arith.select %40, %38, %24 : vector<8x128xi1>, vector<8x128xf32>
    %c0_26 = arith.constant 0 : index
    %c0_27 = arith.constant 0 : index
    %42 = vector.load %arg15[%c0_26, %c0_27] : memref<8x128xf32, #tpu.memory_space<vmem>>, vector<8x128xf32>
    tpu.vector_store %arg15[%c0_26, %c0_27], %41 {strides = array<i32>} : memref<8x128xf32, #tpu.memory_space<vmem>>, vector<8x128xf32>,
    %43 = arith.truncf %8 : vector<8x128xf32> to vector<8x128xbf16>
    %c0_28 = arith.constant 0 : index
    %c0_29 = arith.constant 0 : index
    %44 = vector.load %arg9[%c0_28, %c0_29] : memref<128x2048xbf16, #tpu.memory_space<vmem>>, vector<128x2048xbf16>
    %cst_30 = arith.constant dense<0.000000e+00> : vector<8x2048xf32>
    %45 = tpu.matmul %43, %44, %cst_30 {dimension_numbers = #tpu.dot_dimension_numbers<[1], [0], [0], [1], [0, 0, 1, 1], [], []>} : vector<8x128xbf16>, vector<128x2048xbf16>, vector<8x2048xf32> -> vector<8x2048xf32>
    %c0_31 = arith.constant 0 : index
    %c0_32 = arith.constant 0 : index
    %46 = vector.load %arg10[%c0_31, %c0_32] : memref<1x2048xf32, #tpu.memory_space<vmem>>, vector<1x2048xf32>
    %47 = vector.broadcast %46 : vector<1x2048xf32> to vector<8x2048xf32>
    %48 = arith.addf %45, %47 : vector<8x2048xf32>
    %cst_33 = arith.constant 0.000000e+00 : f32
    %49 = vector.broadcast %cst_33 : f32 to vector<8x2048xf32>
    %50 = arith.maximumf %48, %49 : vector<8x2048xf32>
    %51 = vector.extract_strided_slice %50 {offsets = [0, 0], sizes = [8, 256], strides = [1, 1]} : vector<8x2048xf32> to vector<8x256xf32>
    %52 = vector.extract_strided_slice %50 {offsets = [0, 256], sizes = [8, 256], strides = [1, 1]} : vector<8x2048xf32> to vector<8x256xf32>
    %53 = vector.extract_strided_slice %50 {offsets = [0, 512], sizes = [8, 256], strides = [1, 1]} : vector<8x2048xf32> to vector<8x256xf32>
    %54 = vector.extract_strided_slice %50 {offsets = [0, 768], sizes = [8, 256], strides = [1, 1]} : vector<8x2048xf32> to vector<8x256xf32>
    %55 = vector.extract_strided_slice %50 {offsets = [0, 1024], sizes = [8, 256], strides = [1, 1]} : vector<8x2048xf32> to vector<8x256xf32>
    %56 = vector.extract_strided_slice %50 {offsets = [0, 1280], sizes = [8, 256], strides = [1, 1]} : vector<8x2048xf32> to vector<8x256xf32>
    %57 = vector.extract_strided_slice %50 {offsets = [0, 1536], sizes = [8, 256], strides = [1, 1]} : vector<8x2048xf32> to vector<8x256xf32>
    %58 = vector.extract_strided_slice %50 {offsets = [0, 1792], sizes = [8, 256], strides = [1, 1]} : vector<8x2048xf32> to vector<8x256xf32>
    %59 = tpu.concatenate %51, %52, %53, %54, %55, %56, %57, %58 in 0 : vector<8x256xf32>, vector<8x256xf32>, vector<8x256xf32>, vector<8x256xf32>, vector<8x256xf32>, vector<8x256xf32>, vector<8x256xf32>, vector<8x256xf32> -> vector<64x256xf32>
    %60 = arith.truncf %59 : vector<64x256xf32> to vector<64x256xbf16>
    %c0_34 = arith.constant 0 : index
    %c0_35 = arith.constant 0 : index
    %c0_36 = arith.constant 0 : index
    %61 = vector.load %arg11[%c0_34, %c0_35, %c0_36] : memref<3x256x320xbf16, #tpu.memory_space<vmem>>, vector<1x256x320xbf16>
    %62 = vector.shape_cast %61 : vector<1x256x320xbf16> to vector<256x320xbf16>
    %cst_37 = arith.constant dense<0.000000e+00> : vector<64x320xf32>
    %63 = tpu.matmul %60, %62, %cst_37 {dimension_numbers = #tpu.dot_dimension_numbers<[1], [0], [0], [1], [0, 0, 1, 1], [], []>} : vector<64x256xbf16>, vector<256x320xbf16>, vector<64x320xf32> -> vector<64x320xf32>
    %c1 = arith.constant 1 : index
    %c0_38 = arith.constant 0 : index
    %c0_39 = arith.constant 0 : index
    %64 = vector.load %arg11[%c1, %c0_38, %c0_39] : memref<3x256x320xbf16, #tpu.memory_space<vmem>>, vector<1x256x320xbf16>
    %65 = vector.shape_cast %64 : vector<1x256x320xbf16> to vector<256x320xbf16>
    %cst_40 = arith.constant dense<0.000000e+00> : vector<64x320xf32>
    %66 = tpu.matmul %60, %65, %cst_40 {dimension_numbers = #tpu.dot_dimension_numbers<[1], [0], [0], [1], [0, 0, 1, 1], [], []>} : vector<64x256xbf16>, vector<256x320xbf16>, vector<64x320xf32> -> vector<64x320xf32>
    %c2 = arith.constant 2 : index
    %c0_41 = arith.constant 0 : index
    %c0_42 = arith.constant 0 : index
    %67 = vector.load %arg11[%c2, %c0_41, %c0_42] : memref<3x256x320xbf16, #tpu.memory_space<vmem>>, vector<1x256x320xbf16>
    %68 = vector.shape_cast %67 : vector<1x256x320xbf16> to vector<256x320xbf16>
    %cst_43 = arith.constant dense<0.000000e+00> : vector<64x320xf32>
    %69 = tpu.matmul %60, %68, %cst_43 {dimension_numbers = #tpu.dot_dimension_numbers<[1], [0], [0], [1], [0, 0, 1, 1], [], []>} : vector<64x256xbf16>, vector<256x320xbf16>, vector<64x320xf32> -> vector<64x320xf32>
    %cst_44 = arith.constant 0.000000e+00 : f32
    %70 = vector.broadcast %cst_44 : f32 to vector<8x320xf32>
    %cst_45 = arith.constant 0.000000e+00 : f32
    %71 = vector.broadcast %cst_45 : f32 to vector<16x320xf32>
    %72 = tpu.concatenate %71, %63 in 0 : vector<16x320xf32>, vector<64x320xf32> -> vector<80x320xf32>
    %73 = tpu.concatenate %70, %66, %70 in 0 : vector<8x320xf32>, vector<64x320xf32>, vector<8x320xf32> -> vector<80x320xf32>
    %74 = arith.addf %72, %73 : vector<80x320xf32>
    %75 = tpu.concatenate %69, %71 in 0 : vector<64x320xf32>, vector<16x320xf32> -> vector<80x320xf32>
    %76 = arith.addf %74, %75 : vector<80x320xf32>
    %c0_46 = arith.constant 0 : index
    %c0_47 = arith.constant 0 : index
    %77 = vector.load %arg12[%c0_46, %c0_47] : memref<1x320xf32, #tpu.memory_space<vmem>>, vector<1x320xf32>
    %78 = vector.broadcast %77 : vector<1x320xf32> to vector<80x320xf32>
    %79 = arith.addf %76, %78 : vector<80x320xf32>
    %cst_48 = arith.constant 0.000000e+00 : f32
    %80 = vector.broadcast %cst_48 : f32 to vector<80x320xf32>
    %81 = arith.maximumf %79, %80 : vector<80x320xf32>
    %82 = arith.truncf %81 : vector<80x320xf32> to vector<80x320xbf16>
    %c0_49 = arith.constant 0 : index
    %c0_50 = arith.constant 0 : index
    %c0_51 = arith.constant 0 : index
    %83 = vector.load %arg13[%c0_49, %c0_50, %c0_51] : memref<3x320x128xbf16, #tpu.memory_space<vmem>>, vector<1x320x128xbf16>
    %84 = vector.shape_cast %83 : vector<1x320x128xbf16> to vector<320x128xbf16>
    %cst_52 = arith.constant dense<0.000000e+00> : vector<80x128xf32>
    %85 = tpu.matmul %82, %84, %cst_52 {dimension_numbers = #tpu.dot_dimension_numbers<[1], [0], [0], [1], [0, 0, 1, 1], [], []>} : vector<80x320xbf16>, vector<320x128xbf16>, vector<80x128xf32> -> vector<80x128xf32>
    %c1_53 = arith.constant 1 : index
    %c0_54 = arith.constant 0 : index
    %c0_55 = arith.constant 0 : index
    %86 = vector.load %arg13[%c1_53, %c0_54, %c0_55] : memref<3x320x128xbf16, #tpu.memory_space<vmem>>, vector<1x320x128xbf16>
    %87 = vector.shape_cast %86 : vector<1x320x128xbf16> to vector<320x128xbf16>
    %cst_56 = arith.constant dense<0.000000e+00> : vector<80x128xf32>
    %88 = tpu.matmul %82, %87, %cst_56 {dimension_numbers = #tpu.dot_dimension_numbers<[1], [0], [0], [1], [0, 0, 1, 1], [], []>} : vector<80x320xbf16>, vector<320x128xbf16>, vector<80x128xf32> -> vector<80x128xf32>
    %c2_57 = arith.constant 2 : index
    %c0_58 = arith.constant 0 : index
    %c0_59 = arith.constant 0 : index
    %89 = vector.load %arg13[%c2_57, %c0_58, %c0_59] : memref<3x320x128xbf16, #tpu.memory_space<vmem>>, vector<1x320x128xbf16>
    %90 = vector.shape_cast %89 : vector<1x320x128xbf16> to vector<320x128xbf16>
    %cst_60 = arith.constant dense<0.000000e+00> : vector<80x128xf32>
    %91 = tpu.matmul %82, %90, %cst_60 {dimension_numbers = #tpu.dot_dimension_numbers<[1], [0], [0], [1], [0, 0, 1, 1], [], []>} : vector<80x320xbf16>, vector<320x128xbf16>, vector<80x128xf32> -> vector<80x128xf32>
    %cst_61 = arith.constant 0.000000e+00 : f32
    %92 = vector.broadcast %cst_61 : f32 to vector<8x128xf32>
    %c0_62 = arith.constant 0 : index
    %c0_63 = arith.constant 0 : index
    %93 = vector.load %arg14[%c0_62, %c0_63] : memref<1x128xf32, #tpu.memory_space<vmem>>, vector<1x128xf32>
    %94 = tpu.concatenate %92, %85 in 0 : vector<8x128xf32>, vector<80x128xf32> -> vector<88x128xf32>
    %95 = tpu.concatenate %91, %92 in 0 : vector<80x128xf32>, vector<8x128xf32> -> vector<88x128xf32>
    %96 = arith.addf %94, %95 : vector<88x128xf32>
    %97 = vector.broadcast %93 : vector<1x128xf32> to vector<88x128xf32>
    %98 = arith.addf %96, %97 : vector<88x128xf32>
    %c0_64 = arith.constant 0 : index
    %c0_65 = arith.constant 0 : index
    %99 = vector.load %arg17[%c0_64, %c0_65] : memref<88x128xf32, #tpu.memory_space<vmem>>, vector<88x128xf32>
    tpu.vector_store %arg17[%c0_64, %c0_65], %98 {strides = array<i32>} : memref<88x128xf32, #tpu.memory_space<vmem>>, vector<88x128xf32>,
    %100 = vector.broadcast %93 : vector<1x128xf32> to vector<80x128xf32>
    %101 = arith.addf %88, %100 : vector<80x128xf32>
    %c0_66 = arith.constant 0 : index
    %c0_67 = arith.constant 0 : index
    %102 = vector.load %arg18[%c0_66, %c0_67] : memref<80x128xf32, #tpu.memory_space<vmem>>, vector<80x128xf32>
    tpu.vector_store %arg18[%c0_66, %c0_67], %101 {strides = array<i32>} : memref<80x128xf32, #tpu.memory_space<vmem>>, vector<80x128xf32>,
    return
  }
  func.func @transform_0(%arg0: i32) -> (i32, i32) {
    %c0_i32 = arith.constant 0 : i32
    %c0_i32_0 = arith.constant 0 : i32
    return %arg0, %c0_i32 : i32, i32
  }
  func.func @transform_1(%arg0: i32) -> (i32, i32) {
    %c0_i32 = arith.constant 0 : i32
    %c0_i32_0 = arith.constant 0 : i32
    %c0_i32_1 = arith.constant 0 : i32
    return %c0_i32, %c0_i32_0 : i32, i32
  }
  func.func @transform_2(%arg0: i32) -> (i32, i32) {
    %c0_i32 = arith.constant 0 : i32
    %c0_i32_0 = arith.constant 0 : i32
    %c0_i32_1 = arith.constant 0 : i32
    return %c0_i32, %c0_i32_0 : i32, i32
  }
  func.func @transform_3(%arg0: i32) -> (i32, i32) {
    %c0_i32 = arith.constant 0 : i32
    %c0_i32_0 = arith.constant 0 : i32
    %c0_i32_1 = arith.constant 0 : i32
    return %c0_i32, %c0_i32_0 : i32, i32
  }
  func.func @transform_4(%arg0: i32) -> (i32, i32) {
    %c0_i32 = arith.constant 0 : i32
    %c0_i32_0 = arith.constant 0 : i32
    %c0_i32_1 = arith.constant 0 : i32
    return %c0_i32, %c0_i32_0 : i32, i32
  }
  func.func @transform_5(%arg0: i32) -> (i32, i32) {
    %c0_i32 = arith.constant 0 : i32
    %c0_i32_0 = arith.constant 0 : i32
    %c0_i32_1 = arith.constant 0 : i32
    return %c0_i32, %c0_i32_0 : i32, i32
  }
  func.func @transform_6(%arg0: i32) -> (i32, i32) {
    %c0_i32 = arith.constant 0 : i32
    %c0_i32_0 = arith.constant 0 : i32
    %c0_i32_1 = arith.constant 0 : i32
    return %c0_i32, %c0_i32_0 : i32, i32
  }
  func.func @transform_7(%arg0: i32) -> (i32, i32) {
    %c0_i32 = arith.constant 0 : i32
    %c0_i32_0 = arith.constant 0 : i32
    %c0_i32_1 = arith.constant 0 : i32
    return %c0_i32, %c0_i32_0 : i32, i32
  }
  func.func @transform_8(%arg0: i32) -> (i32, i32) {
    %c0_i32 = arith.constant 0 : i32
    %c0_i32_0 = arith.constant 0 : i32
    %c0_i32_1 = arith.constant 0 : i32
    return %c0_i32, %c0_i32_0 : i32, i32
  }
  func.func @transform_9(%arg0: i32) -> (i32, i32) {
    %c0_i32 = arith.constant 0 : i32
    %c0_i32_0 = arith.constant 0 : i32
    %c0_i32_1 = arith.constant 0 : i32
    return %c0_i32, %c0_i32_0 : i32, i32
  }
  func.func @transform_10(%arg0: i32) -> (i32, i32, i32) {
    %c0_i32 = arith.constant 0 : i32
    %c0_i32_0 = arith.constant 0 : i32
    %c0_i32_1 = arith.constant 0 : i32
    %c0_i32_2 = arith.constant 0 : i32
    return %c0_i32, %c0_i32_0, %c0_i32_1 : i32, i32, i32
  }
  func.func @transform_11(%arg0: i32) -> (i32, i32) {
    %c0_i32 = arith.constant 0 : i32
    %c0_i32_0 = arith.constant 0 : i32
    %c0_i32_1 = arith.constant 0 : i32
    return %c0_i32, %c0_i32_0 : i32, i32
  }
  func.func @transform_12(%arg0: i32) -> (i32, i32, i32) {
    %c0_i32 = arith.constant 0 : i32
    %c0_i32_0 = arith.constant 0 : i32
    %c0_i32_1 = arith.constant 0 : i32
    %c0_i32_2 = arith.constant 0 : i32
    return %c0_i32, %c0_i32_0, %c0_i32_1 : i32, i32, i32
  }
  func.func @transform_13(%arg0: i32) -> (i32, i32) {
    %c0_i32 = arith.constant 0 : i32
    %c0_i32_0 = arith.constant 0 : i32
    %c0_i32_1 = arith.constant 0 : i32
    return %c0_i32, %c0_i32_0 : i32, i32
  }
  func.func @transform_14(%arg0: i32) -> (i32, i32) {
    %c0_i32 = arith.constant 0 : i32
    %c0_i32_0 = arith.constant 0 : i32
    return %arg0, %c0_i32 : i32, i32
  }
  func.func @transform_15(%arg0: i32) -> (i32, i32) {
    %c0_i32 = arith.constant 0 : i32
    %c0_i32_0 = arith.constant 0 : i32
    return %arg0, %c0_i32 : i32, i32
  }
  func.func @transform_16(%arg0: i32) -> (i32, i32) {
    %c0_i32 = arith.constant 0 : i32
    %c0_i32_0 = arith.constant 0 : i32
    return %arg0, %c0_i32 : i32, i32
  }
  func.func @transform_17(%arg0: i32) -> (i32, i32) {
    %c0_i32 = arith.constant 0 : i32
    %c0_i32_0 = arith.constant 0 : i32
    return %arg0, %c0_i32 : i32, i32
  }
}

</mosaic_0001>

<llo_original>
// kernel: unreal_forward.1
$region0: #{unreal_forward.1}
  #allocation0 [shape = 'u32[]', space=smem, size = 0x4, offset = 0x4, fixed_abs, tag = 'smem constant byte address 0x4 - core index']
  #allocation1 [shape = 'u32[72,128]{1,0:T(1,128)}', space=vmem, size = 0x9000, scoped, tag = 'internal scratch']
  %s0 = inlined_call_operand.vmem [shape: f32[8,1024], index: 0, kind: input, shape index: {}]
  %s1 = inlined_call_operand.vmem [shape: bf16[1024,128], index: 1, kind: input, shape index: {}]
  %s2 = inlined_call_operand.vmem [shape: f32[1,128], index: 2, kind: input, shape index: {}]
  %s3 = inlined_call_operand.vmem [shape: f32[128,128], index: 3, kind: input, shape index: {}]
  %s4 = inlined_call_operand.vmem [shape: f32[1,128], index: 4, kind: input, shape index: {}]
  %s5 = inlined_call_operand.hbm [shape: f32[128,128], index: 5, kind: input, shape index: {}]
  %s6 = inlined_call_operand.vmem [shape: f32[1,128], index: 6, kind: input, shape index: {}]
  %s7 = inlined_call_operand.hbm [shape: f32[128,128], index: 7, kind: input, shape index: {}]
  %s8 = inlined_call_operand.vmem [shape: bf16[128,2048], index: 8, kind: input, shape index: {}]
  %s9 = inlined_call_operand.vmem [shape: f32[1,2048], index: 9, kind: input, shape index: {}]
  %s10 = inlined_call_operand.vmem [shape: bf16[3,256,320], index: 10, kind: input, shape index: {}]
  %s11 = inlined_call_operand.vmem [shape: f32[1,320], index: 11, kind: input, shape index: {}]
  %s12 = inlined_call_operand.vmem [shape: bf16[3,320,128], index: 12, kind: input, shape index: {}]
  %s13 = inlined_call_operand.vmem [shape: f32[1,128], index: 13, kind: input, shape index: {}]
  %s14 = inlined_call_operand.vmem [shape: f32[8,128], index: 14, kind: output, shape index: {0}]
  %s15 = inlined_call_operand.vmem [shape: f32[8,128], index: 15, kind: output, shape index: {1}]
  %s16 = inlined_call_operand.vmem [shape: f32[88,128], index: 16, kind: output, shape index: {2}]
  %s17 = inlined_call_operand.vmem [shape: f32[80,128], index: 17, kind: output, shape index: {3}]
  %18 = xla_tuple %s14, %s15, %s16, %s17
  %s19 = sld [smem:[#allocation0]]
  $region98: #{unreal_forward.1} parent=0
    _
  %s21 = ssub.s32 1, %s19
  %s22 = scalar_select 0, %s21, %s19
  $region1: #{unreal_forward.1} parent=0
    #allocation2 [shape = 'u8[65536]{0}', space=vmem, size = 0x10000, scoped, tag = 'input window, operand 5, single buffered']
    #allocation3 [shape = 's32[1]{0}', space=sflag, size = 0x4, scoped, tag = 'scoped memory for unreal_forward.1']
    #allocation4 [shape = 'u8[65536]{0}', space=vmem, size = 0x10000, scoped, tag = 'input window, operand 7, single buffered']
    #allocation5 [shape = 's32[1]{0}', space=sflag, size = 0x4, scoped, tag = 'scoped memory for unreal_forward.1']
    %23 = vsyncpa [#allocation3], 0
    %24 = vsyncpa [#allocation5], 0
    // Predicated region
    $region2: #{unreal_forward.1} parent=1 // pred_check
      _
    $region3: #{unreal_forward.1} parent=1 // pred_check_branch
      %26 = sbr.rel (0) target = $region5
    $region4: #{unreal_forward.1} parent=1 // pred_region
      _
    $region5: #{unreal_forward.1} parent=1 // pred_fallthru
      _
    // Predicated region
    $region6: #{unreal_forward.1} parent=1 // pred_check
      _
    $region7: #{unreal_forward.1} parent=1 // pred_check_branch
      %28 = sbr.rel (0) target = $region9
    $region8: #{unreal_forward.1} parent=1 // pred_region
      _
    $region9: #{unreal_forward.1} parent=1 // pred_fallthru
      _
    // Predicated region
    $region10: #{unreal_forward.1} parent=1 // pred_check
      _
    $region11: #{unreal_forward.1} parent=1 // pred_check_branch
      %30 = sbr.rel (0) target = $region13
    $region12: #{unreal_forward.1} parent=1 // pred_region
      _
    $region13: #{unreal_forward.1} parent=1 // pred_fallthru
      _
    // Predicated region
    $region14: #{unreal_forward.1} parent=1 // pred_check
      _
    $region15: #{unreal_forward.1} parent=1 // pred_check_branch
      %32 = sbr.rel (0) target = $region17
    $region16: #{unreal_forward.1} parent=1 // pred_region
      _
    $region17: #{unreal_forward.1} parent=1 // pred_fallthru
      _
    // Predicated region
    $region18: #{unreal_forward.1} parent=1 // pred_check
      _
    $region19: #{unreal_forward.1} parent=1 // pred_check_branch
      %34 = sbr.rel (0) target = $region21
    $region20: #{unreal_forward.1} parent=1 // pred_region
      _
    $region21: #{unreal_forward.1} parent=1 // pred_fallthru
      _
    // Predicated region
    $region22: #{unreal_forward.1} parent=1 // pred_check
      _
    $region23: #{unreal_forward.1} parent=1 // pred_check_branch
      %36 = sbr.rel (0) target = $region25
    $region24: #{unreal_forward.1} parent=1 // pred_region
      %38 = vsyncadd [#allocation3], 0
      %s39 = sshll.u32 %s5, 4
      %s40 = int_to_ptr.hbm [resolvable:$true] %s39
      %s41 = sshll.u32 [#allocation2], 4
      %s42 = int_to_ptr.vmem [resolvable:$true] %s41
      %47 = dma.hbm_to_vmem [thread:$0]  %s40, 2048, %s42, [#allocation3], 128, 128, 8
    $region25: #{unreal_forward.1} parent=1 // pred_fallthru
      _
    // Predicated region
    $region26: #{unreal_forward.1} parent=1 // pred_check
      _
    $region27: #{unreal_forward.1} parent=1 // pred_check_branch
      %49 = sbr.rel (0) target = $region29
    $region28: #{unreal_forward.1} parent=1 // pred_region
      _
    $region29: #{unreal_forward.1} parent=1 // pred_fallthru
      _
    // Predicated region
    $region30: #{unreal_forward.1} parent=1 // pred_check
      _
    $region31: #{unreal_forward.1} parent=1 // pred_check_branch
      %51 = sbr.rel (0) target = $region33
    $region32: #{unreal_forward.1} parent=1 // pred_region
      %53 = vsyncadd [#allocation5], 0
      %s54 = sshll.u32 %s7, 4
      %s55 = int_to_ptr.hbm [resolvable:$true] %s54
      %s56 = sshll.u32 [#allocation4], 4
      %s57 = int_to_ptr.vmem [resolvable:$true] %s56
      %62 = dma.hbm_to_vmem [thread:$0]  %s55, 2048, %s57, [#allocation5], 128, 128, 8
    $region33: #{unreal_forward.1} parent=1 // pred_fallthru
      _
    // Predicated region
    $region34: #{unreal_forward.1} parent=1 // pred_check
      _
    $region35: #{unreal_forward.1} parent=1 // pred_check_branch
      %64 = sbr.rel (0) target = $region37
    $region36: #{unreal_forward.1} parent=1 // pred_region
      _
    $region37: #{unreal_forward.1} parent=1 // pred_fallthru
      _
    // Predicated region
    $region38: #{unreal_forward.1} parent=1 // pred_check
      _
    $region39: #{unreal_forward.1} parent=1 // pred_check_branch
      %66 = sbr.rel (0) target = $region41
    $region40: #{unreal_forward.1} parent=1 // pred_region
      _
    $region41: #{unreal_forward.1} parent=1 // pred_fallthru
      _
    // Predicated region
    $region42: #{unreal_forward.1} parent=1 // pred_check
      _
    $region43: #{unreal_forward.1} parent=1 // pred_check_branch
      %68 = sbr.rel (0) target = $region45
    $region44: #{unreal_forward.1} parent=1 // pred_region
      _
    $region45: #{unreal_forward.1} parent=1 // pred_fallthru
      _
    // Predicated region
    $region46: #{unreal_forward.1} parent=1 // pred_check
      _
    $region47: #{unreal_forward.1} parent=1 // pred_check_branch
      %70 = sbr.rel (0) target = $region49
    $region48: #{unreal_forward.1} parent=1 // pred_region
      _
    $region49: #{unreal_forward.1} parent=1 // pred_fallthru
      _
    // Predicated region
    $region50: #{unreal_forward.1} parent=1 // pred_check
      _
    $region51: #{unreal_forward.1} parent=1 // pred_check_branch
      %72 = sbr.rel (0) target = $region53
    $region52: #{unreal_forward.1} parent=1 // pred_region
      _
    $region53: #{unreal_forward.1} parent=1 // pred_fallthru
      _
    // Predicated region
    $region54: #{unreal_forward.1} parent=1 // pred_check
      _
    $region55: #{unreal_forward.1} parent=1 // pred_check_branch
      %74 = sbr.rel (0) target = $region57
    $region56: #{unreal_forward.1} parent=1 // pred_region
      _
    $region57: #{unreal_forward.1} parent=1 // pred_fallthru
      _
    // Predicated region
    $region58: #{unreal_forward.1} parent=1 // pred_check
      _
    $region59: #{unreal_forward.1} parent=1 // pred_check_branch
      %76 = sbr.rel (0) target = $region61
    $region60: #{unreal_forward.1} parent=1 // pred_region
      %78 = dma.done [#allocation3], 2048
    $region61: #{unreal_forward.1} parent=1 // pred_fallthru
      _
    // Predicated region
    $region62: #{unreal_forward.1} parent=1 // pred_check
      _
    $region63: #{unreal_forward.1} parent=1 // pred_check_branch
      %80 = sbr.rel (0) target = $region65
    $region64: #{unreal_forward.1} parent=1 // pred_region
      %82 = dma.done [#allocation5], 2048
    $region65: #{unreal_forward.1} parent=1 // pred_fallthru
      _
    %v84 = vld [vmem:[%s0] sm:$0xff]
    %v85 = vld [vmem:[%s0 + $0x8] sm:$0xff]
    %v86 = vld [vmem:[%s0 + $0x10] sm:$0xff]
    %v87 = vld [vmem:[%s0 + $0x18] sm:$0xff]
    %v88 = vld [vmem:[%s0 + $0x20] sm:$0xff]
    %v89 = vld [vmem:[%s0 + $0x28] sm:$0xff]
    %v90 = vld [vmem:[%s0 + $0x30] sm:$0xff]
    %v91 = vld [vmem:[%s0 + $0x38] sm:$0xff]
    %v92 = vpack.c.bf16 %v84, %v84
    %v93 = vpack.c.bf16 %v85, %v85
    %v94 = vpack.c.bf16 %v86, %v86
    %v95 = vpack.c.bf16 %v87, %v87
    %v96 = vpack.c.bf16 %v88, %v88
    %v97 = vpack.c.bf16 %v89, %v89
    %v98 = vpack.c.bf16 %v90, %v90
    %v99 = vpack.c.bf16 %v91, %v91
    %v100 = vld [vmem:[%s1] sm:$0xf]
    %v101 = vld [vmem:[%s1 + $0x4] sm:$0xf]
    %v102 = vld [vmem:[%s1 + $0x8] sm:$0xf]
    %v103 = vld [vmem:[%s1 + $0xc] sm:$0xf]
    %v104 = vld [vmem:[%s1 + $0x10] sm:$0xf]
    %v105 = vld [vmem:[%s1 + $0x14] sm:$0xf]
    %v106 = vld [vmem:[%s1 + $0x18] sm:$0xf]
    %v107 = vld [vmem:[%s1 + $0x1c] sm:$0xf]
    %v108 = vld [vmem:[%s1 + $0x20] sm:$0xf]
    %v109 = vld [vmem:[%s1 + $0x24] sm:$0xf]
    %v110 = vld [vmem:[%s1 + $0x28] sm:$0xf]
    %v111 = vld [vmem:[%s1 + $0x2c] sm:$0xf]
    %v112 = vld [vmem:[%s1 + $0x30] sm:$0xf]
    %v113 = vld [vmem:[%s1 + $0x34] sm:$0xf]
    %v114 = vld [vmem:[%s1 + $0x38] sm:$0xf]
    %v115 = vld [vmem:[%s1 + $0x3c] sm:$0xf]
    %v116 = vld [vmem:[%s1 + $0x40] sm:$0xf]
    %v117 = vld [vmem:[%s1 + $0x44] sm:$0xf]
    %v118 = vld [vmem:[%s1 + $0x48] sm:$0xf]
    %v119 = vld [vmem:[%s1 + $0x4c] sm:$0xf]
    %v120 = vld [vmem:[%s1 + $0x50] sm:$0xf]
    %v121 = vld [vmem:[%s1 + $0x54] sm:$0xf]
    %v122 = vld [vmem:[%s1 + $0x58] sm:$0xf]
    %v123 = vld [vmem:[%s1 + $0x5c] sm:$0xf]
    %v124 = vld [vmem:[%s1 + $0x60] sm:$0xf]
    %v125 = vld [vmem:[%s1 + $0x64] sm:$0xf]
    %v126 = vld [vmem:[%s1 + $0x68] sm:$0xf]
    %v127 = vld [vmem:[%s1 + $0x6c] sm:$0xf]
    %v128 = vld [vmem:[%s1 + $0x70] sm:$0xf]
    %v129 = vld [vmem:[%s1 + $0x74] sm:$0xf]
    %v130 = vld [vmem:[%s1 + $0x78] sm:$0xf]
    %v131 = vld [vmem:[%s1 + $0x7c] sm:$0xf]
    %v132 = vld [vmem:[%s1 + $0x80] sm:$0xf]
    %v133 = vld [vmem:[%s1 + $0x84] sm:$0xf]
    %v134 = vld [vmem:[%s1 + $0x88] sm:$0xf]
    %v135 = vld [vmem:[%s1 + $0x8c] sm:$0xf]
    %v136 = vld [vmem:[%s1 + $0x90] sm:$0xf]
    %v137 = vld [vmem:[%s1 + $0x94] sm:$0xf]
    %v138 = vld [vmem:[%s1 + $0x98] sm:$0xf]
    %v139 = vld [vmem:[%s1 + $0x9c] sm:$0xf]
    %v140 = vld [vmem:[%s1 + $0xa0] sm:$0xf]
    %v141 = vld [vmem:[%s1 + $0xa4] sm:$0xf]
    %v142 = vld [vmem:[%s1 + $0xa8] sm:$0xf]
    %v143 = vld [vmem:[%s1 + $0xac] sm:$0xf]
    %v144 = vld [vmem:[%s1 + $0xb0] sm:$0xf]
    %v145 = vld [vmem:[%s1 + $0xb4] sm:$0xf]
    %v146 = vld [vmem:[%s1 + $0xb8] sm:$0xf]
    %v147 = vld [vmem:[%s1 + $0xbc] sm:$0xf]
    %v148 = vld [vmem:[%s1 + $0xc0] sm:$0xf]
    %v149 = vld [vmem:[%s1 + $0xc4] sm:$0xf]
    %v150 = vld [vmem:[%s1 + $0xc8] sm:$0xf]
    %v151 = vld [vmem:[%s1 + $0xcc] sm:$0xf]
    %v152 = vld [vmem:[%s1 + $0xd0] sm:$0xf]
    %v153 = vld [vmem:[%s1 + $0xd4] sm:$0xf]
    %v154 = vld [vmem:[%s1 + $0xd8] sm:$0xf]
    %v155 = vld [vmem:[%s1 + $0xdc] sm:$0xf]
    %v156 = vld [vmem:[%s1 + $0xe0] sm:$0xf]
    %v157 = vld [vmem:[%s1 + $0xe4] sm:$0xf]
    %v158 = vld [vmem:[%s1 + $0xe8] sm:$0xf]
    %v159 = vld [vmem:[%s1 + $0xec] sm:$0xf]
    %v160 = vld [vmem:[%s1 + $0xf0] sm:$0xf]
    %v161 = vld [vmem:[%s1 + $0xf4] sm:$0xf]
    %v162 = vld [vmem:[%s1 + $0xf8] sm:$0xf]
    %v163 = vld [vmem:[%s1 + $0xfc] sm:$0xf]
    %v164 = vld [vmem:[%s1 + $0x100] sm:$0xf]
    %v165 = vld [vmem:[%s1 + $0x104] sm:$0xf]
    %v166 = vld [vmem:[%s1 + $0x108] sm:$0xf]
    %v167 = vld [vmem:[%s1 + $0x10c] sm:$0xf]
    %v168 = vld [vmem:[%s1 + $0x110] sm:$0xf]
    %v169 = vld [vmem:[%s1 + $0x114] sm:$0xf]
    %v170 = vld [vmem:[%s1 + $0x118] sm:$0xf]
    %v171 = vld [vmem:[%s1 + $0x11c] sm:$0xf]
    %v172 = vld [vmem:[%s1 + $0x120] sm:$0xf]
    %v173 = vld [vmem:[%s1 + $0x124] sm:$0xf]
    %v174 = vld [vmem:[%s1 + $0x128] sm:$0xf]
    %v175 = vld [vmem:[%s1 + $0x12c] sm:$0xf]
    %v176 = vld [vmem:[%s1 + $0x130] sm:$0xf]
    %v177 = vld [vmem:[%s1 + $0x134] sm:$0xf]
    %v178 = vld [vmem:[%s1 + $0x138] sm:$0xf]
    %v179 = vld [vmem:[%s1 + $0x13c] sm:$0xf]
    %v180 = vld [vmem:[%s1 + $0x140] sm:$0xf]
    %v181 = vld [vmem:[%s1 + $0x144] sm:$0xf]
    %v182 = vld [vmem:[%s1 + $0x148] sm:$0xf]
    %v183 = vld [vmem:[%s1 + $0x14c] sm:$0xf]
    %v184 = vld [vmem:[%s1 + $0x150] sm:$0xf]
    %v185 = vld [vmem:[%s1 + $0x154] sm:$0xf]
    %v186 = vld [vmem:[%s1 + $0x158] sm:$0xf]
    %v187 = vld [vmem:[%s1 + $0x15c] sm:$0xf]
    %v188 = vld [vmem:[%s1 + $0x160] sm:$0xf]
    %v189 = vld [vmem:[%s1 + $0x164] sm:$0xf]
    %v190 = vld [vmem:[%s1 + $0x168] sm:$0xf]
    %v191 = vld [vmem:[%s1 + $0x16c] sm:$0xf]
    %v192 = vld [vmem:[%s1 + $0x170] sm:$0xf]
    %v193 = vld [vmem:[%s1 + $0x174] sm:$0xf]
    %v194 = vld [vmem:[%s1 + $0x178] sm:$0xf]
    %v195 = vld [vmem:[%s1 + $0x17c] sm:$0xf]
    %v196 = vld [vmem:[%s1 + $0x180] sm:$0xf]
    %v197 = vld [vmem:[%s1 + $0x184] sm:$0xf]
    %v198 = vld [vmem:[%s1 + $0x188] sm:$0xf]
    %v199 = vld [vmem:[%s1 + $0x18c] sm:$0xf]
    %v200 = vld [vmem:[%s1 + $0x190] sm:$0xf]
    %v201 = vld [vmem:[%s1 + $0x194] sm:$0xf]
    %v202 = vld [vmem:[%s1 + $0x198] sm:$0xf]
    %v203 = vld [vmem:[%s1 + $0x19c] sm:$0xf]
    %v204 = vld [vmem:[%s1 + $0x1a0] sm:$0xf]
    %v205 = vld [vmem:[%s1 + $0x1a4] sm:$0xf]
    %v206 = vld [vmem:[%s1 + $0x1a8] sm:$0xf]
    %v207 = vld [vmem:[%s1 + $0x1ac] sm:$0xf]
    %v208 = vld [vmem:[%s1 + $0x1b0] sm:$0xf]
    %v209 = vld [vmem:[%s1 + $0x1b4] sm:$0xf]
    %v210 = vld [vmem:[%s1 + $0x1b8] sm:$0xf]
    %v211 = vld [vmem:[%s1 + $0x1bc] sm:$0xf]
    %v212 = vld [vmem:[%s1 + $0x1c0] sm:$0xf]
    %v213 = vld [vmem:[%s1 + $0x1c4] sm:$0xf]
    %v214 = vld [vmem:[%s1 + $0x1c8] sm:$0xf]
    %v215 = vld [vmem:[%s1 + $0x1cc] sm:$0xf]
    %v216 = vld [vmem:[%s1 + $0x1d0] sm:$0xf]
    %v217 = vld [vmem:[%s1 + $0x1d4] sm:$0xf]
    %v218 = vld [vmem:[%s1 + $0x1d8] sm:$0xf]
    %v219 = vld [vmem:[%s1 + $0x1dc] sm:$0xf]
    %v220 = vld [vmem:[%s1 + $0x1e0] sm:$0xf]
    %v221 = vld [vmem:[%s1 + $0x1e4] sm:$0xf]
    %v222 = vld [vmem:[%s1 + $0x1e8] sm:$0xf]
    %v223 = vld [vmem:[%s1 + $0x1ec] sm:$0xf]
    %v224 = vld [vmem:[%s1 + $0x1f0] sm:$0xf]
    %v225 = vld [vmem:[%s1 + $0x1f4] sm:$0xf]
    %v226 = vld [vmem:[%s1 + $0x1f8] sm:$0xf]
    %v227 = vld [vmem:[%s1 + $0x1fc] sm:$0xf]
    %v228 = vld [vmem:[%s2] sm:$0x1]
    %v230 = vperm.slane %v228, 0
    %v360 = vunpack.c.l.b16 %v100
    %v361 = vunpack.c.l.b16 %v101
    %v362 = vunpack.c.l.b16 %v102
    %v363 = vunpack.c.l.b16 %v103
    %v364 = vunpack.c.l.b16 %v104
    %v365 = vunpack.c.l.b16 %v105
    %v366 = vunpack.c.l.b16 %v106
    %v367 = vunpack.c.l.b16 %v107
    %v368 = vunpack.c.l.b16 %v108
    %v369 = vunpack.c.l.b16 %v109
    %v370 = vunpack.c.l.b16 %v110
    %v371 = vunpack.c.l.b16 %v111
    %v372 = vunpack.c.l.b16 %v112
    %v373 = vunpack.c.l.b16 %v113
    %v374 = vunpack.c.l.b16 %v114
    %v375 = vunpack.c.l.b16 %v115
    %v376 = vunpack.c.l.b16 %v116
    %v377 = vunpack.c.l.b16 %v117
    %v378 = vunpack.c.l.b16 %v118
    %v379 = vunpack.c.l.b16 %v119
    %v380 = vunpack.c.l.b16 %v120
    %v381 = vunpack.c.l.b16 %v121
    %v382 = vunpack.c.l.b16 %v122
    %v383 = vunpack.c.l.b16 %v123
    %v384 = vunpack.c.l.b16 %v124
    %v385 = vunpack.c.l.b16 %v125
    %v386 = vunpack.c.l.b16 %v126
    %v387 = vunpack.c.l.b16 %v127
    %v388 = vunpack.c.l.b16 %v128
    %v389 = vunpack.c.l.b16 %v129
    %v390 = vunpack.c.l.b16 %v130
    %v391 = vunpack.c.l.b16 %v131
    %v392 = vunpack.c.l.b16 %v132
    %v393 = vunpack.c.l.b16 %v133
    %v394 = vunpack.c.l.b16 %v134
    %v395 = vunpack.c.l.b16 %v135
    %v396 = vunpack.c.l.b16 %v136
    %v397 = vunpack.c.l.b16 %v137
    %v398 = vunpack.c.l.b16 %v138
    %v399 = vunpack.c.l.b16 %v139
    %v400 = vunpack.c.l.b16 %v140
    %v401 = vunpack.c.l.b16 %v141
    %v402 = vunpack.c.l.b16 %v142
    %v403 = vunpack.c.l.b16 %v143
    %v404 = vunpack.c.l.b16 %v144
    %v405 = vunpack.c.l.b16 %v145
    %v406 = vunpack.c.l.b16 %v146
    %v407 = vunpack.c.l.b16 %v147
    %v408 = vunpack.c.l.b16 %v148
    %v409 = vunpack.c.l.b16 %v149
    %v410 = vunpack.c.l.b16 %v150
    %v411 = vunpack.c.l.b16 %v151
    %v412 = vunpack.c.l.b16 %v152
    %v413 = vunpack.c.l.b16 %v153
    %v414 = vunpack.c.l.b16 %v154
    %v415 = vunpack.c.l.b16 %v155
    %v416 = vunpack.c.l.b16 %v156
    %v417 = vunpack.c.l.b16 %v157
    %v418 = vunpack.c.l.b16 %v158
    %v419 = vunpack.c.l.b16 %v159
    %v420 = vunpack.c.l.b16 %v160
    %v421 = vunpack.c.l.b16 %v161
    %v422 = vunpack.c.l.b16 %v162
    %v423 = vunpack.c.l.b16 %v163
    %v424 = vunpack.c.l.b16 %v164
    %v425 = vunpack.c.l.b16 %v165
    %v426 = vunpack.c.l.b16 %v166
    %v427 = vunpack.c.l.b16 %v167
    %v428 = vunpack.c.l.b16 %v168
    %v429 = vunpack.c.l.b16 %v169
    %v430 = vunpack.c.l.b16 %v170
    %v431 = vunpack.c.l.b16 %v171
    %v432 = vunpack.c.l.b16 %v172
    %v433 = vunpack.c.l.b16 %v173
    %v434 = vunpack.c.l.b16 %v174
    %v435 = vunpack.c.l.b16 %v175
    %v436 = vunpack.c.l.b16 %v176
    %v437 = vunpack.c.l.b16 %v177
    %v438 = vunpack.c.l.b16 %v178
    %v439 = vunpack.c.l.b16 %v179
    %v440 = vunpack.c.l.b16 %v180
    %v441 = vunpack.c.l.b16 %v181
    %v442 = vunpack.c.l.b16 %v182
    %v443 = vunpack.c.l.b16 %v183
    %v444 = vunpack.c.l.b16 %v184
    %v445 = vunpack.c.l.b16 %v185
    %v446 = vunpack.c.l.b16 %v186
    %v447 = vunpack.c.l.b16 %v187
    %v448 = vunpack.c.l.b16 %v188
    %v449 = vunpack.c.l.b16 %v189
    %v450 = vunpack.c.l.b16 %v190
    %v451 = vunpack.c.l.b16 %v191
    %v452 = vunpack.c.l.b16 %v192
    %v453 = vunpack.c.l.b16 %v193
    %v454 = vunpack.c.l.b16 %v194
    %v455 = vunpack.c.l.b16 %v195
    %v456 = vunpack.c.l.b16 %v196
    %v457 = vunpack.c.l.b16 %v197
    %v458 = vunpack.c.l.b16 %v198
    %v459 = vunpack.c.l.b16 %v199
    %v460 = vunpack.c.l.b16 %v200
    %v461 = vunpack.c.l.b16 %v201
    %v462 = vunpack.c.l.b16 %v202
    %v463 = vunpack.c.l.b16 %v203
    %v464 = vunpack.c.l.b16 %v204
    %v465 = vunpack.c.l.b16 %v205
    %v466 = vunpack.c.l.b16 %v206
    %v467 = vunpack.c.l.b16 %v207
    %v468 = vunpack.c.l.b16 %v208
    %v469 = vunpack.c.l.b16 %v209
    %v470 = vunpack.c.l.b16 %v210
    %v471 = vunpack.c.l.b16 %v211
    %v472 = vunpack.c.l.b16 %v212
    %v473 = vunpack.c.l.b16 %v213
    %v474 = vunpack.c.l.b16 %v214
    %v475 = vunpack.c.l.b16 %v215
    %v476 = vunpack.c.l.b16 %v216
    %v477 = vunpack.c.l.b16 %v217
    %v478 = vunpack.c.l.b16 %v218
    %v479 = vunpack.c.l.b16 %v219
    %v480 = vunpack.c.l.b16 %v220
    %v481 = vunpack.c.l.b16 %v221
    %v482 = vunpack.c.l.b16 %v222
    %v483 = vunpack.c.l.b16 %v223
    %v484 = vunpack.c.l.b16 %v224
    %v485 = vunpack.c.l.b16 %v225
    %v486 = vunpack.c.l.b16 %v226
    %v487 = vunpack.c.l.b16 %v227
    %v488 = vpack.c.b16 %v361, %v360
    %v489 = vpack.c.b16 %v363, %v362
    %v490 = vpack.c.b16 %v365, %v364
    %v491 = vpack.c.b16 %v367, %v366
    %v492 = vpack.c.b16 %v369, %v368
    %v493 = vpack.c.b16 %v371, %v370
    %v494 = vpack.c.b16 %v373, %v372
    %v495 = vpack.c.b16 %v375, %v374
    %v496 = vpack.c.b16 %v377, %v376
    %v497 = vpack.c.b16 %v379, %v378
    %v498 = vpack.c.b16 %v381, %v380
    %v499 = vpack.c.b16 %v383, %v382
    %v500 = vpack.c.b16 %v385, %v384
    %v501 = vpack.c.b16 %v387, %v386
    %v502 = vpack.c.b16 %v389, %v388
    %v503 = vpack.c.b16 %v391, %v390
    %v504 = vpack.c.b16 %v393, %v392
    %v505 = vpack.c.b16 %v395, %v394
    %v506 = vpack.c.b16 %v397, %v396
    %v507 = vpack.c.b16 %v399, %v398
    %v508 = vpack.c.b16 %v401, %v400
    %v509 = vpack.c.b16 %v403, %v402
    %v510 = vpack.c.b16 %v405, %v404
    %v511 = vpack.c.b16 %v407, %v406
    %v512 = vpack.c.b16 %v409, %v408
    %v513 = vpack.c.b16 %v411, %v410
    %v514 = vpack.c.b16 %v413, %v412
    %v515 = vpack.c.b16 %v415, %v414
    %v516 = vpack.c.b16 %v417, %v416
    %v517 = vpack.c.b16 %v419, %v418
    %v518 = vpack.c.b16 %v421, %v420
    %v519 = vpack.c.b16 %v423, %v422
    %v520 = vpack.c.b16 %v425, %v424
    %v521 = vpack.c.b16 %v427, %v426
    %v522 = vpack.c.b16 %v429, %v428
    %v523 = vpack.c.b16 %v431, %v430
    %v524 = vpack.c.b16 %v433, %v432
    %v525 = vpack.c.b16 %v435, %v434
    %v526 = vpack.c.b16 %v437, %v436
    %v527 = vpack.c.b16 %v439, %v438
    %v528 = vpack.c.b16 %v441, %v440
    %v529 = vpack.c.b16 %v443, %v442
    %v530 = vpack.c.b16 %v445, %v444
    %v531 = vpack.c.b16 %v447, %v446
    %v532 = vpack.c.b16 %v449, %v448
    %v533 = vpack.c.b16 %v451, %v450
    %v534 = vpack.c.b16 %v453, %v452
    %v535 = vpack.c.b16 %v455, %v454
    %v536 = vpack.c.b16 %v457, %v456
    %v537 = vpack.c.b16 %v459, %v458
    %v538 = vpack.c.b16 %v461, %v460
    %v539 = vpack.c.b16 %v463, %v462
    %v540 = vpack.c.b16 %v465, %v464
    %v541 = vpack.c.b16 %v467, %v466
    %v542 = vpack.c.b16 %v469, %v468
    %v543 = vpack.c.b16 %v471, %v470
    %v544 = vpack.c.b16 %v473, %v472
    %v545 = vpack.c.b16 %v475, %v474
    %v546 = vpack.c.b16 %v477, %v476
    %v547 = vpack.c.b16 %v479, %v478
    %v548 = vpack.c.b16 %v481, %v480
    %v549 = vpack.c.b16 %v483, %v482
    %v550 = vpack.c.b16 %v485, %v484
    %v551 = vpack.c.b16 %v487, %v486
    %616 = vmatpush.bf16.msra.mxu0 %v495
    %617 = vmatpush.bf16.msra.mxu0 %v494
    %618 = vmatpush.bf16.msra.mxu0 %v493
    %619 = vmatpush.bf16.msra.mxu0 %v492
    %620 = vmatpush.bf16.msra.mxu0 %v491
    %621 = vmatpush.bf16.msra.mxu0 %v490
    %622 = vmatpush.bf16.msra.mxu0 %v489
    %623 = vmatpush.bf16.msra.mxu0 %v488
    %624 = vmatmul.bf16.gmra.mxu0 %v92
    %v625 = vpop.f32.mrf.mxu0
    %v626 = vadd.f32 %v230, %v625
    %v627 = vpop.f32.mrf.mxu0
    %628 = vdwg.mxu0
    %629 = vmatpush.bf16.msra.mxu0 %v503
    %630 = vmatpush.bf16.msra.mxu0 %v502
    %631 = vmatpush.bf16.msra.mxu0 %v501
    %632 = vmatpush.bf16.msra.mxu0 %v500
    %633 = vmatpush.bf16.msra.mxu0 %v499
    %634 = vmatpush.bf16.msra.mxu0 %v498
    %635 = vmatpush.bf16.msra.mxu0 %v497
    %636 = vmatpush.bf16.msra.mxu0 %v496
    %637 = vmatmul.bf16.gmra.mxu0 %v93
    %v638 = vpop.f32.mrf.mxu0
    %v639 = vadd.f32 %v626, %v638
    %v640 = vpop.f32.mrf.mxu0
    %641 = vdwg.mxu0
    %642 = vmatpush.bf16.msra.mxu0 %v511
    %643 = vmatpush.bf16.msra.mxu0 %v510
    %644 = vmatpush.bf16.msra.mxu0 %v509
    %645 = vmatpush.bf16.msra.mxu0 %v508
    %646 = vmatpush.bf16.msra.mxu0 %v507
    %647 = vmatpush.bf16.msra.mxu0 %v506
    %648 = vmatpush.bf16.msra.mxu0 %v505
    %649 = vmatpush.bf16.msra.mxu0 %v504
    %650 = vmatmul.bf16.gmra.mxu0 %v94
    %v651 = vpop.f32.mrf.mxu0
    %v652 = vadd.f32 %v639, %v651
    %v653 = vpop.f32.mrf.mxu0
    %654 = vdwg.mxu0
    %655 = vmatpush.bf16.msra.mxu0 %v519
    %656 = vmatpush.bf16.msra.mxu0 %v518
    %657 = vmatpush.bf16.msra.mxu0 %v517
    %658 = vmatpush.bf16.msra.mxu0 %v516
    %659 = vmatpush.bf16.msra.mxu0 %v515
    %660 = vmatpush.bf16.msra.mxu0 %v514
    %661 = vmatpush.bf16.msra.mxu0 %v513
    %662 = vmatpush.bf16.msra.mxu0 %v512
    %663 = vmatmul.bf16.gmra.mxu0 %v95
    %v664 = vpop.f32.mrf.mxu0
    %v665 = vadd.f32 %v652, %v664
    %v666 = vpop.f32.mrf.mxu0
    %667 = vdwg.mxu0
    %668 = vmatpush.bf16.msra.mxu0 %v527
    %669 = vmatpush.bf16.msra.mxu0 %v526
    %670 = vmatpush.bf16.msra.mxu0 %v525
    %671 = vmatpush.bf16.msra.mxu0 %v524
    %672 = vmatpush.bf16.msra.mxu0 %v523
    %673 = vmatpush.bf16.msra.mxu0 %v522
    %674 = vmatpush.bf16.msra.mxu0 %v521
    %675 = vmatpush.bf16.msra.mxu0 %v520
    %676 = vmatmul.bf16.gmra.mxu0 %v96
    %v677 = vpop.f32.mrf.mxu0
    %v678 = vadd.f32 %v665, %v677
    %v679 = vpop.f32.mrf.mxu0
    %680 = vdwg.mxu0
    %681 = vmatpush.bf16.msra.mxu0 %v535
    %682 = vmatpush.bf16.msra.mxu0 %v534
    %683 = vmatpush.bf16.msra.mxu0 %v533
    %684 = vmatpush.bf16.msra.mxu0 %v532
    %685 = vmatpush.bf16.msra.mxu0 %v531
    %686 = vmatpush.bf16.msra.mxu0 %v530
    %687 = vmatpush.bf16.msra.mxu0 %v529
    %688 = vmatpush.bf16.msra.mxu0 %v528
    %689 = vmatmul.bf16.gmra.mxu0 %v97
    %v690 = vpop.f32.mrf.mxu0
    %v691 = vadd.f32 %v678, %v690
    %v692 = vpop.f32.mrf.mxu0
    %693 = vdwg.mxu0
    %694 = vmatpush.bf16.msra.mxu0 %v543
    %695 = vmatpush.bf16.msra.mxu0 %v542
    %696 = vmatpush.bf16.msra.mxu0 %v541
    %697 = vmatpush.bf16.msra.mxu0 %v540
    %698 = vmatpush.bf16.msra.mxu0 %v539
    %699 = vmatpush.bf16.msra.mxu0 %v538
    %700 = vmatpush.bf16.msra.mxu0 %v537
    %701 = vmatpush.bf16.msra.mxu0 %v536
    %702 = vmatmul.bf16.gmra.mxu0 %v98
    %v703 = vpop.f32.mrf.mxu0
    %v704 = vadd.f32 %v691, %v703
    %v705 = vpop.f32.mrf.mxu0
    %706 = vdwg.mxu0
    %707 = vmatpush.bf16.msra.mxu0 %v551
    %708 = vmatpush.bf16.msra.mxu0 %v550
    %709 = vmatpush.bf16.msra.mxu0 %v549
    %710 = vmatpush.bf16.msra.mxu0 %v548
    %711 = vmatpush.bf16.msra.mxu0 %v547
    %712 = vmatpush.bf16.msra.mxu0 %v546
    %713 = vmatpush.bf16.msra.mxu0 %v545
    %714 = vmatpush.bf16.msra.mxu0 %v544
    %715 = vmatmul.bf16.gmra.mxu0 %v99
    %v716 = vpop.f32.mrf.mxu0
    %v717 = vadd.f32 %v704, %v716
    %v718 = vpop.f32.mrf.mxu0
    %719 = vdwg.mxu0
    %v720 = vmax.f32 %v717, 0.0
    %721 = vst [vmem:[%s15] sm:$0xff] %v720
    %v722 = vld [vmem:[#allocation2] sm:$0xff]
    %v723 = vld [vmem:[#allocation2 + $0x8] sm:$0xff]
    %v724 = vld [vmem:[#allocation2 + $0x10] sm:$0xff]
    %v725 = vld [vmem:[#allocation2 + $0x18] sm:$0xff]
    %v726 = vld [vmem:[#allocation2 + $0x20] sm:$0xff]
    %v727 = vld [vmem:[#allocation2 + $0x28] sm:$0xff]
    %v728 = vld [vmem:[#allocation2 + $0x30] sm:$0xff]
    %v729 = vld [vmem:[#allocation2 + $0x38] sm:$0xff]
    %v730 = vld [vmem:[#allocation2 + $0x40] sm:$0xff]
    %v731 = vld [vmem:[#allocation2 + $0x48] sm:$0xff]
    %v732 = vld [vmem:[#allocation2 + $0x50] sm:$0xff]
    %v733 = vld [vmem:[#allocation2 + $0x58] sm:$0xff]
    %v734 = vld [vmem:[#allocation2 + $0x60] sm:$0xff]
    %v735 = vld [vmem:[#allocation2 + $0x68] sm:$0xff]
    %v736 = vld [vmem:[#allocation2 + $0x70] sm:$0xff]
    %v737 = vld [vmem:[#allocation2 + $0x78] sm:$0xff]
    %v738 = vld [vmem:[%s6] sm:$0x1]
    %v740 = vperm.slane %v738, 0
    %742 = vmatpush.msra.mxu0 %v737
    %743 = vmatpush.msra.mxu0 %v736
    %744 = vmatpush.msra.mxu0 %v735
    %745 = vmatpush.msra.mxu0 %v734
    %746 = vmatpush.msra.mxu0 %v733
    %747 = vmatpush.msra.mxu0 %v732
    %748 = vmatpush.msra.mxu0 %v731
    %749 = vmatpush.msra.mxu0 %v730
    %750 = vmatpush.msra.mxu0 %v729
    %751 = vmatpush.msra.mxu0 %v728
    %752 = vmatpush.msra.mxu0 %v727
    %753 = vmatpush.msra.mxu0 %v726
    %754 = vmatpush.msra.mxu0 %v725
    %755 = vmatpush.msra.mxu0 %v724
    %756 = vmatpush.msra.mxu0 %v723
    %757 = vmatpush.msra.mxu0 %v722
    %758 = vmatmul.f32.gmra.mxu0 %v720
    %v759 = vpop.f32.mrf.mxu0
    %v760 = vadd.f32 %v740, %v759
    %761 = vdwg.mxu0
    %v762 = vmax.f32 %v760, 0.0
    %v763 = vld [vmem:[%s3] sm:$0xff]
    %v764 = vld [vmem:[%s3 + $0x8] sm:$0xff]
    %v765 = vld [vmem:[%s3 + $0x10] sm:$0xff]
    %v766 = vld [vmem:[%s3 + $0x18] sm:$0xff]
    %v767 = vld [vmem:[%s3 + $0x20] sm:$0xff]
    %v768 = vld [vmem:[%s3 + $0x28] sm:$0xff]
    %v769 = vld [vmem:[%s3 + $0x30] sm:$0xff]
    %v770 = vld [vmem:[%s3 + $0x38] sm:$0xff]
    %v771 = vld [vmem:[%s3 + $0x40] sm:$0xff]
    %v772 = vld [vmem:[%s3 + $0x48] sm:$0xff]
    %v773 = vld [vmem:[%s3 + $0x50] sm:$0xff]
    %v774 = vld [vmem:[%s3 + $0x58] sm:$0xff]
    %v775 = vld [vmem:[%s3 + $0x60] sm:$0xff]
    %v776 = vld [vmem:[%s3 + $0x68] sm:$0xff]
    %v777 = vld [vmem:[%s3 + $0x70] sm:$0xff]
    %v778 = vld [vmem:[%s3 + $0x78] sm:$0xff]
    %v779 = vld [vmem:[#allocation4] sm:$0xff]
    %v780 = vld [vmem:[#allocation4 + $0x8] sm:$0xff]
    %v781 = vld [vmem:[#allocation4 + $0x10] sm:$0xff]
    %v782 = vld [vmem:[#allocation4 + $0x18] sm:$0xff]
    %v783 = vld [vmem:[#allocation4 + $0x20] sm:$0xff]
    %v784 = vld [vmem:[#allocation4 + $0x28] sm:$0xff]
    %v785 = vld [vmem:[#allocation4 + $0x30] sm:$0xff]
    %v786 = vld [vmem:[#allocation4 + $0x38] sm:$0xff]
    %v787 = vld [vmem:[#allocation4 + $0x40] sm:$0xff]
    %v788 = vld [vmem:[#allocation4 + $0x48] sm:$0xff]
    %v789 = vld [vmem:[#allocation4 + $0x50] sm:$0xff]
    %v790 = vld [vmem:[#allocation4 + $0x58] sm:$0xff]
    %v791 = vld [vmem:[#allocation4 + $0x60] sm:$0xff]
    %v792 = vld [vmem:[#allocation4 + $0x68] sm:$0xff]
    %v793 = vld [vmem:[#allocation4 + $0x70] sm:$0xff]
    %v794 = vld [vmem:[#allocation4 + $0x78] sm:$0xff]
    %795 = vmatpush.msra.mxu0 %v794
    %796 = vmatpush.msra.mxu0 %v793
    %797 = vmatpush.msra.mxu0 %v792
    %798 = vmatpush.msra.mxu0 %v791
    %799 = vmatpush.msra.mxu0 %v790
    %800 = vmatpush.msra.mxu0 %v789
    %801 = vmatpush.msra.mxu0 %v788
    %802 = vmatpush.msra.mxu0 %v787
    %803 = vmatpush.msra.mxu0 %v786
    %804 = vmatpush.msra.mxu0 %v785
    %805 = vmatpush.msra.mxu0 %v784
    %806 = vmatpush.msra.mxu0 %v783
    %807 = vmatpush.msra.mxu0 %v782
    %808 = vmatpush.msra.mxu0 %v781
    %809 = vmatpush.msra.mxu0 %v780
    %810 = vmatpush.msra.mxu0 %v779
    %811 = vmatmul.f32.gmra.mxu0 %v762
    %v812 = vpop.f32.mrf.mxu0
    %v813 = vadd.f32 0.0, %v812
    %814 = vdwg.mxu0
    %815 = vmatpush.msra.mxu0 %v778
    %816 = vmatpush.msra.mxu0 %v777
    %817 = vmatpush.msra.mxu0 %v776
    %818 = vmatpush.msra.mxu0 %v775
    %819 = vmatpush.msra.mxu0 %v774
    %820 = vmatpush.msra.mxu0 %v773
    %821 = vmatpush.msra.mxu0 %v772
    %822 = vmatpush.msra.mxu0 %v771
    %823 = vmatpush.msra.mxu0 %v770
    %824 = vmatpush.msra.mxu0 %v769
    %825 = vmatpush.msra.mxu0 %v768
    %826 = vmatpush.msra.mxu0 %v767
    %827 = vmatpush.msra.mxu0 %v766
    %828 = vmatpush.msra.mxu0 %v765
    %829 = vmatpush.msra.mxu0 %v764
    %830 = vmatpush.msra.mxu0 %v763
    %831 = vmatmul.f32.gmra.mxu0 %v720
    %v832 = vpop.f32.mrf.mxu0
    %v833 = vadd.f32 %v813, %v832
    %834 = vdwg.mxu0
    %v835 = vld [vmem:[%s4] sm:$0x1]
    %v837 = vperm.slane %v835, 0
    %v839 = vadd.f32 %v833, %v837
    %v840 = vlaneseq
    %v841 = vand.u32 %v840, 127
    %vm842 = vcmp.lt.s32.totalorder %v841, 4
    %v843 = vsel %vm842, %v839, -1e+30
    %844 = vmax.xlane.f32.xlu0 %v843
    %v845 = vpop.xlane.xlu0 %844
    %v846 = vsub.f32 %v843, %v845
    %v847 = vmul.f32 %v846, 1.442695
    %v848 = vpow.pop %v847
    %849 = vadd.xlane.f32.xlu0 %v848
    %v850 = vpop.xlane.xlu0 %849
    %v851 = vrcp.pop %v850
    %v852 = vmul.f32 %v850, %v851
    %v853 = vsub.f32 1.0, %v852
    %v854 = vmul.f32 %v851, %v853
    %v855 = vadd.f32 %v851, %v854
    %vm856 = vweird.f32 %v850
    %vm857 = vweird.f32 %v851
    %vm858 = vmor %vm856, %vm857
    %v859 = vsel %vm858, %v851, %v855
    %v860 = vand.u32 2147483647, %v850
    %vm861 = vcmp.eq.f32.partialorder %v860, 8.507059e+37
    %v862 = vand.u32 %v850, 2147483648
    %v863 = vor.u32 1.1754944e-38, %v862
    %v864 = vsel %vm861, %v863, %v859
    %v865 = vmul.f32 %v848, %v864
    %v866 = vsel %vm842, %v865, %v839
    %867 = vst [vmem:[%s14] sm:$0xff] %v866
    %v868 = vpack.c.bf16 %v720, %v720
    %v869 = vld [vmem:[%s8] sm:$0xff]
    %v870 = vld [vmem:[%s8 + $0x8] sm:$0xff]
    %v871 = vld [vmem:[%s8 + $0x10] sm:$0xff]
    %v872 = vld [vmem:[%s8 + $0x18] sm:$0xff]
    %v873 = vld [vmem:[%s8 + $0x20] sm:$0xff]
    %v874 = vld [vmem:[%s8 + $0x28] sm:$0xff]
    %v875 = vld [vmem:[%s8 + $0x30] sm:$0xff]
    %v876 = vld [vmem:[%s8 + $0x38] sm:$0xff]
    %v877 = vld [vmem:[%s8 + $0x40] sm:$0xff]
    %v878 = vld [vmem:[%s8 + $0x48] sm:$0xff]
    %v879 = vld [vmem:[%s8 + $0x50] sm:$0xff]
    %v880 = vld [vmem:[%s8 + $0x58] sm:$0xff]
    %v881 = vld [vmem:[%s8 + $0x60] sm:$0xff]
    %v882 = vld [vmem:[%s8 + $0x68] sm:$0xff]
    %v883 = vld [vmem:[%s8 + $0x70] sm:$0xff]
    %v884 = vld [vmem:[%s8 + $0x78] sm:$0xff]
    %v885 = vld [vmem:[%s8 + $0x80] sm:$0xff]
    %v886 = vld [vmem:[%s8 + $0x88] sm:$0xff]
    %v887 = vld [vmem:[%s8 + $0x90] sm:$0xff]
    %v888 = vld [vmem:[%s8 + $0x98] sm:$0xff]
    %v889 = vld [vmem:[%s8 + $0xa0] sm:$0xff]
    %v890 = vld [vmem:[%s8 + $0xa8] sm:$0xff]
    %v891 = vld [vmem:[%s8 + $0xb0] sm:$0xff]
    %v892 = vld [vmem:[%s8 + $0xb8] sm:$0xff]
    %v893 = vld [vmem:[%s8 + $0xc0] sm:$0xff]
    %v894 = vld [vmem:[%s8 + $0xc8] sm:$0xff]
    %v895 = vld [vmem:[%s8 + $0xd0] sm:$0xff]
    %v896 = vld [vmem:[%s8 + $0xd8] sm:$0xff]
    %v897 = vld [vmem:[%s8 + $0xe0] sm:$0xff]
    %v898 = vld [vmem:[%s8 + $0xe8] sm:$0xff]
    %v899 = vld [vmem:[%s8 + $0xf0] sm:$0xff]
    %v900 = vld [vmem:[%s8 + $0xf8] sm:$0xff]
    %v901 = vld [vmem:[%s8 + $0x100] sm:$0xff]
    %v902 = vld [vmem:[%s8 + $0x108] sm:$0xff]
    %v903 = vld [vmem:[%s8 + $0x110] sm:$0xff]
    %v904 = vld [vmem:[%s8 + $0x118] sm:$0xff]
    %v905 = vld [vmem:[%s8 + $0x120] sm:$0xff]
    %v906 = vld [vmem:[%s8 + $0x128] sm:$0xff]
    %v907 = vld [vmem:[%s8 + $0x130] sm:$0xff]
    %v908 = vld [vmem:[%s8 + $0x138] sm:$0xff]
    %v909 = vld [vmem:[%s8 + $0x140] sm:$0xff]
    %v910 = vld [vmem:[%s8 + $0x148] sm:$0xff]
    %v911 = vld [vmem:[%s8 + $0x150] sm:$0xff]
    %v912 = vld [vmem:[%s8 + $0x158] sm:$0xff]
    %v913 = vld [vmem:[%s8 + $0x160] sm:$0xff]
    %v914 = vld [vmem:[%s8 + $0x168] sm:$0xff]
    %v915 = vld [vmem:[%s8 + $0x170] sm:$0xff]
    %v916 = vld [vmem:[%s8 + $0x178] sm:$0xff]
    %v917 = vld [vmem:[%s8 + $0x180] sm:$0xff]
    %v918 = vld [vmem:[%s8 + $0x188] sm:$0xff]
    %v919 = vld [vmem:[%s8 + $0x190] sm:$0xff]
    %v920 = vld [vmem:[%s8 + $0x198] sm:$0xff]
    %v921 = vld [vmem:[%s8 + $0x1a0] sm:$0xff]
    %v922 = vld [vmem:[%s8 + $0x1a8] sm:$0xff]
    %v923 = vld [vmem:[%s8 + $0x1b0] sm:$0xff]
    %v924 = vld [vmem:[%s8 + $0x1b8] sm:$0xff]
    %v925 = vld [vmem:[%s8 + $0x1c0] sm:$0xff]
    %v926 = vld [vmem:[%s8 + $0x1c8] sm:$0xff]
    %v927 = vld [vmem:[%s8 + $0x1d0] sm:$0xff]
    %v928 = vld [vmem:[%s8 + $0x1d8] sm:$0xff]
    %v929 = vld [vmem:[%s8 + $0x1e0] sm:$0xff]
    %v930 = vld [vmem:[%s8 + $0x1e8] sm:$0xff]
    %v931 = vld [vmem:[%s8 + $0x1f0] sm:$0xff]
    %v932 = vld [vmem:[%s8 + $0x1f8] sm:$0xff]
    %v933 = vld [vmem:[%s8 + $0x200] sm:$0xff]
    %v934 = vld [vmem:[%s8 + $0x208] sm:$0xff]
    %v935 = vld [vmem:[%s8 + $0x210] sm:$0xff]
    %v936 = vld [vmem:[%s8 + $0x218] sm:$0xff]
    %v937 = vld [vmem:[%s8 + $0x220] sm:$0xff]
    %v938 = vld [vmem:[%s8 + $0x228] sm:$0xff]
    %v939 = vld [vmem:[%s8 + $0x230] sm:$0xff]
    %v940 = vld [vmem:[%s8 + $0x238] sm:$0xff]
    %v941 = vld [vmem:[%s8 + $0x240] sm:$0xff]
    %v942 = vld [vmem:[%s8 + $0x248] sm:$0xff]
    %v943 = vld [vmem:[%s8 + $0x250] sm:$0xff]
    %v944 = vld [vmem:[%s8 + $0x258] sm:$0xff]
    %v945 = vld [vmem:[%s8 + $0x260] sm:$0xff]
    %v946 = vld [vmem:[%s8 + $0x268] sm:$0xff]
    %v947 = vld [vmem:[%s8 + $0x270] sm:$0xff]
    %v948 = vld [vmem:[%s8 + $0x278] sm:$0xff]
    %v949 = vld [vmem:[%s8 + $0x280] sm:$0xff]
    %v950 = vld [vmem:[%s8 + $0x288] sm:$0xff]
    %v951 = vld [vmem:[%s8 + $0x290] sm:$0xff]
    %v952 = vld [vmem:[%s8 + $0x298] sm:$0xff]
    %v953 = vld [vmem:[%s8 + $0x2a0] sm:$0xff]
    %v954 = vld [vmem:[%s8 + $0x2a8] sm:$0xff]
    %v955 = vld [vmem:[%s8 + $0x2b0] sm:$0xff]
    %v956 = vld [vmem:[%s8 + $0x2b8] sm:$0xff]
    %v957 = vld [vmem:[%s8 + $0x2c0] sm:$0xff]
    %v958 = vld [vmem:[%s8 + $0x2c8] sm:$0xff]
    %v959 = vld [vmem:[%s8 + $0x2d0] sm:$0xff]
    %v960 = vld [vmem:[%s8 + $0x2d8] sm:$0xff]
    %v961 = vld [vmem:[%s8 + $0x2e0] sm:$0xff]
    %v962 = vld [vmem:[%s8 + $0x2e8] sm:$0xff]
    %v963 = vld [vmem:[%s8 + $0x2f0] sm:$0xff]
    %v964 = vld [vmem:[%s8 + $0x2f8] sm:$0xff]
    %v965 = vld [vmem:[%s8 + $0x300] sm:$0xff]
    %v966 = vld [vmem:[%s8 + $0x308] sm:$0xff]
    %v967 = vld [vmem:[%s8 + $0x310] sm:$0xff]
    %v968 = vld [vmem:[%s8 + $0x318] sm:$0xff]
    %v969 = vld [vmem:[%s8 + $0x320] sm:$0xff]
    %v970 = vld [vmem:[%s8 + $0x328] sm:$0xff]
    %v971 = vld [vmem:[%s8 + $0x330] sm:$0xff]
    %v972 = vld [vmem:[%s8 + $0x338] sm:$0xff]
    %v973 = vld [vmem:[%s8 + $0x340] sm:$0xff]
    %v974 = vld [vmem:[%s8 + $0x348] sm:$0xff]
    %v975 = vld [vmem:[%s8 + $0x350] sm:$0xff]
    %v976 = vld [vmem:[%s8 + $0x358] sm:$0xff]
    %v977 = vld [vmem:[%s8 + $0x360] sm:$0xff]
    %v978 = vld [vmem:[%s8 + $0x368] sm:$0xff]
    %v979 = vld [vmem:[%s8 + $0x370] sm:$0xff]
    %v980 = vld [vmem:[%s8 + $0x378] sm:$0xff]
    %v981 = vld [vmem:[%s8 + $0x380] sm:$0xff]
    %v982 = vld [vmem:[%s8 + $0x388] sm:$0xff]
    %v983 = vld [vmem:[%s8 + $0x390] sm:$0xff]
    %v984 = vld [vmem:[%s8 + $0x398] sm:$0xff]
    %v985 = vld [vmem:[%s8 + $0x3a0] sm:$0xff]
    %v986 = vld [vmem:[%s8 + $0x3a8] sm:$0xff]
    %v987 = vld [vmem:[%s8 + $0x3b0] sm:$0xff]
    %v988 = vld [vmem:[%s8 + $0x3b8] sm:$0xff]
    %v989 = vld [vmem:[%s8 + $0x3c0] sm:$0xff]
    %v990 = vld [vmem:[%s8 + $0x3c8] sm:$0xff]
    %v991 = vld [vmem:[%s8 + $0x3d0] sm:$0xff]
    %v992 = vld [vmem:[%s8 + $0x3d8] sm:$0xff]
    %v993 = vld [vmem:[%s8 + $0x3e0] sm:$0xff]
    %v994 = vld [vmem:[%s8 + $0x3e8] sm:$0xff]
    %v995 = vld [vmem:[%s8 + $0x3f0] sm:$0xff]
    %v996 = vld [vmem:[%s8 + $0x3f8] sm:$0xff]
    %v997 = vld [vmem:[%s9] sm:$0xff]
    %v998 = vld [vmem:[%s9 + $0x8] sm:$0xff]
    %v1001 = vperm.slane %v997, 0
    %v1002 = vperm.slane %v997, 1
    %v1003 = vperm.slane %v997, 2
    %v1004 = vperm.slane %v997, 3
    %v1005 = vperm.slane %v997, 4
    %v1006 = vperm.slane %v997, 5
    %v1007 = vperm.slane %v997, 6
    %v1008 = vperm.slane %v997, 7
    %v1009 = vperm.slane %v998, 0
    %v1010 = vperm.slane %v998, 1
    %v1011 = vperm.slane %v998, 2
    %v1012 = vperm.slane %v998, 3
    %v1013 = vperm.slane %v998, 4
    %v1014 = vperm.slane %v998, 5
    %v1015 = vperm.slane %v998, 6
    %v1016 = vperm.slane %v998, 7
    %v1161 = vunpack.c.l.b16 %v869
    %v1162 = vunpack.c.h.b16 %v869
    %v1163 = vunpack.c.l.b16 %v870
    %v1164 = vunpack.c.h.b16 %v870
    %v1165 = vunpack.c.l.b16 %v871
    %v1166 = vunpack.c.h.b16 %v871
    %v1167 = vunpack.c.l.b16 %v872
    %v1168 = vunpack.c.h.b16 %v872
    %v1169 = vunpack.c.l.b16 %v873
    %v1170 = vunpack.c.h.b16 %v873
    %v1171 = vunpack.c.l.b16 %v874
    %v1172 = vunpack.c.h.b16 %v874
    %v1173 = vunpack.c.l.b16 %v875
    %v1174 = vunpack.c.h.b16 %v875
    %v1175 = vunpack.c.l.b16 %v876
    %v1176 = vunpack.c.h.b16 %v876
    %v1177 = vunpack.c.l.b16 %v877
    %v1178 = vunpack.c.h.b16 %v877
    %v1179 = vunpack.c.l.b16 %v878
    %v1180 = vunpack.c.h.b16 %v878
    %v1181 = vunpack.c.l.b16 %v879
    %v1182 = vunpack.c.h.b16 %v879
    %v1183 = vunpack.c.l.b16 %v880
    %v1184 = vunpack.c.h.b16 %v880
    %v1185 = vunpack.c.l.b16 %v881
    %v1186 = vunpack.c.h.b16 %v881
    %v1187 = vunpack.c.l.b16 %v882
    %v1188 = vunpack.c.h.b16 %v882
    %v1189 = vunpack.c.l.b16 %v883
    %v1190 = vunpack.c.h.b16 %v883
    %v1191 = vunpack.c.l.b16 %v884
    %v1192 = vunpack.c.h.b16 %v884
    %v1193 = vunpack.c.l.b16 %v885
    %v1194 = vunpack.c.h.b16 %v885
    %v1195 = vunpack.c.l.b16 %v886
    %v1196 = vunpack.c.h.b16 %v886
    %v1197 = vunpack.c.l.b16 %v887
    %v1198 = vunpack.c.h.b16 %v887
    %v1199 = vunpack.c.l.b16 %v888
    %v1200 = vunpack.c.h.b16 %v888
    %v1201 = vunpack.c.l.b16 %v889
    %v1202 = vunpack.c.h.b16 %v889
    %v1203 = vunpack.c.l.b16 %v890
    %v1204 = vunpack.c.h.b16 %v890
    %v1205 = vunpack.c.l.b16 %v891
    %v1206 = vunpack.c.h.b16 %v891
    %v1207 = vunpack.c.l.b16 %v892
    %v1208 = vunpack.c.h.b16 %v892
    %v1209 = vunpack.c.l.b16 %v893
    %v1210 = vunpack.c.h.b16 %v893
    %v1211 = vunpack.c.l.b16 %v894
    %v1212 = vunpack.c.h.b16 %v894
    %v1213 = vunpack.c.l.b16 %v895
    %v1214 = vunpack.c.h.b16 %v895
    %v1215 = vunpack.c.l.b16 %v896
    %v1216 = vunpack.c.h.b16 %v896
    %v1217 = vunpack.c.l.b16 %v897
    %v1218 = vunpack.c.h.b16 %v897
    %v1219 = vunpack.c.l.b16 %v898
    %v1220 = vunpack.c.h.b16 %v898
    %v1221 = vunpack.c.l.b16 %v899
    %v1222 = vunpack.c.h.b16 %v899
    %v1223 = vunpack.c.l.b16 %v900
    %v1224 = vunpack.c.h.b16 %v900
    %v1225 = vunpack.c.l.b16 %v901
    %v1226 = vunpack.c.h.b16 %v901
    %v1227 = vunpack.c.l.b16 %v902
    %v1228 = vunpack.c.h.b16 %v902
    %v1229 = vunpack.c.l.b16 %v903
    %v1230 = vunpack.c.h.b16 %v903
    %v1231 = vunpack.c.l.b16 %v904
    %v1232 = vunpack.c.h.b16 %v904
    %v1233 = vunpack.c.l.b16 %v905
    %v1234 = vunpack.c.h.b16 %v905
    %v1235 = vunpack.c.l.b16 %v906
    %v1236 = vunpack.c.h.b16 %v906
    %v1237 = vunpack.c.l.b16 %v907
    %v1238 = vunpack.c.h.b16 %v907
    %v1239 = vunpack.c.l.b16 %v908
    %v1240 = vunpack.c.h.b16 %v908
    %v1241 = vunpack.c.l.b16 %v909
    %v1242 = vunpack.c.h.b16 %v909
    %v1243 = vunpack.c.l.b16 %v910
    %v1244 = vunpack.c.h.b16 %v910
    %v1245 = vunpack.c.l.b16 %v911
    %v1246 = vunpack.c.h.b16 %v911
    %v1247 = vunpack.c.l.b16 %v912
    %v1248 = vunpack.c.h.b16 %v912
    %v1249 = vunpack.c.l.b16 %v913
    %v1250 = vunpack.c.h.b16 %v913
    %v1251 = vunpack.c.l.b16 %v914
    %v1252 = vunpack.c.h.b16 %v914
    %v1253 = vunpack.c.l.b16 %v915
    %v1254 = vunpack.c.h.b16 %v915
    %v1255 = vunpack.c.l.b16 %v916
    %v1256 = vunpack.c.h.b16 %v916
    %v1257 = vunpack.c.l.b16 %v917
    %v1258 = vunpack.c.h.b16 %v917
    %v1259 = vunpack.c.l.b16 %v918
    %v1260 = vunpack.c.h.b16 %v918
    %v1261 = vunpack.c.l.b16 %v919
    %v1262 = vunpack.c.h.b16 %v919
    %v1263 = vunpack.c.l.b16 %v920
    %v1264 = vunpack.c.h.b16 %v920
    %v1265 = vunpack.c.l.b16 %v921
    %v1266 = vunpack.c.h.b16 %v921
    %v1267 = vunpack.c.l.b16 %v922
    %v1268 = vunpack.c.h.b16 %v922
    %v1269 = vunpack.c.l.b16 %v923
    %v1270 = vunpack.c.h.b16 %v923
    %v1271 = vunpack.c.l.b16 %v924
    %v1272 = vunpack.c.h.b16 %v924
    %v1273 = vunpack.c.l.b16 %v925
    %v1274 = vunpack.c.h.b16 %v925
    %v1275 = vunpack.c.l.b16 %v926
    %v1276 = vunpack.c.h.b16 %v926
    %v1277 = vunpack.c.l.b16 %v927
    %v1278 = vunpack.c.h.b16 %v927
    %v1279 = vunpack.c.l.b16 %v928
    %v1280 = vunpack.c.h.b16 %v928
    %v1281 = vunpack.c.l.b16 %v929
    %v1282 = vunpack.c.h.b16 %v929
    %v1283 = vunpack.c.l.b16 %v930
    %v1284 = vunpack.c.h.b16 %v930
    %v1285 = vunpack.c.l.b16 %v931
    %v1286 = vunpack.c.h.b16 %v931
    %v1287 = vunpack.c.l.b16 %v932
    %v1288 = vunpack.c.h.b16 %v932
    %v1289 = vunpack.c.l.b16 %v933
    %v1290 = vunpack.c.h.b16 %v933
    %v1291 = vunpack.c.l.b16 %v934
    %v1292 = vunpack.c.h.b16 %v934
    %v1293 = vunpack.c.l.b16 %v935
    %v1294 = vunpack.c.h.b16 %v935
    %v1295 = vunpack.c.l.b16 %v936
    %v1296 = vunpack.c.h.b16 %v936
    %v1297 = vunpack.c.l.b16 %v937
    %v1298 = vunpack.c.h.b16 %v937
    %v1299 = vunpack.c.l.b16 %v938
    %v1300 = vunpack.c.h.b16 %v938
    %v1301 = vunpack.c.l.b16 %v939
    %v1302 = vunpack.c.h.b16 %v939
    %v1303 = vunpack.c.l.b16 %v940
    %v1304 = vunpack.c.h.b16 %v940
    %v1305 = vunpack.c.l.b16 %v941
    %v1306 = vunpack.c.h.b16 %v941
    %v1307 = vunpack.c.l.b16 %v942
    %v1308 = vunpack.c.h.b16 %v942
    %v1309 = vunpack.c.l.b16 %v943
    %v1310 = vunpack.c.h.b16 %v943
    %v1311 = vunpack.c.l.b16 %v944
    %v1312 = vunpack.c.h.b16 %v944
    %v1313 = vunpack.c.l.b16 %v945
    %v1314 = vunpack.c.h.b16 %v945
    %v1315 = vunpack.c.l.b16 %v946
    %v1316 = vunpack.c.h.b16 %v946
    %v1317 = vunpack.c.l.b16 %v947
    %v1318 = vunpack.c.h.b16 %v947
    %v1319 = vunpack.c.l.b16 %v948
    %v1320 = vunpack.c.h.b16 %v948
    %v1321 = vunpack.c.l.b16 %v949
    %v1322 = vunpack.c.h.b16 %v949
    %v1323 = vunpack.c.l.b16 %v950
    %v1324 = vunpack.c.h.b16 %v950
    %v1325 = vunpack.c.l.b16 %v951
    %v1326 = vunpack.c.h.b16 %v951
    %v1327 = vunpack.c.l.b16 %v952
    %v1328 = vunpack.c.h.b16 %v952
    %v1329 = vunpack.c.l.b16 %v953
    %v1330 = vunpack.c.h.b16 %v953
    %v1331 = vunpack.c.l.b16 %v954
    %v1332 = vunpack.c.h.b16 %v954
    %v1333 = vunpack.c.l.b16 %v955
    %v1334 = vunpack.c.h.b16 %v955
    %v1335 = vunpack.c.l.b16 %v956
    %v1336 = vunpack.c.h.b16 %v956
    %v1337 = vunpack.c.l.b16 %v957
    %v1338 = vunpack.c.h.b16 %v957
    %v1339 = vunpack.c.l.b16 %v958
    %v1340 = vunpack.c.h.b16 %v958
    %v1341 = vunpack.c.l.b16 %v959
    %v1342 = vunpack.c.h.b16 %v959
    %v1343 = vunpack.c.l.b16 %v960
    %v1344 = vunpack.c.h.b16 %v960
    %v1345 = vunpack.c.l.b16 %v961
    %v1346 = vunpack.c.h.b16 %v961
    %v1347 = vunpack.c.l.b16 %v962
    %v1348 = vunpack.c.h.b16 %v962
    %v1349 = vunpack.c.l.b16 %v963
    %v1350 = vunpack.c.h.b16 %v963
    %v1351 = vunpack.c.l.b16 %v964
    %v1352 = vunpack.c.h.b16 %v964
    %v1353 = vunpack.c.l.b16 %v965
    %v1354 = vunpack.c.h.b16 %v965
    %v1355 = vunpack.c.l.b16 %v966
    %v1356 = vunpack.c.h.b16 %v966
    %v1357 = vunpack.c.l.b16 %v967
    %v1358 = vunpack.c.h.b16 %v967
    %v1359 = vunpack.c.l.b16 %v968
    %v1360 = vunpack.c.h.b16 %v968
    %v1361 = vunpack.c.l.b16 %v969
    %v1362 = vunpack.c.h.b16 %v969
    %v1363 = vunpack.c.l.b16 %v970
    %v1364 = vunpack.c.h.b16 %v970
    %v1365 = vunpack.c.l.b16 %v971
    %v1366 = vunpack.c.h.b16 %v971
    %v1367 = vunpack.c.l.b16 %v972
    %v1368 = vunpack.c.h.b16 %v972
    %v1369 = vunpack.c.l.b16 %v973
    %v1370 = vunpack.c.h.b16 %v973
    %v1371 = vunpack.c.l.b16 %v974
    %v1372 = vunpack.c.h.b16 %v974
    %v1373 = vunpack.c.l.b16 %v975
    %v1374 = vunpack.c.h.b16 %v975
    %v1375 = vunpack.c.l.b16 %v976
    %v1376 = vunpack.c.h.b16 %v976
    %v1377 = vunpack.c.l.b16 %v977
    %v1378 = vunpack.c.h.b16 %v977
    %v1379 = vunpack.c.l.b16 %v978
    %v1380 = vunpack.c.h.b16 %v978
    %v1381 = vunpack.c.l.b16 %v979
    %v1382 = vunpack.c.h.b16 %v979
    %v1383 = vunpack.c.l.b16 %v980
    %v1384 = vunpack.c.h.b16 %v980
    %v1385 = vunpack.c.l.b16 %v981
    %v1386 = vunpack.c.h.b16 %v981
    %v1387 = vunpack.c.l.b16 %v982
    %v1388 = vunpack.c.h.b16 %v982
    %v1389 = vunpack.c.l.b16 %v983
    %v1390 = vunpack.c.h.b16 %v983
    %v1391 = vunpack.c.l.b16 %v984
    %v1392 = vunpack.c.h.b16 %v984
    %v1393 = vunpack.c.l.b16 %v985
    %v1394 = vunpack.c.h.b16 %v985
    %v1395 = vunpack.c.l.b16 %v986
    %v1396 = vunpack.c.h.b16 %v986
    %v1397 = vunpack.c.l.b16 %v987
    %v1398 = vunpack.c.h.b16 %v987
    %v1399 = vunpack.c.l.b16 %v988
    %v1400 = vunpack.c.h.b16 %v988
    %v1401 = vunpack.c.l.b16 %v989
    %v1402 = vunpack.c.h.b16 %v989
    %v1403 = vunpack.c.l.b16 %v990
    %v1404 = vunpack.c.h.b16 %v990
    %v1405 = vunpack.c.l.b16 %v991
    %v1406 = vunpack.c.h.b16 %v991
    %v1407 = vunpack.c.l.b16 %v992
    %v1408 = vunpack.c.h.b16 %v992
    %v1409 = vunpack.c.l.b16 %v993
    %v1410 = vunpack.c.h.b16 %v993
    %v1411 = vunpack.c.l.b16 %v994
    %v1412 = vunpack.c.h.b16 %v994
    %v1413 = vunpack.c.l.b16 %v995
    %v1414 = vunpack.c.h.b16 %v995
    %v1415 = vunpack.c.l.b16 %v996
    %v1416 = vunpack.c.h.b16 %v996
    %v1417 = vpack.c.b16 %v1177, %v1161
    %v1418 = vpack.c.b16 %v1178, %v1162
    %v1419 = vpack.c.b16 %v1179, %v1163
    %v1420 = vpack.c.b16 %v1180, %v1164
    %v1421 = vpack.c.b16 %v1181, %v1165
    %v1422 = vpack.c.b16 %v1182, %v1166
    %v1423 = vpack.c.b16 %v1183, %v1167
    %v1424 = vpack.c.b16 %v1184, %v1168
    %v1425 = vpack.c.b16 %v1185, %v1169
    %v1426 = vpack.c.b16 %v1186, %v1170
    %v1427 = vpack.c.b16 %v1187, %v1171
    %v1428 = vpack.c.b16 %v1188, %v1172
    %v1429 = vpack.c.b16 %v1189, %v1173
    %v1430 = vpack.c.b16 %v1190, %v1174
    %v1431 = vpack.c.b16 %v1191, %v1175
    %v1432 = vpack.c.b16 %v1192, %v1176
    %v1433 = vpack.c.b16 %v1209, %v1193
    %v1434 = vpack.c.b16 %v1210, %v1194
    %v1435 = vpack.c.b16 %v1211, %v1195
    %v1436 = vpack.c.b16 %v1212, %v1196
    %v1437 = vpack.c.b16 %v1213, %v1197
    %v1438 = vpack.c.b16 %v1214, %v1198
    %v1439 = vpack.c.b16 %v1215, %v1199
    %v1440 = vpack.c.b16 %v1216, %v1200
    %v1441 = vpack.c.b16 %v1217, %v1201
    %v1442 = vpack.c.b16 %v1218, %v1202
    %v1443 = vpack.c.b16 %v1219, %v1203
    %v1444 = vpack.c.b16 %v1220, %v1204
    %v1445 = vpack.c.b16 %v1221, %v1205
    %v1446 = vpack.c.b16 %v1222, %v1206
    %v1447 = vpack.c.b16 %v1223, %v1207
    %v1448 = vpack.c.b16 %v1224, %v1208
    %v1449 = vpack.c.b16 %v1241, %v1225
    %v1450 = vpack.c.b16 %v1242, %v1226
    %v1451 = vpack.c.b16 %v1243, %v1227
    %v1452 = vpack.c.b16 %v1244, %v1228
    %v1453 = vpack.c.b16 %v1245, %v1229
    %v1454 = vpack.c.b16 %v1246, %v1230
    %v1455 = vpack.c.b16 %v1247, %v1231
    %v1456 = vpack.c.b16 %v1248, %v1232
    %v1457 = vpack.c.b16 %v1249, %v1233
    %v1458 = vpack.c.b16 %v1250, %v1234
    %v1459 = vpack.c.b16 %v1251, %v1235
    %v1460 = vpack.c.b16 %v1252, %v1236
    %v1461 = vpack.c.b16 %v1253, %v1237
    %v1462 = vpack.c.b16 %v1254, %v1238
    %v1463 = vpack.c.b16 %v1255, %v1239
    %v1464 = vpack.c.b16 %v1256, %v1240
    %v1465 = vpack.c.b16 %v1273, %v1257
    %v1466 = vpack.c.b16 %v1274, %v1258
    %v1467 = vpack.c.b16 %v1275, %v1259
    %v1468 = vpack.c.b16 %v1276, %v1260
    %v1469 = vpack.c.b16 %v1277, %v1261
    %v1470 = vpack.c.b16 %v1278, %v1262
    %v1471 = vpack.c.b16 %v1279, %v1263
    %v1472 = vpack.c.b16 %v1280, %v1264
    %v1473 = vpack.c.b16 %v1281, %v1265
    %v1474 = vpack.c.b16 %v1282, %v1266
    %v1475 = vpack.c.b16 %v1283, %v1267
    %v1476 = vpack.c.b16 %v1284, %v1268
    %v1477 = vpack.c.b16 %v1285, %v1269
    %v1478 = vpack.c.b16 %v1286, %v1270
    %v1479 = vpack.c.b16 %v1287, %v1271
    %v1480 = vpack.c.b16 %v1288, %v1272
    %v1481 = vpack.c.b16 %v1305, %v1289
    %v1482 = vpack.c.b16 %v1306, %v1290
    %v1483 = vpack.c.b16 %v1307, %v1291
    %v1484 = vpack.c.b16 %v1308, %v1292
    %v1485 = vpack.c.b16 %v1309, %v1293
    %v1486 = vpack.c.b16 %v1310, %v1294
    %v1487 = vpack.c.b16 %v1311, %v1295
    %v1488 = vpack.c.b16 %v1312, %v1296
    %v1489 = vpack.c.b16 %v1313, %v1297
    %v1490 = vpack.c.b16 %v1314, %v1298
    %v1491 = vpack.c.b16 %v1315, %v1299
    %v1492 = vpack.c.b16 %v1316, %v1300
    %v1493 = vpack.c.b16 %v1317, %v1301
    %v1494 = vpack.c.b16 %v1318, %v1302
    %v1495 = vpack.c.b16 %v1319, %v1303
    %v1496 = vpack.c.b16 %v1320, %v1304
    %v1497 = vpack.c.b16 %v1337, %v1321
    %v1498 = vpack.c.b16 %v1338, %v1322
    %v1499 = vpack.c.b16 %v1339, %v1323
    %v1500 = vpack.c.b16 %v1340, %v1324
    %v1501 = vpack.c.b16 %v1341, %v1325
    %v1502 = vpack.c.b16 %v1342, %v1326
    %v1503 = vpack.c.b16 %v1343, %v1327
    %v1504 = vpack.c.b16 %v1344, %v1328
    %v1505 = vpack.c.b16 %v1345, %v1329
    %v1506 = vpack.c.b16 %v1346, %v1330
    %v1507 = vpack.c.b16 %v1347, %v1331
    %v1508 = vpack.c.b16 %v1348, %v1332
    %v1509 = vpack.c.b16 %v1349, %v1333
    %v1510 = vpack.c.b16 %v1350, %v1334
    %v1511 = vpack.c.b16 %v1351, %v1335
    %v1512 = vpack.c.b16 %v1352, %v1336
    %v1513 = vpack.c.b16 %v1369, %v1353
    %v1514 = vpack.c.b16 %v1370, %v1354
    %v1515 = vpack.c.b16 %v1371, %v1355
    %v1516 = vpack.c.b16 %v1372, %v1356
    %v1517 = vpack.c.b16 %v1373, %v1357
    %v1518 = vpack.c.b16 %v1374, %v1358
    %v1519 = vpack.c.b16 %v1375, %v1359
    %v1520 = vpack.c.b16 %v1376, %v1360
    %v1521 = vpack.c.b16 %v1377, %v1361
    %v1522 = vpack.c.b16 %v1378, %v1362
    %v1523 = vpack.c.b16 %v1379, %v1363
    %v1524 = vpack.c.b16 %v1380, %v1364
    %v1525 = vpack.c.b16 %v1381, %v1365
    %v1526 = vpack.c.b16 %v1382, %v1366
    %v1527 = vpack.c.b16 %v1383, %v1367
    %v1528 = vpack.c.b16 %v1384, %v1368
    %v1529 = vpack.c.b16 %v1401, %v1385
    %v1530 = vpack.c.b16 %v1402, %v1386
    %v1531 = vpack.c.b16 %v1403, %v1387
    %v1532 = vpack.c.b16 %v1404, %v1388
    %v1533 = vpack.c.b16 %v1405, %v1389
    %v1534 = vpack.c.b16 %v1406, %v1390
    %v1535 = vpack.c.b16 %v1407, %v1391
    %v1536 = vpack.c.b16 %v1408, %v1392
    %v1537 = vpack.c.b16 %v1409, %v1393
    %v1538 = vpack.c.b16 %v1410, %v1394
    %v1539 = vpack.c.b16 %v1411, %v1395
    %v1540 = vpack.c.b16 %v1412, %v1396
    %v1541 = vpack.c.b16 %v1413, %v1397
    %v1542 = vpack.c.b16 %v1414, %v1398
    %v1543 = vpack.c.b16 %v1415, %v1399
    %v1544 = vpack.c.b16 %v1416, %v1400
    %1673 = vmatpush.bf16.msra.mxu0 %v1529
    %1674 = vmatpush.bf16.msra.mxu0 %v1513
    %1675 = vmatpush.bf16.msra.mxu0 %v1497
    %1676 = vmatpush.bf16.msra.mxu0 %v1481
    %1677 = vmatpush.bf16.msra.mxu0 %v1465
    %1678 = vmatpush.bf16.msra.mxu0 %v1449
    %1679 = vmatpush.bf16.msra.mxu0 %v1433
    %1680 = vmatpush.bf16.msra.mxu0 %v1417
    %1681 = vmatmul.bf16.gmra.mxu0 %v868
    %v1682 = vpop.f32.mrf.mxu0
    %v1683 = vadd.f32 %v1001, %v1682
    %v1684 = vpop.f32.mrf.mxu0
    %1685 = vdwg.mxu0
    %1686 = vmatpush.bf16.msra.mxu0 %v1530
    %1687 = vmatpush.bf16.msra.mxu0 %v1514
    %1688 = vmatpush.bf16.msra.mxu0 %v1498
    %1689 = vmatpush.bf16.msra.mxu0 %v1482
    %1690 = vmatpush.bf16.msra.mxu0 %v1466
    %1691 = vmatpush.bf16.msra.mxu0 %v1450
    %1692 = vmatpush.bf16.msra.mxu0 %v1434
    %1693 = vmatpush.bf16.msra.mxu0 %v1418
    %1694 = vmatmul.bf16.gmra.mxu0 %v868
    %v1695 = vpop.f32.mrf.mxu0
    %v1696 = vadd.f32 %v1002, %v1695
    %v1697 = vpop.f32.mrf.mxu0
    %1698 = vdwg.mxu0
    %1699 = vmatpush.bf16.msra.mxu0 %v1531
    %1700 = vmatpush.bf16.msra.mxu0 %v1515
    %1701 = vmatpush.bf16.msra.mxu0 %v1499
    %1702 = vmatpush.bf16.msra.mxu0 %v1483
    %1703 = vmatpush.bf16.msra.mxu0 %v1467
    %1704 = vmatpush.bf16.msra.mxu0 %v1451
    %1705 = vmatpush.bf16.msra.mxu0 %v1435
    %1706 = vmatpush.bf16.msra.mxu0 %v1419
    %1707 = vmatmul.bf16.gmra.mxu0 %v868
    %v1708 = vpop.f32.mrf.mxu0
    %v1709 = vadd.f32 %v1003, %v1708
    %v1710 = vpop.f32.mrf.mxu0
    %1711 = vdwg.mxu0
    %1712 = vmatpush.bf16.msra.mxu0 %v1532
    %1713 = vmatpush.bf16.msra.mxu0 %v1516
    %1714 = vmatpush.bf16.msra.mxu0 %v1500
    %1715 = vmatpush.bf16.msra.mxu0 %v1484
    %1716 = vmatpush.bf16.msra.mxu0 %v1468
    %1717 = vmatpush.bf16.msra.mxu0 %v1452
    %1718 = vmatpush.bf16.msra.mxu0 %v1436
    %1719 = vmatpush.bf16.msra.mxu0 %v1420
    %1720 = vmatmul.bf16.gmra.mxu0 %v868
    %v1721 = vpop.f32.mrf.mxu0
    %v1722 = vadd.f32 %v1004, %v1721
    %v1723 = vpop.f32.mrf.mxu0
    %1724 = vdwg.mxu0
    %1725 = vmatpush.bf16.msra.mxu0 %v1533
    %1726 = vmatpush.bf16.msra.mxu0 %v1517
    %1727 = vmatpush.bf16.msra.mxu0 %v1501
    %1728 = vmatpush.bf16.msra.mxu0 %v1485
    %1729 = vmatpush.bf16.msra.mxu0 %v1469
    %1730 = vmatpush.bf16.msra.mxu0 %v1453
    %1731 = vmatpush.bf16.msra.mxu0 %v1437
    %1732 = vmatpush.bf16.msra.mxu0 %v1421
    %1733 = vmatmul.bf16.gmra.mxu0 %v868
    %v1734 = vpop.f32.mrf.mxu0
    %v1735 = vadd.f32 %v1005, %v1734
    %v1736 = vpop.f32.mrf.mxu0
    %1737 = vdwg.mxu0
    %1738 = vmatpush.bf16.msra.mxu0 %v1534
    %1739 = vmatpush.bf16.msra.mxu0 %v1518
    %1740 = vmatpush.bf16.msra.mxu0 %v1502
    %1741 = vmatpush.bf16.msra.mxu0 %v1486
    %1742 = vmatpush.bf16.msra.mxu0 %v1470
    %1743 = vmatpush.bf16.msra.mxu0 %v1454
    %1744 = vmatpush.bf16.msra.mxu0 %v1438
    %1745 = vmatpush.bf16.msra.mxu0 %v1422
    %1746 = vmatmul.bf16.gmra.mxu0 %v868
    %v1747 = vpop.f32.mrf.mxu0
    %v1748 = vadd.f32 %v1006, %v1747
    %v1749 = vpop.f32.mrf.mxu0
    %1750 = vdwg.mxu0
    %1751 = vmatpush.bf16.msra.mxu0 %v1535
    %1752 = vmatpush.bf16.msra.mxu0 %v1519
    %1753 = vmatpush.bf16.msra.mxu0 %v1503
    %1754 = vmatpush.bf16.msra.mxu0 %v1487
    %1755 = vmatpush.bf16.msra.mxu0 %v1471
    %1756 = vmatpush.bf16.msra.mxu0 %v1455
    %1757 = vmatpush.bf16.msra.mxu0 %v1439
    %1758 = vmatpush.bf16.msra.mxu0 %v1423
    %1759 = vmatmul.bf16.gmra.mxu0 %v868
    %v1760 = vpop.f32.mrf.mxu0
    %v1761 = vadd.f32 %v1007, %v1760
    %v1762 = vpop.f32.mrf.mxu0
    %1763 = vdwg.mxu0
    %1764 = vmatpush.bf16.msra.mxu0 %v1536
    %1765 = vmatpush.bf16.msra.mxu0 %v1520
    %1766 = vmatpush.bf16.msra.mxu0 %v1504
    %1767 = vmatpush.bf16.msra.mxu0 %v1488
    %1768 = vmatpush.bf16.msra.mxu0 %v1472
    %1769 = vmatpush.bf16.msra.mxu0 %v1456
    %1770 = vmatpush.bf16.msra.mxu0 %v1440
    %1771 = vmatpush.bf16.msra.mxu0 %v1424
    %1772 = vmatmul.bf16.gmra.mxu0 %v868
    %v1773 = vpop.f32.mrf.mxu0
    %v1774 = vadd.f32 %v1008, %v1773
    %v1775 = vpop.f32.mrf.mxu0
    %1776 = vdwg.mxu0
    %1777 = vmatpush.bf16.msra.mxu0 %v1537
    %1778 = vmatpush.bf16.msra.mxu0 %v1521
    %1779 = vmatpush.bf16.msra.mxu0 %v1505
    %1780 = vmatpush.bf16.msra.mxu0 %v1489
    %1781 = vmatpush.bf16.msra.mxu0 %v1473
    %1782 = vmatpush.bf16.msra.mxu0 %v1457
    %1783 = vmatpush.bf16.msra.mxu0 %v1441
    %1784 = vmatpush.bf16.msra.mxu0 %v1425
    %1785 = vmatmul.bf16.gmra.mxu0 %v868
    %v1786 = vpop.f32.mrf.mxu0
    %v1787 = vadd.f32 %v1009, %v1786
    %v1788 = vpop.f32.mrf.mxu0
    %1789 = vdwg.mxu0
    %1790 = vmatpush.bf16.msra.mxu0 %v1538
    %1791 = vmatpush.bf16.msra.mxu0 %v1522
    %1792 = vmatpush.bf16.msra.mxu0 %v1506
    %1793 = vmatpush.bf16.msra.mxu0 %v1490
    %1794 = vmatpush.bf16.msra.mxu0 %v1474
    %1795 = vmatpush.bf16.msra.mxu0 %v1458
    %1796 = vmatpush.bf16.msra.mxu0 %v1442
    %1797 = vmatpush.bf16.msra.mxu0 %v1426
    %1798 = vmatmul.bf16.gmra.mxu0 %v868
    %v1799 = vpop.f32.mrf.mxu0
    %v1800 = vadd.f32 %v1010, %v1799
    %v1801 = vpop.f32.mrf.mxu0
    %1802 = vdwg.mxu0
    %1803 = vmatpush.bf16.msra.mxu0 %v1539
    %1804 = vmatpush.bf16.msra.mxu0 %v1523
    %1805 = vmatpush.bf16.msra.mxu0 %v1507
    %1806 = vmatpush.bf16.msra.mxu0 %v1491
    %1807 = vmatpush.bf16.msra.mxu0 %v1475
    %1808 = vmatpush.bf16.msra.mxu0 %v1459
    %1809 = vmatpush.bf16.msra.mxu0 %v1443
    %1810 = vmatpush.bf16.msra.mxu0 %v1427
    %1811 = vmatmul.bf16.gmra.mxu0 %v868
    %v1812 = vpop.f32.mrf.mxu0
    %v1813 = vadd.f32 %v1011, %v1812
    %v1814 = vpop.f32.mrf.mxu0
    %1815 = vdwg.mxu0
    %1816 = vmatpush.bf16.msra.mxu0 %v1540
    %1817 = vmatpush.bf16.msra.mxu0 %v1524
    %1818 = vmatpush.bf16.msra.mxu0 %v1508
    %1819 = vmatpush.bf16.msra.mxu0 %v1492
    %1820 = vmatpush.bf16.msra.mxu0 %v1476
    %1821 = vmatpush.bf16.msra.mxu0 %v1460
    %1822 = vmatpush.bf16.msra.mxu0 %v1444
    %1823 = vmatpush.bf16.msra.mxu0 %v1428
    %1824 = vmatmul.bf16.gmra.mxu0 %v868
    %v1825 = vpop.f32.mrf.mxu0
    %v1826 = vadd.f32 %v1012, %v1825
    %v1827 = vpop.f32.mrf.mxu0
    %1828 = vdwg.mxu0
    %1829 = vmatpush.bf16.msra.mxu0 %v1541
    %1830 = vmatpush.bf16.msra.mxu0 %v1525
    %1831 = vmatpush.bf16.msra.mxu0 %v1509
    %1832 = vmatpush.bf16.msra.mxu0 %v1493
    %1833 = vmatpush.bf16.msra.mxu0 %v1477
    %1834 = vmatpush.bf16.msra.mxu0 %v1461
    %1835 = vmatpush.bf16.msra.mxu0 %v1445
    %1836 = vmatpush.bf16.msra.mxu0 %v1429
    %1837 = vmatmul.bf16.gmra.mxu0 %v868
    %v1838 = vpop.f32.mrf.mxu0
    %v1839 = vadd.f32 %v1013, %v1838
    %v1840 = vpop.f32.mrf.mxu0
    %1841 = vdwg.mxu0
    %1842 = vmatpush.bf16.msra.mxu0 %v1542
    %1843 = vmatpush.bf16.msra.mxu0 %v1526
    %1844 = vmatpush.bf16.msra.mxu0 %v1510
    %1845 = vmatpush.bf16.msra.mxu0 %v1494
    %1846 = vmatpush.bf16.msra.mxu0 %v1478
    %1847 = vmatpush.bf16.msra.mxu0 %v1462
    %1848 = vmatpush.bf16.msra.mxu0 %v1446
    %1849 = vmatpush.bf16.msra.mxu0 %v1430
    %1850 = vmatmul.bf16.gmra.mxu0 %v868
    %v1851 = vpop.f32.mrf.mxu0
    %v1852 = vadd.f32 %v1014, %v1851
    %v1853 = vpop.f32.mrf.mxu0
    %1854 = vdwg.mxu0
    %1855 = vmatpush.bf16.msra.mxu0 %v1543
    %1856 = vmatpush.bf16.msra.mxu0 %v1527
    %1857 = vmatpush.bf16.msra.mxu0 %v1511
    %1858 = vmatpush.bf16.msra.mxu0 %v1495
    %1859 = vmatpush.bf16.msra.mxu0 %v1479
    %1860 = vmatpush.bf16.msra.mxu0 %v1463
    %1861 = vmatpush.bf16.msra.mxu0 %v1447
    %1862 = vmatpush.bf16.msra.mxu0 %v1431
    %1863 = vmatmul.bf16.gmra.mxu0 %v868
    %v1864 = vpop.f32.mrf.mxu0
    %v1865 = vadd.f32 %v1015, %v1864
    %v1866 = vpop.f32.mrf.mxu0
    %1867 = vdwg.mxu0
    %1868 = vmatpush.bf16.msra.mxu0 %v1544
    %1869 = vmatpush.bf16.msra.mxu0 %v1528
    %1870 = vmatpush.bf16.msra.mxu0 %v1512
    %1871 = vmatpush.bf16.msra.mxu0 %v1496
    %1872 = vmatpush.bf16.msra.mxu0 %v1480
    %1873 = vmatpush.bf16.msra.mxu0 %v1464
    %1874 = vmatpush.bf16.msra.mxu0 %v1448
    %1875 = vmatpush.bf16.msra.mxu0 %v1432
    %1876 = vmatmul.bf16.gmra.mxu0 %v868
    %v1877 = vpop.f32.mrf.mxu0
    %v1878 = vadd.f32 %v1016, %v1877
    %v1879 = vpop.f32.mrf.mxu0
    %1880 = vdwg.mxu0
    %v1881 = vmax.f32 %v1683, 0.0
    %v1882 = vmax.f32 %v1696, 0.0
    %v1883 = vmax.f32 %v1709, 0.0
    %v1884 = vmax.f32 %v1722, 0.0
    %v1885 = vmax.f32 %v1735, 0.0
    %v1886 = vmax.f32 %v1748, 0.0
    %v1887 = vmax.f32 %v1761, 0.0
    %v1888 = vmax.f32 %v1774, 0.0
    %v1889 = vmax.f32 %v1787, 0.0
    %v1890 = vmax.f32 %v1800, 0.0
    %v1891 = vmax.f32 %v1813, 0.0
    %v1892 = vmax.f32 %v1826, 0.0
    %v1893 = vmax.f32 %v1839, 0.0
    %v1894 = vmax.f32 %v1852, 0.0
    %v1895 = vmax.f32 %v1865, 0.0
    %v1896 = vmax.f32 %v1878, 0.0
    %v1897 = vpack.c.bf16 %v1883, %v1881
    %v1898 = vpack.c.bf16 %v1884, %v1882
    %v1899 = vpack.c.bf16 %v1887, %v1885
    %v1900 = vpack.c.bf16 %v1888, %v1886
    %v1901 = vpack.c.bf16 %v1891, %v1889
    %v1902 = vpack.c.bf16 %v1892, %v1890
    %v1903 = vpack.c.bf16 %v1895, %v1893
    %v1904 = vpack.c.bf16 %v1896, %v1894
    %v1905 = vld [vmem:[%s10] sm:$0xff]
    %v1906 = vld [vmem:[%s10 + $0x8] sm:$0xf]
    %v1907 = vld [vmem:[%s10 + $0xc] sm:$0xff]
    %v1908 = vld [vmem:[%s10 + $0x14] sm:$0xf]
    %v1909 = vld [vmem:[%s10 + $0x18] sm:$0xff]
    %v1910 = vld [vmem:[%s10 + $0x20] sm:$0xf]
    %v1911 = vld [vmem:[%s10 + $0x24] sm:$0xff]
    %v1912 = vld [vmem:[%s10 + $0x2c] sm:$0xf]
    %v1913 = vld [vmem:[%s10 + $0x30] sm:$0xff]
    %v1914 = vld [vmem:[%s10 + $0x38] sm:$0xf]
    %v1915 = vld [vmem:[%s10 + $0x3c] sm:$0xff]
    %v1916 = vld [vmem:[%s10 + $0x44] sm:$0xf]
    %v1917 = vld [vmem:[%s10 + $0x48] sm:$0xff]
    %v1918 = vld [vmem:[%s10 + $0x50] sm:$0xf]
    %v1919 = vld [vmem:[%s10 + $0x54] sm:$0xff]
    %v1920 = vld [vmem:[%s10 + $0x5c] sm:$0xf]
    %v1921 = vld [vmem:[%s10 + $0x60] sm:$0xff]
    %v1922 = vld [vmem:[%s10 + $0x68] sm:$0xf]
    %v1923 = vld [vmem:[%s10 + $0x6c] sm:$0xff]
    %v1924 = vld [vmem:[%s10 + $0x74] sm:$0xf]
    %v1925 = vld [vmem:[%s10 + $0x78] sm:$0xff]
    %v1926 = vld [vmem:[%s10 + $0x80] sm:$0xf]
    %v1927 = vld [vmem:[%s10 + $0x84] sm:$0xff]
    %v1928 = vld [vmem:[%s10 + $0x8c] sm:$0xf]
    %v1929 = vld [vmem:[%s10 + $0x90] sm:$0xff]
    %v1930 = vld [vmem:[%s10 + $0x98] sm:$0xf]
    %v1931 = vld [vmem:[%s10 + $0x9c] sm:$0xff]
    %v1932 = vld [vmem:[%s10 + $0xa4] sm:$0xf]
    %v1933 = vld [vmem:[%s10 + $0xa8] sm:$0xff]
    %v1934 = vld [vmem:[%s10 + $0xb0] sm:$0xf]
    %v1935 = vld [vmem:[%s10 + $0xb4] sm:$0xff]
    %v1936 = vld [vmem:[%s10 + $0xbc] sm:$0xf]
    %v1937 = vld [vmem:[%s10 + $0xc0] sm:$0xff]
    %v1938 = vld [vmem:[%s10 + $0xc8] sm:$0xf]
    %v1939 = vld [vmem:[%s10 + $0xcc] sm:$0xff]
    %v1940 = vld [vmem:[%s10 + $0xd4] sm:$0xf]
    %v1941 = vld [vmem:[%s10 + $0xd8] sm:$0xff]
    %v1942 = vld [vmem:[%s10 + $0xe0] sm:$0xf]
    %v1943 = vld [vmem:[%s10 + $0xe4] sm:$0xff]
    %v1944 = vld [vmem:[%s10 + $0xec] sm:$0xf]
    %v1945 = vld [vmem:[%s10 + $0xf0] sm:$0xff]
    %v1946 = vld [vmem:[%s10 + $0xf8] sm:$0xf]
    %v1947 = vld [vmem:[%s10 + $0xfc] sm:$0xff]
    %v1948 = vld [vmem:[%s10 + $0x104] sm:$0xf]
    %v1949 = vld [vmem:[%s10 + $0x108] sm:$0xff]
    %v1950 = vld [vmem:[%s10 + $0x110] sm:$0xf]
    %v1951 = vld [vmem:[%s10 + $0x114] sm:$0xff]
    %v1952 = vld [vmem:[%s10 + $0x11c] sm:$0xf]
    %v1953 = vld [vmem:[%s10 + $0x120] sm:$0xff]
    %v1954 = vld [vmem:[%s10 + $0x128] sm:$0xf]
    %v1955 = vld [vmem:[%s10 + $0x12c] sm:$0xff]
    %v1956 = vld [vmem:[%s10 + $0x134] sm:$0xf]
    %v1957 = vld [vmem:[%s10 + $0x138] sm:$0xff]
    %v1958 = vld [vmem:[%s10 + $0x140] sm:$0xf]
    %v1959 = vld [vmem:[%s10 + $0x144] sm:$0xff]
    %v1960 = vld [vmem:[%s10 + $0x14c] sm:$0xf]
    %v1961 = vld [vmem:[%s10 + $0x150] sm:$0xff]
    %v1962 = vld [vmem:[%s10 + $0x158] sm:$0xf]
    %v1963 = vld [vmem:[%s10 + $0x15c] sm:$0xff]
    %v1964 = vld [vmem:[%s10 + $0x164] sm:$0xf]
    %v1965 = vld [vmem:[%s10 + $0x168] sm:$0xff]
    %v1966 = vld [vmem:[%s10 + $0x170] sm:$0xf]
    %v1967 = vld [vmem:[%s10 + $0x174] sm:$0xff]
    %v1968 = vld [vmem:[%s10 + $0x17c] sm:$0xf]
    %v2033 = vunpack.c.l.b16 %v1905
    %v2034 = vunpack.c.h.b16 %v1905
    %v2035 = vunpack.c.l.b16 %v1906
    %v2036 = vunpack.c.l.b16 %v1907
    %v2037 = vunpack.c.h.b16 %v1907
    %v2038 = vunpack.c.l.b16 %v1908
    %v2039 = vunpack.c.l.b16 %v1909
    %v2040 = vunpack.c.h.b16 %v1909
    %v2041 = vunpack.c.l.b16 %v1910
    %v2042 = vunpack.c.l.b16 %v1911
    %v2043 = vunpack.c.h.b16 %v1911
    %v2044 = vunpack.c.l.b16 %v1912
    %v2045 = vunpack.c.l.b16 %v1913
    %v2046 = vunpack.c.h.b16 %v1913
    %v2047 = vunpack.c.l.b16 %v1914
    %v2048 = vunpack.c.l.b16 %v1915
    %v2049 = vunpack.c.h.b16 %v1915
    %v2050 = vunpack.c.l.b16 %v1916
    %v2051 = vunpack.c.l.b16 %v1917
    %v2052 = vunpack.c.h.b16 %v1917
    %v2053 = vunpack.c.l.b16 %v1918
    %v2054 = vunpack.c.l.b16 %v1919
    %v2055 = vunpack.c.h.b16 %v1919
    %v2056 = vunpack.c.l.b16 %v1920
    %v2057 = vunpack.c.l.b16 %v1921
    %v2058 = vunpack.c.h.b16 %v1921
    %v2059 = vunpack.c.l.b16 %v1922
    %v2060 = vunpack.c.l.b16 %v1923
    %v2061 = vunpack.c.h.b16 %v1923
    %v2062 = vunpack.c.l.b16 %v1924
    %v2063 = vunpack.c.l.b16 %v1925
    %v2064 = vunpack.c.h.b16 %v1925
    %v2065 = vunpack.c.l.b16 %v1926
    %v2066 = vunpack.c.l.b16 %v1927
    %v2067 = vunpack.c.h.b16 %v1927
    %v2068 = vunpack.c.l.b16 %v1928
    %v2069 = vunpack.c.l.b16 %v1929
    %v2070 = vunpack.c.h.b16 %v1929
    %v2071 = vunpack.c.l.b16 %v1930
    %v2072 = vunpack.c.l.b16 %v1931
    %v2073 = vunpack.c.h.b16 %v1931
    %v2074 = vunpack.c.l.b16 %v1932
    %v2075 = vunpack.c.l.b16 %v1933
    %v2076 = vunpack.c.h.b16 %v1933
    %v2077 = vunpack.c.l.b16 %v1934
    %v2078 = vunpack.c.l.b16 %v1935
    %v2079 = vunpack.c.h.b16 %v1935
    %v2080 = vunpack.c.l.b16 %v1936
    %v2081 = vunpack.c.l.b16 %v1937
    %v2082 = vunpack.c.h.b16 %v1937
    %v2083 = vunpack.c.l.b16 %v1938
    %v2084 = vunpack.c.l.b16 %v1939
    %v2085 = vunpack.c.h.b16 %v1939
    %v2086 = vunpack.c.l.b16 %v1940
    %v2087 = vunpack.c.l.b16 %v1941
    %v2088 = vunpack.c.h.b16 %v1941
    %v2089 = vunpack.c.l.b16 %v1942
    %v2090 = vunpack.c.l.b16 %v1943
    %v2091 = vunpack.c.h.b16 %v1943
    %v2092 = vunpack.c.l.b16 %v1944
    %v2093 = vunpack.c.l.b16 %v1945
    %v2094 = vunpack.c.h.b16 %v1945
    %v2095 = vunpack.c.l.b16 %v1946
    %v2096 = vunpack.c.l.b16 %v1947
    %v2097 = vunpack.c.h.b16 %v1947
    %v2098 = vunpack.c.l.b16 %v1948
    %v2099 = vunpack.c.l.b16 %v1949
    %v2100 = vunpack.c.h.b16 %v1949
    %v2101 = vunpack.c.l.b16 %v1950
    %v2102 = vunpack.c.l.b16 %v1951
    %v2103 = vunpack.c.h.b16 %v1951
    %v2104 = vunpack.c.l.b16 %v1952
    %v2105 = vunpack.c.l.b16 %v1953
    %v2106 = vunpack.c.h.b16 %v1953
    %v2107 = vunpack.c.l.b16 %v1954
    %v2108 = vunpack.c.l.b16 %v1955
    %v2109 = vunpack.c.h.b16 %v1955
    %v2110 = vunpack.c.l.b16 %v1956
    %v2111 = vunpack.c.l.b16 %v1957
    %v2112 = vunpack.c.h.b16 %v1957
    %v2113 = vunpack.c.l.b16 %v1958
    %v2114 = vunpack.c.l.b16 %v1959
    %v2115 = vunpack.c.h.b16 %v1959
    %v2116 = vunpack.c.l.b16 %v1960
    %v2117 = vunpack.c.l.b16 %v1961
    %v2118 = vunpack.c.h.b16 %v1961
    %v2119 = vunpack.c.l.b16 %v1962
    %v2120 = vunpack.c.l.b16 %v1963
    %v2121 = vunpack.c.h.b16 %v1963
    %v2122 = vunpack.c.l.b16 %v1964
    %v2123 = vunpack.c.l.b16 %v1965
    %v2124 = vunpack.c.h.b16 %v1965
    %v2125 = vunpack.c.l.b16 %v1966
    %v2126 = vunpack.c.l.b16 %v1967
    %v2127 = vunpack.c.h.b16 %v1967
    %v2128 = vunpack.c.l.b16 %v1968
    %v2129 = vpack.c.b16 %v2036, %v2033
    %v2130 = vpack.c.b16 %v2037, %v2034
    %v2131 = vpack.c.b16 %v2038, %v2035
    %v2132 = vpack.c.b16 %v2042, %v2039
    %v2133 = vpack.c.b16 %v2043, %v2040
    %v2134 = vpack.c.b16 %v2044, %v2041
    %v2135 = vpack.c.b16 %v2048, %v2045
    %v2136 = vpack.c.b16 %v2049, %v2046
    %v2137 = vpack.c.b16 %v2050, %v2047
    %v2138 = vpack.c.b16 %v2054, %v2051
    %v2139 = vpack.c.b16 %v2055, %v2052
    %v2140 = vpack.c.b16 %v2056, %v2053
    %v2141 = vpack.c.b16 %v2060, %v2057
    %v2142 = vpack.c.b16 %v2061, %v2058
    %v2143 = vpack.c.b16 %v2062, %v2059
    %v2144 = vpack.c.b16 %v2066, %v2063
    %v2145 = vpack.c.b16 %v2067, %v2064
    %v2146 = vpack.c.b16 %v2068, %v2065
    %v2147 = vpack.c.b16 %v2072, %v2069
    %v2148 = vpack.c.b16 %v2073, %v2070
    %v2149 = vpack.c.b16 %v2074, %v2071
    %v2150 = vpack.c.b16 %v2078, %v2075
    %v2151 = vpack.c.b16 %v2079, %v2076
    %v2152 = vpack.c.b16 %v2080, %v2077
    %v2153 = vpack.c.b16 %v2084, %v2081
    %v2154 = vpack.c.b16 %v2085, %v2082
    %v2155 = vpack.c.b16 %v2086, %v2083
    %v2156 = vpack.c.b16 %v2090, %v2087
    %v2157 = vpack.c.b16 %v2091, %v2088
    %v2158 = vpack.c.b16 %v2092, %v2089
    %v2159 = vpack.c.b16 %v2096, %v2093
    %v2160 = vpack.c.b16 %v2097, %v2094
    %v2161 = vpack.c.b16 %v2098, %v2095
    %v2162 = vpack.c.b16 %v2102, %v2099
    %v2163 = vpack.c.b16 %v2103, %v2100
    %v2164 = vpack.c.b16 %v2104, %v2101
    %v2165 = vpack.c.b16 %v2108, %v2105
    %v2166 = vpack.c.b16 %v2109, %v2106
    %v2167 = vpack.c.b16 %v2110, %v2107
    %v2168 = vpack.c.b16 %v2114, %v2111
    %v2169 = vpack.c.b16 %v2115, %v2112
    %v2170 = vpack.c.b16 %v2116, %v2113
    %v2171 = vpack.c.b16 %v2120, %v2117
    %v2172 = vpack.c.b16 %v2121, %v2118
    %v2173 = vpack.c.b16 %v2122, %v2119
    %v2174 = vpack.c.b16 %v2126, %v2123
    %v2175 = vpack.c.b16 %v2127, %v2124
    %v2176 = vpack.c.b16 %v2128, %v2125
    %2225 = vmatpush.bf16.msra.mxu0 %v2150
    %2226 = vmatpush.bf16.msra.mxu0 %v2147
    %2227 = vmatpush.bf16.msra.mxu0 %v2144
    %2228 = vmatpush.bf16.msra.mxu0 %v2141
    %2229 = vmatpush.bf16.msra.mxu0 %v2138
    %2230 = vmatpush.bf16.msra.mxu0 %v2135
    %2231 = vmatpush.bf16.msra.mxu0 %v2132
    %2232 = vmatpush.bf16.msra.mxu0 %v2129
    %2233 = vmatmul.bf16.gmra.mxu0 %v1897
    %v2234 = vpop.f32.mrf.mxu0
    %v2235 = vadd.f32 0.0, %v2234
    %v2236 = vpop.f32.mrf.mxu0
    %v2237 = vadd.f32 0.0, %v2236
    %2238 = vmatmul.bf16.gmra.mxu0 %v1899
    %v2239 = vpop.f32.mrf.mxu0
    %v2240 = vadd.f32 0.0, %v2239
    %v2241 = vpop.f32.mrf.mxu0
    %v2242 = vadd.f32 0.0, %v2241
    %2243 = vmatmul.bf16.gmra.mxu0 %v1901
    %v2244 = vpop.f32.mrf.mxu0
    %v2245 = vadd.f32 0.0, %v2244
    %v2246 = vpop.f32.mrf.mxu0
    %v2247 = vadd.f32 0.0, %v2246
    %2248 = vmatmul.bf16.gmra.mxu0 %v1903
    %v2249 = vpop.f32.mrf.mxu0
    %v2250 = vadd.f32 0.0, %v2249
    %v2251 = vpop.f32.mrf.mxu0
    %v2252 = vadd.f32 0.0, %v2251
    %2253 = vdwg.mxu0
    %2254 = vmatpush.bf16.msra.mxu0 %v2174
    %2255 = vmatpush.bf16.msra.mxu0 %v2171
    %2256 = vmatpush.bf16.msra.mxu0 %v2168
    %2257 = vmatpush.bf16.msra.mxu0 %v2165
    %2258 = vmatpush.bf16.msra.mxu0 %v2162
    %2259 = vmatpush.bf16.msra.mxu0 %v2159
    %2260 = vmatpush.bf16.msra.mxu0 %v2156
    %2261 = vmatpush.bf16.msra.mxu0 %v2153
    %2262 = vmatmul.bf16.gmra.mxu0 %v1898
    %v2263 = vpop.f32.mrf.mxu0
    %v2264 = vadd.f32 %v2235, %v2263
    %v2265 = vpop.f32.mrf.mxu0
    %v2266 = vadd.f32 %v2237, %v2265
    %2267 = vmatmul.bf16.gmra.mxu0 %v1900
    %v2268 = vpop.f32.mrf.mxu0
    %v2269 = vadd.f32 %v2240, %v2268
    %v2270 = vpop.f32.mrf.mxu0
    %v2271 = vadd.f32 %v2242, %v2270
    %2272 = vmatmul.bf16.gmra.mxu0 %v1902
    %v2273 = vpop.f32.mrf.mxu0
    %v2274 = vadd.f32 %v2245, %v2273
    %v2275 = vpop.f32.mrf.mxu0
    %v2276 = vadd.f32 %v2247, %v2275
    %2277 = vmatmul.bf16.gmra.mxu0 %v1904
    %v2278 = vpop.f32.mrf.mxu0
    %v2279 = vadd.f32 %v2250, %v2278
    %v2280 = vpop.f32.mrf.mxu0
    %v2281 = vadd.f32 %v2252, %v2280
    %2282 = vdwg.mxu0
    %2283 = vmatpush.bf16.msra.mxu0 %v2151
    %2284 = vmatpush.bf16.msra.mxu0 %v2148
    %2285 = vmatpush.bf16.msra.mxu0 %v2145
    %2286 = vmatpush.bf16.msra.mxu0 %v2142
    %2287 = vmatpush.bf16.msra.mxu0 %v2139
    %2288 = vmatpush.bf16.msra.mxu0 %v2136
    %2289 = vmatpush.bf16.msra.mxu0 %v2133
    %2290 = vmatpush.bf16.msra.mxu0 %v2130
    %2291 = vmatmul.bf16.gmra.mxu0 %v1897
    %v2292 = vpop.f32.mrf.mxu0
    %v2293 = vadd.f32 0.0, %v2292
    %v2294 = vpop.f32.mrf.mxu0
    %v2295 = vadd.f32 0.0, %v2294
    %2296 = vmatmul.bf16.gmra.mxu0 %v1899
    %v2297 = vpop.f32.mrf.mxu0
    %v2298 = vadd.f32 0.0, %v2297
    %v2299 = vpop.f32.mrf.mxu0
    %v2300 = vadd.f32 0.0, %v2299
    %2301 = vmatmul.bf16.gmra.mxu0 %v1901
    %v2302 = vpop.f32.mrf.mxu0
    %v2303 = vadd.f32 0.0, %v2302
    %v2304 = vpop.f32.mrf.mxu0
    %v2305 = vadd.f32 0.0, %v2304
    %2306 = vmatmul.bf16.gmra.mxu0 %v1903
    %v2307 = vpop.f32.mrf.mxu0
    %v2308 = vadd.f32 0.0, %v2307
    %v2309 = vpop.f32.mrf.mxu0
    %v2310 = vadd.f32 0.0, %v2309
    %2311 = vdwg.mxu0
    %2312 = vmatpush.bf16.msra.mxu0 %v2175
    %2313 = vmatpush.bf16.msra.mxu0 %v2172
    %2314 = vmatpush.bf16.msra.mxu0 %v2169
    %2315 = vmatpush.bf16.msra.mxu0 %v2166
    %2316 = vmatpush.bf16.msra.mxu0 %v2163
    %2317 = vmatpush.bf16.msra.mxu0 %v2160
    %2318 = vmatpush.bf16.msra.mxu0 %v2157
    %2319 = vmatpush.bf16.msra.mxu0 %v2154
    %2320 = vmatmul.bf16.gmra.mxu0 %v1898
    %v2321 = vpop.f32.mrf.mxu0
    %v2322 = vadd.f32 %v2293, %v2321
    %v2323 = vpop.f32.mrf.mxu0
    %v2324 = vadd.f32 %v2295, %v2323
    %2325 = vmatmul.bf16.gmra.mxu0 %v1900
    %v2326 = vpop.f32.mrf.mxu0
    %v2327 = vadd.f32 %v2298, %v2326
    %v2328 = vpop.f32.mrf.mxu0
    %v2329 = vadd.f32 %v2300, %v2328
    %2330 = vmatmul.bf16.gmra.mxu0 %v1902
    %v2331 = vpop.f32.mrf.mxu0
    %v2332 = vadd.f32 %v2303, %v2331
    %v2333 = vpop.f32.mrf.mxu0
    %v2334 = vadd.f32 %v2305, %v2333
    %2335 = vmatmul.bf16.gmra.mxu0 %v1904
    %v2336 = vpop.f32.mrf.mxu0
    %v2337 = vadd.f32 %v2308, %v2336
    %v2338 = vpop.f32.mrf.mxu0
    %v2339 = vadd.f32 %v2310, %v2338
    %2340 = vdwg.mxu0
    %2341 = vmatpush.bf16.msra.mxu0 %v2152
    %2342 = vmatpush.bf16.msra.mxu0 %v2149
    %2343 = vmatpush.bf16.msra.mxu0 %v2146
    %2344 = vmatpush.bf16.msra.mxu0 %v2143
    %2345 = vmatpush.bf16.msra.mxu0 %v2140
    %2346 = vmatpush.bf16.msra.mxu0 %v2137
    %2347 = vmatpush.bf16.msra.mxu0 %v2134
    %2348 = vmatpush.bf16.msra.mxu0 %v2131
    %2349 = vmatmul.bf16.gmra.mxu0 %v1897
    %v2350 = vpop.f32.mrf.mxu0
    %v2351 = vadd.f32 0.0, %v2350
    %v2352 = vpop.f32.mrf.mxu0
    %v2353 = vadd.f32 0.0, %v2352
    %2354 = vmatmul.bf16.gmra.mxu0 %v1899
    %v2355 = vpop.f32.mrf.mxu0
    %v2356 = vadd.f32 0.0, %v2355
    %v2357 = vpop.f32.mrf.mxu0
    %v2358 = vadd.f32 0.0, %v2357
    %2359 = vmatmul.bf16.gmra.mxu0 %v1901
    %v2360 = vpop.f32.mrf.mxu0
    %v2361 = vadd.f32 0.0, %v2360
    %v2362 = vpop.f32.mrf.mxu0
    %v2363 = vadd.f32 0.0, %v2362
    %2364 = vmatmul.bf16.gmra.mxu0 %v1903
    %v2365 = vpop.f32.mrf.mxu0
    %v2366 = vadd.f32 0.0, %v2365
    %v2367 = vpop.f32.mrf.mxu0
    %v2368 = vadd.f32 0.0, %v2367
    %2369 = vdwg.mxu0
    %2370 = vmatpush.bf16.msra.mxu0 %v2176
    %2371 = vmatpush.bf16.msra.mxu0 %v2173
    %2372 = vmatpush.bf16.msra.mxu0 %v2170
    %2373 = vmatpush.bf16.msra.mxu0 %v2167
    %2374 = vmatpush.bf16.msra.mxu0 %v2164
    %2375 = vmatpush.bf16.msra.mxu0 %v2161
    %2376 = vmatpush.bf16.msra.mxu0 %v2158
    %2377 = vmatpush.bf16.msra.mxu0 %v2155
    %2378 = vmatmul.bf16.gmra.mxu0 %v1898
    %v2379 = vpop.f32.mrf.mxu0
    %v2380 = vadd.f32 %v2351, %v2379
    %v2381 = vpop.f32.mrf.mxu0
    %v2382 = vadd.f32 %v2353, %v2381
    %2383 = vmatmul.bf16.gmra.mxu0 %v1900
    %v2384 = vpop.f32.mrf.mxu0
    %v2385 = vadd.f32 %v2356, %v2384
    %v2386 = vpop.f32.mrf.mxu0
    %v2387 = vadd.f32 %v2358, %v2386
    %2388 = vmatmul.bf16.gmra.mxu0 %v1902
    %v2389 = vpop.f32.mrf.mxu0
    %v2390 = vadd.f32 %v2361, %v2389
    %v2391 = vpop.f32.mrf.mxu0
    %v2392 = vadd.f32 %v2363, %v2391
    %2393 = vmatmul.bf16.gmra.mxu0 %v1904
    %v2394 = vpop.f32.mrf.mxu0
    %v2395 = vadd.f32 %v2366, %v2394
    %v2396 = vpop.f32.mrf.mxu0
    %v2397 = vadd.f32 %v2368, %v2396
    %2398 = vdwg.mxu0
    %s2399 = scalar_lea.vmem %s10, 384
    %v2400 = vld [vmem:[%s2399] sm:$0xff]
    %v2401 = vld [vmem:[%s2399 + $0x8] sm:$0xf]
    %v2402 = vld [vmem:[%s2399 + $0xc] sm:$0xff]
    %v2403 = vld [vmem:[%s2399 + $0x14] sm:$0xf]
    %v2404 = vld [vmem:[%s2399 + $0x18] sm:$0xff]
    %v2405 = vld [vmem:[%s2399 + $0x20] sm:$0xf]
    %v2406 = vld [vmem:[%s2399 + $0x24] sm:$0xff]
    %v2407 = vld [vmem:[%s2399 + $0x2c] sm:$0xf]
    %v2408 = vld [vmem:[%s2399 + $0x30] sm:$0xff]
    %v2409 = vld [vmem:[%s2399 + $0x38] sm:$0xf]
    %v2410 = vld [vmem:[%s2399 + $0x3c] sm:$0xff]
    %v2411 = vld [vmem:[%s2399 + $0x44] sm:$0xf]
    %v2412 = vld [vmem:[%s2399 + $0x48] sm:$0xff]
    %v2413 = vld [vmem:[%s2399 + $0x50] sm:$0xf]
    %v2414 = vld [vmem:[%s2399 + $0x54] sm:$0xff]
    %v2415 = vld [vmem:[%s2399 + $0x5c] sm:$0xf]
    %v2416 = vld [vmem:[%s2399 + $0x60] sm:$0xff]
    %v2417 = vld [vmem:[%s2399 + $0x68] sm:$0xf]
    %v2418 = vld [vmem:[%s2399 + $0x6c] sm:$0xff]
    %v2419 = vld [vmem:[%s2399 + $0x74] sm:$0xf]
    %v2420 = vld [vmem:[%s2399 + $0x78] sm:$0xff]
    %v2421 = vld [vmem:[%s2399 + $0x80] sm:$0xf]
    %v2422 = vld [vmem:[%s2399 + $0x84] sm:$0xff]
    %v2423 = vld [vmem:[%s2399 + $0x8c] sm:$0xf]
    %v2424 = vld [vmem:[%s2399 + $0x90] sm:$0xff]
    %v2425 = vld [vmem:[%s2399 + $0x98] sm:$0xf]
    %v2426 = vld [vmem:[%s2399 + $0x9c] sm:$0xff]
    %v2427 = vld [vmem:[%s2399 + $0xa4] sm:$0xf]
    %v2428 = vld [vmem:[%s2399 + $0xa8] sm:$0xff]
    %v2429 = vld [vmem:[%s2399 + $0xb0] sm:$0xf]
    %v2430 = vld [vmem:[%s2399 + $0xb4] sm:$0xff]
    %v2431 = vld [vmem:[%s2399 + $0xbc] sm:$0xf]
    %v2432 = vld [vmem:[%s2399 + $0xc0] sm:$0xff]
    %v2433 = vld [vmem:[%s2399 + $0xc8] sm:$0xf]
    %v2434 = vld [vmem:[%s2399 + $0xcc] sm:$0xff]
    %v2435 = vld [vmem:[%s2399 + $0xd4] sm:$0xf]
    %v2436 = vld [vmem:[%s2399 + $0xd8] sm:$0xff]
    %v2437 = vld [vmem:[%s2399 + $0xe0] sm:$0xf]
    %v2438 = vld [vmem:[%s2399 + $0xe4] sm:$0xff]
    %v2439 = vld [vmem:[%s2399 + $0xec] sm:$0xf]
    %v2440 = vld [vmem:[%s2399 + $0xf0] sm:$0xff]
    %v2441 = vld [vmem:[%s2399 + $0xf8] sm:$0xf]
    %v2442 = vld [vmem:[%s2399 + $0xfc] sm:$0xff]
    %v2443 = vld [vmem:[%s2399 + $0x104] sm:$0xf]
    %v2444 = vld [vmem:[%s2399 + $0x108] sm:$0xff]
    %v2445 = vld [vmem:[%s2399 + $0x110] sm:$0xf]
    %v2446 = vld [vmem:[%s2399 + $0x114] sm:$0xff]
    %v2447 = vld [vmem:[%s2399 + $0x11c] sm:$0xf]
    %v2448 = vld [vmem:[%s2399 + $0x120] sm:$0xff]
    %v2449 = vld [vmem:[%s2399 + $0x128] sm:$0xf]
    %v2450 = vld [vmem:[%s2399 + $0x12c] sm:$0xff]
    %v2451 = vld [vmem:[%s2399 + $0x134] sm:$0xf]
    %v2452 = vld [vmem:[%s2399 + $0x138] sm:$0xff]
    %v2453 = vld [vmem:[%s2399 + $0x140] sm:$0xf]
    %v2454 = vld [vmem:[%s2399 + $0x144] sm:$0xff]
    %v2455 = vld [vmem:[%s2399 + $0x14c] sm:$0xf]
    %v2456 = vld [vmem:[%s2399 + $0x150] sm:$0xff]
    %v2457 = vld [vmem:[%s2399 + $0x158] sm:$0xf]
    %v2458 = vld [vmem:[%s2399 + $0x15c] sm:$0xff]
    %v2459 = vld [vmem:[%s2399 + $0x164] sm:$0xf]
    %v2460 = vld [vmem:[%s2399 + $0x168] sm:$0xff]
    %v2461 = vld [vmem:[%s2399 + $0x170] sm:$0xf]
    %v2462 = vld [vmem:[%s2399 + $0x174] sm:$0xff]
    %v2463 = vld [vmem:[%s2399 + $0x17c] sm:$0xf]
    %v2528 = vunpack.c.l.b16 %v2400
    %v2529 = vunpack.c.h.b16 %v2400
    %v2530 = vunpack.c.l.b16 %v2401
    %v2531 = vunpack.c.l.b16 %v2402
    %v2532 = vunpack.c.h.b16 %v2402
    %v2533 = vunpack.c.l.b16 %v2403
    %v2534 = vunpack.c.l.b16 %v2404
    %v2535 = vunpack.c.h.b16 %v2404
    %v2536 = vunpack.c.l.b16 %v2405
    %v2537 = vunpack.c.l.b16 %v2406
    %v2538 = vunpack.c.h.b16 %v2406
    %v2539 = vunpack.c.l.b16 %v2407
    %v2540 = vunpack.c.l.b16 %v2408
    %v2541 = vunpack.c.h.b16 %v2408
    %v2542 = vunpack.c.l.b16 %v2409
    %v2543 = vunpack.c.l.b16 %v2410
    %v2544 = vunpack.c.h.b16 %v2410
    %v2545 = vunpack.c.l.b16 %v2411
    %v2546 = vunpack.c.l.b16 %v2412
    %v2547 = vunpack.c.h.b16 %v2412
    %v2548 = vunpack.c.l.b16 %v2413
    %v2549 = vunpack.c.l.b16 %v2414
    %v2550 = vunpack.c.h.b16 %v2414
    %v2551 = vunpack.c.l.b16 %v2415
    %v2552 = vunpack.c.l.b16 %v2416
    %v2553 = vunpack.c.h.b16 %v2416
    %v2554 = vunpack.c.l.b16 %v2417
    %v2555 = vunpack.c.l.b16 %v2418
    %v2556 = vunpack.c.h.b16 %v2418
    %v2557 = vunpack.c.l.b16 %v2419
    %v2558 = vunpack.c.l.b16 %v2420
    %v2559 = vunpack.c.h.b16 %v2420
    %v2560 = vunpack.c.l.b16 %v2421
    %v2561 = vunpack.c.l.b16 %v2422
    %v2562 = vunpack.c.h.b16 %v2422
    %v2563 = vunpack.c.l.b16 %v2423
    %v2564 = vunpack.c.l.b16 %v2424
    %v2565 = vunpack.c.h.b16 %v2424
    %v2566 = vunpack.c.l.b16 %v2425
    %v2567 = vunpack.c.l.b16 %v2426
    %v2568 = vunpack.c.h.b16 %v2426
    %v2569 = vunpack.c.l.b16 %v2427
    %v2570 = vunpack.c.l.b16 %v2428
    %v2571 = vunpack.c.h.b16 %v2428
    %v2572 = vunpack.c.l.b16 %v2429
    %v2573 = vunpack.c.l.b16 %v2430
    %v2574 = vunpack.c.h.b16 %v2430
    %v2575 = vunpack.c.l.b16 %v2431
    %v2576 = vunpack.c.l.b16 %v2432
    %v2577 = vunpack.c.h.b16 %v2432
    %v2578 = vunpack.c.l.b16 %v2433
    %v2579 = vunpack.c.l.b16 %v2434
    %v2580 = vunpack.c.h.b16 %v2434
    %v2581 = vunpack.c.l.b16 %v2435
    %v2582 = vunpack.c.l.b16 %v2436
    %v2583 = vunpack.c.h.b16 %v2436
    %v2584 = vunpack.c.l.b16 %v2437
    %v2585 = vunpack.c.l.b16 %v2438
    %v2586 = vunpack.c.h.b16 %v2438
    %v2587 = vunpack.c.l.b16 %v2439
    %v2588 = vunpack.c.l.b16 %v2440
    %v2589 = vunpack.c.h.b16 %v2440
    %v2590 = vunpack.c.l.b16 %v2441
    %v2591 = vunpack.c.l.b16 %v2442
    %v2592 = vunpack.c.h.b16 %v2442
    %v2593 = vunpack.c.l.b16 %v2443
    %v2594 = vunpack.c.l.b16 %v2444
    %v2595 = vunpack.c.h.b16 %v2444
    %v2596 = vunpack.c.l.b16 %v2445
    %v2597 = vunpack.c.l.b16 %v2446
    %v2598 = vunpack.c.h.b16 %v2446
    %v2599 = vunpack.c.l.b16 %v2447
    %v2600 = vunpack.c.l.b16 %v2448
    %v2601 = vunpack.c.h.b16 %v2448
    %v2602 = vunpack.c.l.b16 %v2449
    %v2603 = vunpack.c.l.b16 %v2450
    %v2604 = vunpack.c.h.b16 %v2450
    %v2605 = vunpack.c.l.b16 %v2451
    %v2606 = vunpack.c.l.b16 %v2452
    %v2607 = vunpack.c.h.b16 %v2452
    %v2608 = vunpack.c.l.b16 %v2453
    %v2609 = vunpack.c.l.b16 %v2454
    %v2610 = vunpack.c.h.b16 %v2454
    %v2611 = vunpack.c.l.b16 %v2455
    %v2612 = vunpack.c.l.b16 %v2456
    %v2613 = vunpack.c.h.b16 %v2456
    %v2614 = vunpack.c.l.b16 %v2457
    %v2615 = vunpack.c.l.b16 %v2458
    %v2616 = vunpack.c.h.b16 %v2458
    %v2617 = vunpack.c.l.b16 %v2459
    %v2618 = vunpack.c.l.b16 %v2460
    %v2619 = vunpack.c.h.b16 %v2460
    %v2620 = vunpack.c.l.b16 %v2461
    %v2621 = vunpack.c.l.b16 %v2462
    %v2622 = vunpack.c.h.b16 %v2462
    %v2623 = vunpack.c.l.b16 %v2463
    %v2624 = vpack.c.b16 %v2531, %v2528
    %v2625 = vpack.c.b16 %v2532, %v2529
    %v2626 = vpack.c.b16 %v2533, %v2530
    %v2627 = vpack.c.b16 %v2537, %v2534
    %v2628 = vpack.c.b16 %v2538, %v2535
    %v2629 = vpack.c.b16 %v2539, %v2536
    %v2630 = vpack.c.b16 %v2543, %v2540
    %v2631 = vpack.c.b16 %v2544, %v2541
    %v2632 = vpack.c.b16 %v2545, %v2542
    %v2633 = vpack.c.b16 %v2549, %v2546
    %v2634 = vpack.c.b16 %v2550, %v2547
    %v2635 = vpack.c.b16 %v2551, %v2548
    %v2636 = vpack.c.b16 %v2555, %v2552
    %v2637 = vpack.c.b16 %v2556, %v2553
    %v2638 = vpack.c.b16 %v2557, %v2554
    %v2639 = vpack.c.b16 %v2561, %v2558
    %v2640 = vpack.c.b16 %v2562, %v2559
    %v2641 = vpack.c.b16 %v2563, %v2560
    %v2642 = vpack.c.b16 %v2567, %v2564
    %v2643 = vpack.c.b16 %v2568, %v2565
    %v2644 = vpack.c.b16 %v2569, %v2566
    %v2645 = vpack.c.b16 %v2573, %v2570
    %v2646 = vpack.c.b16 %v2574, %v2571
    %v2647 = vpack.c.b16 %v2575, %v2572
    %v2648 = vpack.c.b16 %v2579, %v2576
    %v2649 = vpack.c.b16 %v2580, %v2577
    %v2650 = vpack.c.b16 %v2581, %v2578
    %v2651 = vpack.c.b16 %v2585, %v2582
    %v2652 = vpack.c.b16 %v2586, %v2583
    %v2653 = vpack.c.b16 %v2587, %v2584
    %v2654 = vpack.c.b16 %v2591, %v2588
    %v2655 = vpack.c.b16 %v2592, %v2589
    %v2656 = vpack.c.b16 %v2593, %v2590
    %v2657 = vpack.c.b16 %v2597, %v2594
    %v2658 = vpack.c.b16 %v2598, %v2595
    %v2659 = vpack.c.b16 %v2599, %v2596
    %v2660 = vpack.c.b16 %v2603, %v2600
    %v2661 = vpack.c.b16 %v2604, %v2601
    %v2662 = vpack.c.b16 %v2605, %v2602
    %v2663 = vpack.c.b16 %v2609, %v2606
    %v2664 = vpack.c.b16 %v2610, %v2607
    %v2665 = vpack.c.b16 %v2611, %v2608
    %v2666 = vpack.c.b16 %v2615, %v2612
    %v2667 = vpack.c.b16 %v2616, %v2613
    %v2668 = vpack.c.b16 %v2617, %v2614
    %v2669 = vpack.c.b16 %v2621, %v2618
    %v2670 = vpack.c.b16 %v2622, %v2619
    %v2671 = vpack.c.b16 %v2623, %v2620
    %2720 = vmatpush.bf16.msra.mxu0 %v2645
    %2721 = vmatpush.bf16.msra.mxu0 %v2642
    %2722 = vmatpush.bf16.msra.mxu0 %v2639
    %2723 = vmatpush.bf16.msra.mxu0 %v2636
    %2724 = vmatpush.bf16.msra.mxu0 %v2633
    %2725 = vmatpush.bf16.msra.mxu0 %v2630
    %2726 = vmatpush.bf16.msra.mxu0 %v2627
    %2727 = vmatpush.bf16.msra.mxu0 %v2624
    %2728 = vmatmul.bf16.gmra.mxu0 %v1897
    %v2729 = vpop.f32.mrf.mxu0
    %v2730 = vadd.f32 0.0, %v2729
    %v2731 = vpop.f32.mrf.mxu0
    %v2732 = vadd.f32 0.0, %v2731
    %2733 = vmatmul.bf16.gmra.mxu0 %v1899
    %v2734 = vpop.f32.mrf.mxu0
    %v2735 = vadd.f32 0.0, %v2734
    %v2736 = vpop.f32.mrf.mxu0
    %v2737 = vadd.f32 0.0, %v2736
    %2738 = vmatmul.bf16.gmra.mxu0 %v1901
    %v2739 = vpop.f32.mrf.mxu0
    %v2740 = vadd.f32 0.0, %v2739
    %v2741 = vpop.f32.mrf.mxu0
    %v2742 = vadd.f32 0.0, %v2741
    %2743 = vmatmul.bf16.gmra.mxu0 %v1903
    %v2744 = vpop.f32.mrf.mxu0
    %v2745 = vadd.f32 0.0, %v2744
    %v2746 = vpop.f32.mrf.mxu0
    %v2747 = vadd.f32 0.0, %v2746
    %2748 = vdwg.mxu0
    %2749 = vmatpush.bf16.msra.mxu0 %v2669
    %2750 = vmatpush.bf16.msra.mxu0 %v2666
    %2751 = vmatpush.bf16.msra.mxu0 %v2663
    %2752 = vmatpush.bf16.msra.mxu0 %v2660
    %2753 = vmatpush.bf16.msra.mxu0 %v2657
    %2754 = vmatpush.bf16.msra.mxu0 %v2654
    %2755 = vmatpush.bf16.msra.mxu0 %v2651
    %2756 = vmatpush.bf16.msra.mxu0 %v2648
    %2757 = vmatmul.bf16.gmra.mxu0 %v1898
    %v2758 = vpop.f32.mrf.mxu0
    %v2759 = vadd.f32 %v2730, %v2758
    %v2760 = vpop.f32.mrf.mxu0
    %v2761 = vadd.f32 %v2732, %v2760
    %2762 = vmatmul.bf16.gmra.mxu0 %v1900
    %v2763 = vpop.f32.mrf.mxu0
    %v2764 = vadd.f32 %v2735, %v2763
    %v2765 = vpop.f32.mrf.mxu0
    %v2766 = vadd.f32 %v2737, %v2765
    %2767 = vmatmul.bf16.gmra.mxu0 %v1902
    %v2768 = vpop.f32.mrf.mxu0
    %v2769 = vadd.f32 %v2740, %v2768
    %v2770 = vpop.f32.mrf.mxu0
    %v2771 = vadd.f32 %v2742, %v2770
    %2772 = vmatmul.bf16.gmra.mxu0 %v1904
    %v2773 = vpop.f32.mrf.mxu0
    %v2774 = vadd.f32 %v2745, %v2773
    %v2775 = vpop.f32.mrf.mxu0
    %v2776 = vadd.f32 %v2747, %v2775
    %2777 = vdwg.mxu0
    %2778 = vmatpush.bf16.msra.mxu0 %v2646
    %2779 = vmatpush.bf16.msra.mxu0 %v2643
    %2780 = vmatpush.bf16.msra.mxu0 %v2640
    %2781 = vmatpush.bf16.msra.mxu0 %v2637
    %2782 = vmatpush.bf16.msra.mxu0 %v2634
    %2783 = vmatpush.bf16.msra.mxu0 %v2631
    %2784 = vmatpush.bf16.msra.mxu0 %v2628
    %2785 = vmatpush.bf16.msra.mxu0 %v2625
    %2786 = vmatmul.bf16.gmra.mxu0 %v1897
    %v2787 = vpop.f32.mrf.mxu0
    %v2788 = vadd.f32 0.0, %v2787
    %v2789 = vpop.f32.mrf.mxu0
    %v2790 = vadd.f32 0.0, %v2789
    %2791 = vmatmul.bf16.gmra.mxu0 %v1899
    %v2792 = vpop.f32.mrf.mxu0
    %v2793 = vadd.f32 0.0, %v2792
    %v2794 = vpop.f32.mrf.mxu0
    %v2795 = vadd.f32 0.0, %v2794
    %2796 = vmatmul.bf16.gmra.mxu0 %v1901
    %v2797 = vpop.f32.mrf.mxu0
    %v2798 = vadd.f32 0.0, %v2797
    %v2799 = vpop.f32.mrf.mxu0
    %v2800 = vadd.f32 0.0, %v2799
    %2801 = vmatmul.bf16.gmra.mxu0 %v1903
    %v2802 = vpop.f32.mrf.mxu0
    %v2803 = vadd.f32 0.0, %v2802
    %v2804 = vpop.f32.mrf.mxu0
    %v2805 = vadd.f32 0.0, %v2804
    %2806 = vdwg.mxu0
    %2807 = vmatpush.bf16.msra.mxu0 %v2670
    %2808 = vmatpush.bf16.msra.mxu0 %v2667
    %2809 = vmatpush.bf16.msra.mxu0 %v2664
    %2810 = vmatpush.bf16.msra.mxu0 %v2661
    %2811 = vmatpush.bf16.msra.mxu0 %v2658
    %2812 = vmatpush.bf16.msra.mxu0 %v2655
    %2813 = vmatpush.bf16.msra.mxu0 %v2652
    %2814 = vmatpush.bf16.msra.mxu0 %v2649
    %2815 = vmatmul.bf16.gmra.mxu0 %v1898
    %v2816 = vpop.f32.mrf.mxu0
    %v2817 = vadd.f32 %v2788, %v2816
    %v2818 = vpop.f32.mrf.mxu0
    %v2819 = vadd.f32 %v2790, %v2818
    %2820 = vmatmul.bf16.gmra.mxu0 %v1900
    %v2821 = vpop.f32.mrf.mxu0
    %v2822 = vadd.f32 %v2793, %v2821
    %v2823 = vpop.f32.mrf.mxu0
    %v2824 = vadd.f32 %v2795, %v2823
    %2825 = vmatmul.bf16.gmra.mxu0 %v1902
    %v2826 = vpop.f32.mrf.mxu0
    %v2827 = vadd.f32 %v2798, %v2826
    %v2828 = vpop.f32.mrf.mxu0
    %v2829 = vadd.f32 %v2800, %v2828
    %2830 = vmatmul.bf16.gmra.mxu0 %v1904
    %v2831 = vpop.f32.mrf.mxu0
    %v2832 = vadd.f32 %v2803, %v2831
    %v2833 = vpop.f32.mrf.mxu0
    %v2834 = vadd.f32 %v2805, %v2833
    %2835 = vdwg.mxu0
    %2836 = vmatpush.bf16.msra.mxu0 %v2647
    %2837 = vmatpush.bf16.msra.mxu0 %v2644
    %2838 = vmatpush.bf16.msra.mxu0 %v2641
    %2839 = vmatpush.bf16.msra.mxu0 %v2638
    %2840 = vmatpush.bf16.msra.mxu0 %v2635
    %2841 = vmatpush.bf16.msra.mxu0 %v2632
    %2842 = vmatpush.bf16.msra.mxu0 %v2629
    %2843 = vmatpush.bf16.msra.mxu0 %v2626
    %2844 = vmatmul.bf16.gmra.mxu0 %v1897
    %v2845 = vpop.f32.mrf.mxu0
    %v2846 = vadd.f32 0.0, %v2845
    %v2847 = vpop.f32.mrf.mxu0
    %v2848 = vadd.f32 0.0, %v2847
    %2849 = vmatmul.bf16.gmra.mxu0 %v1899
    %v2850 = vpop.f32.mrf.mxu0
    %v2851 = vadd.f32 0.0, %v2850
    %v2852 = vpop.f32.mrf.mxu0
    %v2853 = vadd.f32 0.0, %v2852
    %2854 = vmatmul.bf16.gmra.mxu0 %v1901
    %v2855 = vpop.f32.mrf.mxu0
    %v2856 = vadd.f32 0.0, %v2855
    %v2857 = vpop.f32.mrf.mxu0
    %v2858 = vadd.f32 0.0, %v2857
    %2859 = vmatmul.bf16.gmra.mxu0 %v1903
    %v2860 = vpop.f32.mrf.mxu0
    %v2861 = vadd.f32 0.0, %v2860
    %v2862 = vpop.f32.mrf.mxu0
    %v2863 = vadd.f32 0.0, %v2862
    %2864 = vdwg.mxu0
    %2865 = vmatpush.bf16.msra.mxu0 %v2671
    %2866 = vmatpush.bf16.msra.mxu0 %v2668
    %2867 = vmatpush.bf16.msra.mxu0 %v2665
    %2868 = vmatpush.bf16.msra.mxu0 %v2662
    %2869 = vmatpush.bf16.msra.mxu0 %v2659
    %2870 = vmatpush.bf16.msra.mxu0 %v2656
    %2871 = vmatpush.bf16.msra.mxu0 %v2653
    %2872 = vmatpush.bf16.msra.mxu0 %v2650
    %2873 = vmatmul.bf16.gmra.mxu0 %v1898
    %v2874 = vpop.f32.mrf.mxu0
    %v2875 = vadd.f32 %v2846, %v2874
    %v2876 = vpop.f32.mrf.mxu0
    %v2877 = vadd.f32 %v2848, %v2876
    %2878 = vmatmul.bf16.gmra.mxu0 %v1900
    %v2879 = vpop.f32.mrf.mxu0
    %v2880 = vadd.f32 %v2851, %v2879
    %v2881 = vpop.f32.mrf.mxu0
    %v2882 = vadd.f32 %v2853, %v2881
    %2883 = vmatmul.bf16.gmra.mxu0 %v1902
    %v2884 = vpop.f32.mrf.mxu0
    %v2885 = vadd.f32 %v2856, %v2884
    %v2886 = vpop.f32.mrf.mxu0
    %v2887 = vadd.f32 %v2858, %v2886
    %2888 = vmatmul.bf16.gmra.mxu0 %v1904
    %v2889 = vpop.f32.mrf.mxu0
    %v2890 = vadd.f32 %v2861, %v2889
    %v2891 = vpop.f32.mrf.mxu0
    %v2892 = vadd.f32 %v2863, %v2891
    %2893 = vdwg.mxu0
    %s2894 = scalar_lea.vmem %s10, 768
    %v2895 = vld [vmem:[%s2894] sm:$0xff]
    %v2896 = vld [vmem:[%s2894 + $0x8] sm:$0xf]
    %v2897 = vld [vmem:[%s2894 + $0xc] sm:$0xff]
    %v2898 = vld [vmem:[%s2894 + $0x14] sm:$0xf]
    %v2899 = vld [vmem:[%s2894 + $0x18] sm:$0xff]
    %v2900 = vld [vmem:[%s2894 + $0x20] sm:$0xf]
    %v2901 = vld [vmem:[%s2894 + $0x24] sm:$0xff]
    %v2902 = vld [vmem:[%s2894 + $0x2c] sm:$0xf]
    %v2903 = vld [vmem:[%s2894 + $0x30] sm:$0xff]
    %v2904 = vld [vmem:[%s2894 + $0x38] sm:$0xf]
    %v2905 = vld [vmem:[%s2894 + $0x3c] sm:$0xff]
    %v2906 = vld [vmem:[%s2894 + $0x44] sm:$0xf]
    %v2907 = vld [vmem:[%s2894 + $0x48] sm:$0xff]
    %v2908 = vld [vmem:[%s2894 + $0x50] sm:$0xf]
    %v2909 = vld [vmem:[%s2894 + $0x54] sm:$0xff]
    %v2910 = vld [vmem:[%s2894 + $0x5c] sm:$0xf]
    %v2911 = vld [vmem:[%s2894 + $0x60] sm:$0xff]
    %v2912 = vld [vmem:[%s2894 + $0x68] sm:$0xf]
    %v2913 = vld [vmem:[%s2894 + $0x6c] sm:$0xff]
    %v2914 = vld [vmem:[%s2894 + $0x74] sm:$0xf]
    %v2915 = vld [vmem:[%s2894 + $0x78] sm:$0xff]
    %v2916 = vld [vmem:[%s2894 + $0x80] sm:$0xf]
    %v2917 = vld [vmem:[%s2894 + $0x84] sm:$0xff]
    %v2918 = vld [vmem:[%s2894 + $0x8c] sm:$0xf]
    %v2919 = vld [vmem:[%s2894 + $0x90] sm:$0xff]
    %v2920 = vld [vmem:[%s2894 + $0x98] sm:$0xf]
    %v2921 = vld [vmem:[%s2894 + $0x9c] sm:$0xff]
    %v2922 = vld [vmem:[%s2894 + $0xa4] sm:$0xf]
    %v2923 = vld [vmem:[%s2894 + $0xa8] sm:$0xff]
    %v2924 = vld [vmem:[%s2894 + $0xb0] sm:$0xf]
    %v2925 = vld [vmem:[%s2894 + $0xb4] sm:$0xff]
    %v2926 = vld [vmem:[%s2894 + $0xbc] sm:$0xf]
    %v2927 = vld [vmem:[%s2894 + $0xc0] sm:$0xff]
    %v2928 = vld [vmem:[%s2894 + $0xc8] sm:$0xf]
    %v2929 = vld [vmem:[%s2894 + $0xcc] sm:$0xff]
    %v2930 = vld [vmem:[%s2894 + $0xd4] sm:$0xf]
    %v2931 = vld [vmem:[%s2894 + $0xd8] sm:$0xff]
    %v2932 = vld [vmem:[%s2894 + $0xe0] sm:$0xf]
    %v2933 = vld [vmem:[%s2894 + $0xe4] sm:$0xff]
    %v2934 = vld [vmem:[%s2894 + $0xec] sm:$0xf]
    %v2935 = vld [vmem:[%s2894 + $0xf0] sm:$0xff]
    %v2936 = vld [vmem:[%s2894 + $0xf8] sm:$0xf]
    %v2937 = vld [vmem:[%s2894 + $0xfc] sm:$0xff]
    %v2938 = vld [vmem:[%s2894 + $0x104] sm:$0xf]
    %v2939 = vld [vmem:[%s2894 + $0x108] sm:$0xff]
    %v2940 = vld [vmem:[%s2894 + $0x110] sm:$0xf]
    %v2941 = vld [vmem:[%s2894 + $0x114] sm:$0xff]
    %v2942 = vld [vmem:[%s2894 + $0x11c] sm:$0xf]
    %v2943 = vld [vmem:[%s2894 + $0x120] sm:$0xff]
    %v2944 = vld [vmem:[%s2894 + $0x128] sm:$0xf]
    %v2945 = vld [vmem:[%s2894 + $0x12c] sm:$0xff]
    %v2946 = vld [vmem:[%s2894 + $0x134] sm:$0xf]
    %v2947 = vld [vmem:[%s2894 + $0x138] sm:$0xff]
    %v2948 = vld [vmem:[%s2894 + $0x140] sm:$0xf]
    %v2949 = vld [vmem:[%s2894 + $0x144] sm:$0xff]
    %v2950 = vld [vmem:[%s2894 + $0x14c] sm:$0xf]
    %v2951 = vld [vmem:[%s2894 + $0x150] sm:$0xff]
    %v2952 = vld [vmem:[%s2894 + $0x158] sm:$0xf]
    %v2953 = vld [vmem:[%s2894 + $0x15c] sm:$0xff]
    %v2954 = vld [vmem:[%s2894 + $0x164] sm:$0xf]
    %v2955 = vld [vmem:[%s2894 + $0x168] sm:$0xff]
    %v2956 = vld [vmem:[%s2894 + $0x170] sm:$0xf]
    %v2957 = vld [vmem:[%s2894 + $0x174] sm:$0xff]
    %v2958 = vld [vmem:[%s2894 + $0x17c] sm:$0xf]
    %v3023 = vunpack.c.l.b16 %v2895
    %v3024 = vunpack.c.h.b16 %v2895
    %v3025 = vunpack.c.l.b16 %v2896
    %v3026 = vunpack.c.l.b16 %v2897
    %v3027 = vunpack.c.h.b16 %v2897
    %v3028 = vunpack.c.l.b16 %v2898
    %v3029 = vunpack.c.l.b16 %v2899
    %v3030 = vunpack.c.h.b16 %v2899
    %v3031 = vunpack.c.l.b16 %v2900
    %v3032 = vunpack.c.l.b16 %v2901
    %v3033 = vunpack.c.h.b16 %v2901
    %v3034 = vunpack.c.l.b16 %v2902
    %v3035 = vunpack.c.l.b16 %v2903
    %v3036 = vunpack.c.h.b16 %v2903
    %v3037 = vunpack.c.l.b16 %v2904
    %v3038 = vunpack.c.l.b16 %v2905
    %v3039 = vunpack.c.h.b16 %v2905
    %v3040 = vunpack.c.l.b16 %v2906
    %v3041 = vunpack.c.l.b16 %v2907
    %v3042 = vunpack.c.h.b16 %v2907
    %v3043 = vunpack.c.l.b16 %v2908
    %v3044 = vunpack.c.l.b16 %v2909
    %v3045 = vunpack.c.h.b16 %v2909
    %v3046 = vunpack.c.l.b16 %v2910
    %v3047 = vunpack.c.l.b16 %v2911
    %v3048 = vunpack.c.h.b16 %v2911
    %v3049 = vunpack.c.l.b16 %v2912
    %v3050 = vunpack.c.l.b16 %v2913
    %v3051 = vunpack.c.h.b16 %v2913
    %v3052 = vunpack.c.l.b16 %v2914
    %v3053 = vunpack.c.l.b16 %v2915
    %v3054 = vunpack.c.h.b16 %v2915
    %v3055 = vunpack.c.l.b16 %v2916
    %v3056 = vunpack.c.l.b16 %v2917
    %v3057 = vunpack.c.h.b16 %v2917
    %v3058 = vunpack.c.l.b16 %v2918
    %v3059 = vunpack.c.l.b16 %v2919
    %v3060 = vunpack.c.h.b16 %v2919
    %v3061 = vunpack.c.l.b16 %v2920
    %v3062 = vunpack.c.l.b16 %v2921
    %v3063 = vunpack.c.h.b16 %v2921
    %v3064 = vunpack.c.l.b16 %v2922
    %v3065 = vunpack.c.l.b16 %v2923
    %v3066 = vunpack.c.h.b16 %v2923
    %v3067 = vunpack.c.l.b16 %v2924
    %v3068 = vunpack.c.l.b16 %v2925
    %v3069 = vunpack.c.h.b16 %v2925
    %v3070 = vunpack.c.l.b16 %v2926
    %v3071 = vunpack.c.l.b16 %v2927
    %v3072 = vunpack.c.h.b16 %v2927
    %v3073 = vunpack.c.l.b16 %v2928
    %v3074 = vunpack.c.l.b16 %v2929
    %v3075 = vunpack.c.h.b16 %v2929
    %v3076 = vunpack.c.l.b16 %v2930
    %v3077 = vunpack.c.l.b16 %v2931
    %v3078 = vunpack.c.h.b16 %v2931
    %v3079 = vunpack.c.l.b16 %v2932
    %v3080 = vunpack.c.l.b16 %v2933
    %v3081 = vunpack.c.h.b16 %v2933
    %v3082 = vunpack.c.l.b16 %v2934
    %v3083 = vunpack.c.l.b16 %v2935
    %v3084 = vunpack.c.h.b16 %v2935
    %v3085 = vunpack.c.l.b16 %v2936
    %v3086 = vunpack.c.l.b16 %v2937
    %v3087 = vunpack.c.h.b16 %v2937
    %v3088 = vunpack.c.l.b16 %v2938
    %v3089 = vunpack.c.l.b16 %v2939
    %v3090 = vunpack.c.h.b16 %v2939
    %v3091 = vunpack.c.l.b16 %v2940
    %v3092 = vunpack.c.l.b16 %v2941
    %v3093 = vunpack.c.h.b16 %v2941
    %v3094 = vunpack.c.l.b16 %v2942
    %v3095 = vunpack.c.l.b16 %v2943
    %v3096 = vunpack.c.h.b16 %v2943
    %v3097 = vunpack.c.l.b16 %v2944
    %v3098 = vunpack.c.l.b16 %v2945
    %v3099 = vunpack.c.h.b16 %v2945
    %v3100 = vunpack.c.l.b16 %v2946
    %v3101 = vunpack.c.l.b16 %v2947
    %v3102 = vunpack.c.h.b16 %v2947
    %v3103 = vunpack.c.l.b16 %v2948
    %v3104 = vunpack.c.l.b16 %v2949
    %v3105 = vunpack.c.h.b16 %v2949
    %v3106 = vunpack.c.l.b16 %v2950
    %v3107 = vunpack.c.l.b16 %v2951
    %v3108 = vunpack.c.h.b16 %v2951
    %v3109 = vunpack.c.l.b16 %v2952
    %v3110 = vunpack.c.l.b16 %v2953
    %v3111 = vunpack.c.h.b16 %v2953
    %v3112 = vunpack.c.l.b16 %v2954
    %v3113 = vunpack.c.l.b16 %v2955
    %v3114 = vunpack.c.h.b16 %v2955
    %v3115 = vunpack.c.l.b16 %v2956
    %v3116 = vunpack.c.l.b16 %v2957
    %v3117 = vunpack.c.h.b16 %v2957
    %v3118 = vunpack.c.l.b16 %v2958
    %v3119 = vpack.c.b16 %v3026, %v3023
    %v3120 = vpack.c.b16 %v3027, %v3024
    %v3121 = vpack.c.b16 %v3028, %v3025
    %v3122 = vpack.c.b16 %v3032, %v3029
    %v3123 = vpack.c.b16 %v3033, %v3030
    %v3124 = vpack.c.b16 %v3034, %v3031
    %v3125 = vpack.c.b16 %v3038, %v3035
    %v3126 = vpack.c.b16 %v3039, %v3036
    %v3127 = vpack.c.b16 %v3040, %v3037
    %v3128 = vpack.c.b16 %v3044, %v3041
    %v3129 = vpack.c.b16 %v3045, %v3042
    %v3130 = vpack.c.b16 %v3046, %v3043
    %v3131 = vpack.c.b16 %v3050, %v3047
    %v3132 = vpack.c.b16 %v3051, %v3048
    %v3133 = vpack.c.b16 %v3052, %v3049
    %v3134 = vpack.c.b16 %v3056, %v3053
    %v3135 = vpack.c.b16 %v3057, %v3054
    %v3136 = vpack.c.b16 %v3058, %v3055
    %v3137 = vpack.c.b16 %v3062, %v3059
    %v3138 = vpack.c.b16 %v3063, %v3060
    %v3139 = vpack.c.b16 %v3064, %v3061
    %v3140 = vpack.c.b16 %v3068, %v3065
    %v3141 = vpack.c.b16 %v3069, %v3066
    %v3142 = vpack.c.b16 %v3070, %v3067
    %v3143 = vpack.c.b16 %v3074, %v3071
    %v3144 = vpack.c.b16 %v3075, %v3072
    %v3145 = vpack.c.b16 %v3076, %v3073
    %v3146 = vpack.c.b16 %v3080, %v3077
    %v3147 = vpack.c.b16 %v3081, %v3078
    %v3148 = vpack.c.b16 %v3082, %v3079
    %v3149 = vpack.c.b16 %v3086, %v3083
    %v3150 = vpack.c.b16 %v3087, %v3084
    %v3151 = vpack.c.b16 %v3088, %v3085
    %v3152 = vpack.c.b16 %v3092, %v3089
    %v3153 = vpack.c.b16 %v3093, %v3090
    %v3154 = vpack.c.b16 %v3094, %v3091
    %v3155 = vpack.c.b16 %v3098, %v3095
    %v3156 = vpack.c.b16 %v3099, %v3096
    %v3157 = vpack.c.b16 %v3100, %v3097
    %v3158 = vpack.c.b16 %v3104, %v3101
    %v3159 = vpack.c.b16 %v3105, %v3102
    %v3160 = vpack.c.b16 %v3106, %v3103
    %v3161 = vpack.c.b16 %v3110, %v3107
    %v3162 = vpack.c.b16 %v3111, %v3108
    %v3163 = vpack.c.b16 %v3112, %v3109
    %v3164 = vpack.c.b16 %v3116, %v3113
    %v3165 = vpack.c.b16 %v3117, %v3114
    %v3166 = vpack.c.b16 %v3118, %v3115
    %3215 = vmatpush.bf16.msra.mxu0 %v3140
    %3216 = vmatpush.bf16.msra.mxu0 %v3137
    %3217 = vmatpush.bf16.msra.mxu0 %v3134
    %3218 = vmatpush.bf16.msra.mxu0 %v3131
    %3219 = vmatpush.bf16.msra.mxu0 %v3128
    %3220 = vmatpush.bf16.msra.mxu0 %v3125
    %3221 = vmatpush.bf16.msra.mxu0 %v3122
    %3222 = vmatpush.bf16.msra.mxu0 %v3119
    %3223 = vmatmul.bf16.gmra.mxu0 %v1897
    %v3224 = vpop.f32.mrf.mxu0
    %v3225 = vadd.f32 0.0, %v3224
    %v3226 = vpop.f32.mrf.mxu0
    %v3227 = vadd.f32 0.0, %v3226
    %3228 = vmatmul.bf16.gmra.mxu0 %v1899
    %v3229 = vpop.f32.mrf.mxu0
    %v3230 = vadd.f32 0.0, %v3229
    %v3231 = vpop.f32.mrf.mxu0
    %v3232 = vadd.f32 0.0, %v3231
    %3233 = vmatmul.bf16.gmra.mxu0 %v1901
    %v3234 = vpop.f32.mrf.mxu0
    %v3235 = vadd.f32 0.0, %v3234
    %v3236 = vpop.f32.mrf.mxu0
    %v3237 = vadd.f32 0.0, %v3236
    %3238 = vmatmul.bf16.gmra.mxu0 %v1903
    %v3239 = vpop.f32.mrf.mxu0
    %v3240 = vadd.f32 0.0, %v3239
    %v3241 = vpop.f32.mrf.mxu0
    %v3242 = vadd.f32 0.0, %v3241
    %3243 = vdwg.mxu0
    %3244 = vmatpush.bf16.msra.mxu0 %v3164
    %3245 = vmatpush.bf16.msra.mxu0 %v3161
    %3246 = vmatpush.bf16.msra.mxu0 %v3158
    %3247 = vmatpush.bf16.msra.mxu0 %v3155
    %3248 = vmatpush.bf16.msra.mxu0 %v3152
    %3249 = vmatpush.bf16.msra.mxu0 %v3149
    %3250 = vmatpush.bf16.msra.mxu0 %v3146
    %3251 = vmatpush.bf16.msra.mxu0 %v3143
    %3252 = vmatmul.bf16.gmra.mxu0 %v1898
    %v3253 = vpop.f32.mrf.mxu0
    %v3254 = vadd.f32 %v3225, %v3253
    %v3255 = vpop.f32.mrf.mxu0
    %v3256 = vadd.f32 %v3227, %v3255
    %3257 = vmatmul.bf16.gmra.mxu0 %v1900
    %v3258 = vpop.f32.mrf.mxu0
    %v3259 = vadd.f32 %v3230, %v3258
    %v3260 = vpop.f32.mrf.mxu0
    %v3261 = vadd.f32 %v3232, %v3260
    %3262 = vmatmul.bf16.gmra.mxu0 %v1902
    %v3263 = vpop.f32.mrf.mxu0
    %v3264 = vadd.f32 %v3235, %v3263
    %v3265 = vpop.f32.mrf.mxu0
    %v3266 = vadd.f32 %v3237, %v3265
    %3267 = vmatmul.bf16.gmra.mxu0 %v1904
    %v3268 = vpop.f32.mrf.mxu0
    %v3269 = vadd.f32 %v3240, %v3268
    %v3270 = vpop.f32.mrf.mxu0
    %v3271 = vadd.f32 %v3242, %v3270
    %3272 = vdwg.mxu0
    %3273 = vmatpush.bf16.msra.mxu0 %v3141
    %3274 = vmatpush.bf16.msra.mxu0 %v3138
    %3275 = vmatpush.bf16.msra.mxu0 %v3135
    %3276 = vmatpush.bf16.msra.mxu0 %v3132
    %3277 = vmatpush.bf16.msra.mxu0 %v3129
    %3278 = vmatpush.bf16.msra.mxu0 %v3126
    %3279 = vmatpush.bf16.msra.mxu0 %v3123
    %3280 = vmatpush.bf16.msra.mxu0 %v3120
    %3281 = vmatmul.bf16.gmra.mxu0 %v1897
    %v3282 = vpop.f32.mrf.mxu0
    %v3283 = vadd.f32 0.0, %v3282
    %v3284 = vpop.f32.mrf.mxu0
    %v3285 = vadd.f32 0.0, %v3284
    %3286 = vmatmul.bf16.gmra.mxu0 %v1899
    %v3287 = vpop.f32.mrf.mxu0
    %v3288 = vadd.f32 0.0, %v3287
    %v3289 = vpop.f32.mrf.mxu0
    %v3290 = vadd.f32 0.0, %v3289
    %3291 = vmatmul.bf16.gmra.mxu0 %v1901
    %v3292 = vpop.f32.mrf.mxu0
    %v3293 = vadd.f32 0.0, %v3292
    %v3294 = vpop.f32.mrf.mxu0
    %v3295 = vadd.f32 0.0, %v3294
    %3296 = vmatmul.bf16.gmra.mxu0 %v1903
    %v3297 = vpop.f32.mrf.mxu0
    %v3298 = vadd.f32 0.0, %v3297
    %v3299 = vpop.f32.mrf.mxu0
    %v3300 = vadd.f32 0.0, %v3299
    %3301 = vdwg.mxu0
    %3302 = vmatpush.bf16.msra.mxu0 %v3165
    %3303 = vmatpush.bf16.msra.mxu0 %v3162
    %3304 = vmatpush.bf16.msra.mxu0 %v3159
    %3305 = vmatpush.bf16.msra.mxu0 %v3156
    %3306 = vmatpush.bf16.msra.mxu0 %v3153
    %3307 = vmatpush.bf16.msra.mxu0 %v3150
    %3308 = vmatpush.bf16.msra.mxu0 %v3147
    %3309 = vmatpush.bf16.msra.mxu0 %v3144
    %3310 = vmatmul.bf16.gmra.mxu0 %v1898
    %v3311 = vpop.f32.mrf.mxu0
    %v3312 = vadd.f32 %v3283, %v3311
    %v3313 = vpop.f32.mrf.mxu0
    %v3314 = vadd.f32 %v3285, %v3313
    %3315 = vmatmul.bf16.gmra.mxu0 %v1900
    %v3316 = vpop.f32.mrf.mxu0
    %v3317 = vadd.f32 %v3288, %v3316
    %v3318 = vpop.f32.mrf.mxu0
    %v3319 = vadd.f32 %v3290, %v3318
    %3320 = vmatmul.bf16.gmra.mxu0 %v1902
    %v3321 = vpop.f32.mrf.mxu0
    %v3322 = vadd.f32 %v3293, %v3321
    %v3323 = vpop.f32.mrf.mxu0
    %v3324 = vadd.f32 %v3295, %v3323
    %3325 = vmatmul.bf16.gmra.mxu0 %v1904
    %v3326 = vpop.f32.mrf.mxu0
    %v3327 = vadd.f32 %v3298, %v3326
    %v3328 = vpop.f32.mrf.mxu0
    %v3329 = vadd.f32 %v3300, %v3328
    %3330 = vdwg.mxu0
    %3331 = vmatpush.bf16.msra.mxu0 %v3142
    %3332 = vmatpush.bf16.msra.mxu0 %v3139
    %3333 = vmatpush.bf16.msra.mxu0 %v3136
    %3334 = vmatpush.bf16.msra.mxu0 %v3133
    %3335 = vmatpush.bf16.msra.mxu0 %v3130
    %3336 = vmatpush.bf16.msra.mxu0 %v3127
    %3337 = vmatpush.bf16.msra.mxu0 %v3124
    %3338 = vmatpush.bf16.msra.mxu0 %v3121
    %3339 = vmatmul.bf16.gmra.mxu0 %v1897
    %v3340 = vpop.f32.mrf.mxu0
    %v3341 = vadd.f32 0.0, %v3340
    %v3342 = vpop.f32.mrf.mxu0
    %v3343 = vadd.f32 0.0, %v3342
    %3344 = vmatmul.bf16.gmra.mxu0 %v1899
    %v3345 = vpop.f32.mrf.mxu0
    %v3346 = vadd.f32 0.0, %v3345
    %v3347 = vpop.f32.mrf.mxu0
    %v3348 = vadd.f32 0.0, %v3347
    %3349 = vmatmul.bf16.gmra.mxu0 %v1901
    %v3350 = vpop.f32.mrf.mxu0
    %v3351 = vadd.f32 0.0, %v3350
    %v3352 = vpop.f32.mrf.mxu0
    %v3353 = vadd.f32 0.0, %v3352
    %3354 = vmatmul.bf16.gmra.mxu0 %v1903
    %v3355 = vpop.f32.mrf.mxu0
    %v3356 = vadd.f32 0.0, %v3355
    %v3357 = vpop.f32.mrf.mxu0
    %v3358 = vadd.f32 0.0, %v3357
    %3359 = vdwg.mxu0
    %3360 = vmatpush.bf16.msra.mxu0 %v3166
    %3361 = vmatpush.bf16.msra.mxu0 %v3163
    %3362 = vmatpush.bf16.msra.mxu0 %v3160
    %3363 = vmatpush.bf16.msra.mxu0 %v3157
    %3364 = vmatpush.bf16.msra.mxu0 %v3154
    %3365 = vmatpush.bf16.msra.mxu0 %v3151
    %3366 = vmatpush.bf16.msra.mxu0 %v3148
    %3367 = vmatpush.bf16.msra.mxu0 %v3145
    %3368 = vmatmul.bf16.gmra.mxu0 %v1898
    %v3369 = vpop.f32.mrf.mxu0
    %v3370 = vadd.f32 %v3341, %v3369
    %v3371 = vpop.f32.mrf.mxu0
    %v3372 = vadd.f32 %v3343, %v3371
    %3373 = vmatmul.bf16.gmra.mxu0 %v1900
    %v3374 = vpop.f32.mrf.mxu0
    %v3375 = vadd.f32 %v3346, %v3374
    %v3376 = vpop.f32.mrf.mxu0
    %v3377 = vadd.f32 %v3348, %v3376
    %3378 = vmatmul.bf16.gmra.mxu0 %v1902
    %v3379 = vpop.f32.mrf.mxu0
    %v3380 = vadd.f32 %v3351, %v3379
    %v3381 = vpop.f32.mrf.mxu0
    %v3382 = vadd.f32 %v3353, %v3381
    %3383 = vmatmul.bf16.gmra.mxu0 %v1904
    %v3384 = vpop.f32.mrf.mxu0
    %v3385 = vadd.f32 %v3356, %v3384
    %v3386 = vpop.f32.mrf.mxu0
    %v3387 = vadd.f32 %v3358, %v3386
    %3388 = vdwg.mxu0
    %v3389 = vadd.f32 %v2759, 0.0
    %v3390 = vadd.f32 %v2817, 0.0
    %v3391 = vadd.f32 %v2875, 0.0
    %v3392 = vadd.f32 %v2264, %v2761
    %v3393 = vadd.f32 %v2322, %v2819
    %v3394 = vadd.f32 %v2380, %v2877
    %v3395 = vadd.f32 %v2266, %v2764
    %v3396 = vadd.f32 %v2324, %v2822
    %v3397 = vadd.f32 %v2382, %v2880
    %v3398 = vadd.f32 %v2269, %v2766
    %v3399 = vadd.f32 %v2327, %v2824
    %v3400 = vadd.f32 %v2385, %v2882
    %v3401 = vadd.f32 %v2271, %v2769
    %v3402 = vadd.f32 %v2329, %v2827
    %v3403 = vadd.f32 %v2387, %v2885
    %v3404 = vadd.f32 %v2274, %v2771
    %v3405 = vadd.f32 %v2332, %v2829
    %v3406 = vadd.f32 %v2390, %v2887
    %v3407 = vadd.f32 %v2276, %v2774
    %v3408 = vadd.f32 %v2334, %v2832
    %v3409 = vadd.f32 %v2392, %v2890
    %v3410 = vadd.f32 %v2279, %v2776
    %v3411 = vadd.f32 %v2337, %v2834
    %v3412 = vadd.f32 %v2395, %v2892
    %v3413 = vadd.f32 %v2281, 0.0
    %v3414 = vadd.f32 %v2339, 0.0
    %v3415 = vadd.f32 %v2397, 0.0
    %v3416 = vadd.f32 %v3254, 0.0
    %v3417 = vadd.f32 %v3312, 0.0
    %v3418 = vadd.f32 %v3370, 0.0
    %v3419 = vadd.f32 %v3389, %v3256
    %v3420 = vadd.f32 %v3390, %v3314
    %v3421 = vadd.f32 %v3391, %v3372
    %v3422 = vadd.f32 %v3392, %v3259
    %v3423 = vadd.f32 %v3393, %v3317
    %v3424 = vadd.f32 %v3394, %v3375
    %v3425 = vadd.f32 %v3395, %v3261
    %v3426 = vadd.f32 %v3396, %v3319
    %v3427 = vadd.f32 %v3397, %v3377
    %v3428 = vadd.f32 %v3398, %v3264
    %v3429 = vadd.f32 %v3399, %v3322
    %v3430 = vadd.f32 %v3400, %v3380
    %v3431 = vadd.f32 %v3401, %v3266
    %v3432 = vadd.f32 %v3402, %v3324
    %v3433 = vadd.f32 %v3403, %v3382
    %v3434 = vadd.f32 %v3404, %v3269
    %v3435 = vadd.f32 %v3405, %v3327
    %v3436 = vadd.f32 %v3406, %v3385
    %v3437 = vadd.f32 %v3407, %v3271
    %v3438 = vadd.f32 %v3408, %v3329
    %v3439 = vadd.f32 %v3409, %v3387
    %v3440 = vadd.f32 %v3410, 0.0
    %v3441 = vadd.f32 %v3411, 0.0
    %v3442 = vadd.f32 %v3412, 0.0
    %v3443 = vadd.f32 %v3413, 0.0
    %v3444 = vadd.f32 %v3414, 0.0
    %v3445 = vadd.f32 %v3415, 0.0
    %v3446 = vld [vmem:[%s11] sm:$0x7]
    %v3448 = vperm.slane %v3446, 0
    %v3449 = vperm.slane %v3446, 1
    %v3450 = vperm.slane %v3446, 2
    %v3454 = vadd.f32 %v3416, %v3448
    %v3455 = vadd.f32 %v3417, %v3449
    %v3456 = vadd.f32 %v3418, %v3450
    %v3457 = vadd.f32 %v3419, %v3448
    %v3458 = vadd.f32 %v3420, %v3449
    %v3459 = vadd.f32 %v3421, %v3450
    %v3460 = vadd.f32 %v3422, %v3448
    %v3461 = vadd.f32 %v3423, %v3449
    %v3462 = vadd.f32 %v3424, %v3450
    %v3463 = vadd.f32 %v3425, %v3448
    %v3464 = vadd.f32 %v3426, %v3449
    %v3465 = vadd.f32 %v3427, %v3450
    %v3466 = vadd.f32 %v3428, %v3448
    %v3467 = vadd.f32 %v3429, %v3449
    %v3468 = vadd.f32 %v3430, %v3450
    %v3469 = vadd.f32 %v3431, %v3448
    %v3470 = vadd.f32 %v3432, %v3449
    %v3471 = vadd.f32 %v3433, %v3450
    %v3472 = vadd.f32 %v3434, %v3448
    %v3473 = vadd.f32 %v3435, %v3449
    %v3474 = vadd.f32 %v3436, %v3450
    %v3475 = vadd.f32 %v3437, %v3448
    %v3476 = vadd.f32 %v3438, %v3449
    %v3477 = vadd.f32 %v3439, %v3450
    %v3478 = vadd.f32 %v3440, %v3448
    %v3479 = vadd.f32 %v3441, %v3449
    %v3480 = vadd.f32 %v3442, %v3450
    %v3481 = vadd.f32 %v3443, %v3448
    %v3482 = vadd.f32 %v3444, %v3449
    %v3483 = vadd.f32 %v3445, %v3450
    %v3484 = vmax.f32 %v3454, 0.0
    %v3485 = vmax.f32 %v3455, 0.0
    %v3486 = vmax.f32 %v3456, 0.0
    %v3487 = vmax.f32 %v3457, 0.0
    %v3488 = vmax.f32 %v3458, 0.0
    %v3489 = vmax.f32 %v3459, 0.0
    %v3490 = vmax.f32 %v3460, 0.0
    %v3491 = vmax.f32 %v3461, 0.0
    %v3492 = vmax.f32 %v3462, 0.0
    %v3493 = vmax.f32 %v3463, 0.0
    %v3494 = vmax.f32 %v3464, 0.0
    %v3495 = vmax.f32 %v3465, 0.0
    %v3496 = vmax.f32 %v3466, 0.0
    %v3497 = vmax.f32 %v3467, 0.0
    %v3498 = vmax.f32 %v3468, 0.0
    %v3499 = vmax.f32 %v3469, 0.0
    %v3500 = vmax.f32 %v3470, 0.0
    %v3501 = vmax.f32 %v3471, 0.0
    %v3502 = vmax.f32 %v3472, 0.0
    %v3503 = vmax.f32 %v3473, 0.0
    %v3504 = vmax.f32 %v3474, 0.0
    %v3505 = vmax.f32 %v3475, 0.0
    %v3506 = vmax.f32 %v3476, 0.0
    %v3507 = vmax.f32 %v3477, 0.0
    %v3508 = vmax.f32 %v3478, 0.0
    %v3509 = vmax.f32 %v3479, 0.0
    %v3510 = vmax.f32 %v3480, 0.0
    %v3511 = vmax.f32 %v3481, 0.0
    %v3512 = vmax.f32 %v3482, 0.0
    %v3513 = vmax.f32 %v3483, 0.0
    %v3514 = vpack.c.bf16 %v3487, %v3484
    %v3515 = vpack.c.bf16 %v3488, %v3485
    %v3516 = vpack.c.bf16 %v3489, %v3486
    %v3517 = vpack.c.bf16 %v3493, %v3490
    %v3518 = vpack.c.bf16 %v3494, %v3491
    %v3519 = vpack.c.bf16 %v3495, %v3492
    %v3520 = vpack.c.bf16 %v3499, %v3496
    %v3521 = vpack.c.bf16 %v3500, %v3497
    %v3522 = vpack.c.bf16 %v3501, %v3498
    %v3523 = vpack.c.bf16 %v3505, %v3502
    %v3524 = vpack.c.bf16 %v3506, %v3503
    %v3525 = vpack.c.bf16 %v3507, %v3504
    %v3526 = vpack.c.bf16 %v3511, %v3508
    %v3527 = vpack.c.bf16 %v3512, %v3509
    %v3528 = vpack.c.bf16 %v3513, %v3510
    %v3529 = vld [vmem:[%s12] sm:$0xf]
    %v3530 = vld [vmem:[%s12 + $0x4] sm:$0xf]
    %v3531 = vld [vmem:[%s12 + $0x8] sm:$0xf]
    %v3532 = vld [vmem:[%s12 + $0xc] sm:$0xf]
    %v3533 = vld [vmem:[%s12 + $0x10] sm:$0xf]
    %v3534 = vld [vmem:[%s12 + $0x14] sm:$0xf]
    %v3535 = vld [vmem:[%s12 + $0x18] sm:$0xf]
    %v3536 = vld [vmem:[%s12 + $0x1c] sm:$0xf]
    %v3537 = vld [vmem:[%s12 + $0x20] sm:$0xf]
    %v3538 = vld [vmem:[%s12 + $0x24] sm:$0xf]
    %v3539 = vld [vmem:[%s12 + $0x28] sm:$0xf]
    %v3540 = vld [vmem:[%s12 + $0x2c] sm:$0xf]
    %v3541 = vld [vmem:[%s12 + $0x30] sm:$0xf]
    %v3542 = vld [vmem:[%s12 + $0x34] sm:$0xf]
    %v3543 = vld [vmem:[%s12 + $0x38] sm:$0xf]
    %v3544 = vld [vmem:[%s12 + $0x3c] sm:$0xf]
    %v3545 = vld [vmem:[%s12 + $0x40] sm:$0xf]
    %v3546 = vld [vmem:[%s12 + $0x44] sm:$0xf]
    %v3547 = vld [vmem:[%s12 + $0x48] sm:$0xf]
    %v3548 = vld [vmem:[%s12 + $0x4c] sm:$0xf]
    %v3549 = vld [vmem:[%s12 + $0x50] sm:$0xf]
    %v3550 = vld [vmem:[%s12 + $0x54] sm:$0xf]
    %v3551 = vld [vmem:[%s12 + $0x58] sm:$0xf]
    %v3552 = vld [vmem:[%s12 + $0x5c] sm:$0xf]
    %v3553 = vld [vmem:[%s12 + $0x60] sm:$0xf]
    %v3554 = vld [vmem:[%s12 + $0x64] sm:$0xf]
    %v3555 = vld [vmem:[%s12 + $0x68] sm:$0xf]
    %v3556 = vld [vmem:[%s12 + $0x6c] sm:$0xf]
    %v3557 = vld [vmem:[%s12 + $0x70] sm:$0xf]
    %v3558 = vld [vmem:[%s12 + $0x74] sm:$0xf]
    %v3559 = vld [vmem:[%s12 + $0x78] sm:$0xf]
    %v3560 = vld [vmem:[%s12 + $0x7c] sm:$0xf]
    %v3561 = vld [vmem:[%s12 + $0x80] sm:$0xf]
    %v3562 = vld [vmem:[%s12 + $0x84] sm:$0xf]
    %v3563 = vld [vmem:[%s12 + $0x88] sm:$0xf]
    %v3564 = vld [vmem:[%s12 + $0x8c] sm:$0xf]
    %v3565 = vld [vmem:[%s12 + $0x90] sm:$0xf]
    %v3566 = vld [vmem:[%s12 + $0x94] sm:$0xf]
    %v3567 = vld [vmem:[%s12 + $0x98] sm:$0xf]
    %v3568 = vld [vmem:[%s12 + $0x9c] sm:$0xf]
    %v3609 = vunpack.c.l.b16 %v3529
    %v3610 = vunpack.c.l.b16 %v3530
    %v3611 = vunpack.c.l.b16 %v3531
    %v3612 = vunpack.c.l.b16 %v3532
    %v3613 = vunpack.c.l.b16 %v3533
    %v3614 = vunpack.c.l.b16 %v3534
    %v3615 = vunpack.c.l.b16 %v3535
    %v3616 = vunpack.c.l.b16 %v3536
    %v3617 = vunpack.c.l.b16 %v3537
    %v3618 = vunpack.c.l.b16 %v3538
    %v3619 = vunpack.c.l.b16 %v3539
    %v3620 = vunpack.c.l.b16 %v3540
    %v3621 = vunpack.c.l.b16 %v3541
    %v3622 = vunpack.c.l.b16 %v3542
    %v3623 = vunpack.c.l.b16 %v3543
    %v3624 = vunpack.c.l.b16 %v3544
    %v3625 = vunpack.c.l.b16 %v3545
    %v3626 = vunpack.c.l.b16 %v3546
    %v3627 = vunpack.c.l.b16 %v3547
    %v3628 = vunpack.c.l.b16 %v3548
    %v3629 = vunpack.c.l.b16 %v3549
    %v3630 = vunpack.c.l.b16 %v3550
    %v3631 = vunpack.c.l.b16 %v3551
    %v3632 = vunpack.c.l.b16 %v3552
    %v3633 = vunpack.c.l.b16 %v3553
    %v3634 = vunpack.c.l.b16 %v3554
    %v3635 = vunpack.c.l.b16 %v3555
    %v3636 = vunpack.c.l.b16 %v3556
    %v3637 = vunpack.c.l.b16 %v3557
    %v3638 = vunpack.c.l.b16 %v3558
    %v3639 = vunpack.c.l.b16 %v3559
    %v3640 = vunpack.c.l.b16 %v3560
    %v3641 = vunpack.c.l.b16 %v3561
    %v3642 = vunpack.c.l.b16 %v3562
    %v3643 = vunpack.c.l.b16 %v3563
    %v3644 = vunpack.c.l.b16 %v3564
    %v3645 = vunpack.c.l.b16 %v3565
    %v3646 = vunpack.c.l.b16 %v3566
    %v3647 = vunpack.c.l.b16 %v3567
    %v3648 = vunpack.c.l.b16 %v3568
    %v3649 = vpack.c.b16 %v3610, %v3609
    %v3650 = vpack.c.b16 %v3612, %v3611
    %v3651 = vpack.c.b16 %v3614, %v3613
    %v3652 = vpack.c.b16 %v3616, %v3615
    %v3653 = vpack.c.b16 %v3618, %v3617
    %v3654 = vpack.c.b16 %v3620, %v3619
    %v3655 = vpack.c.b16 %v3622, %v3621
    %v3656 = vpack.c.b16 %v3624, %v3623
    %v3657 = vpack.c.b16 %v3626, %v3625
    %v3658 = vpack.c.b16 %v3628, %v3627
    %v3659 = vpack.c.b16 %v3630, %v3629
    %v3660 = vpack.c.b16 %v3632, %v3631
    %v3661 = vpack.c.b16 %v3634, %v3633
    %v3662 = vpack.c.b16 %v3636, %v3635
    %v3663 = vpack.c.b16 %v3638, %v3637
    %v3664 = vpack.c.b16 %v3640, %v3639
    %v3665 = vpack.c.b16 %v3642, %v3641
    %v3666 = vpack.c.b16 %v3644, %v3643
    %v3667 = vpack.c.b16 %v3646, %v3645
    %v3668 = vpack.c.b16 %v3648, %v3647
    %vm3689 = vcmask 523264
    %v3691 = vsel %vm3689, %v3516, 0
    %v3694 = vsel %vm3689, %v3519, 0
    %v3697 = vsel %vm3689, %v3522, 0
    %v3700 = vsel %vm3689, %v3525, 0
    %v3703 = vsel %vm3689, %v3528, 0
    %3705 = vmatpush.bf16.msra.mxu0 %v3656
    %3706 = vmatpush.bf16.msra.mxu0 %v3655
    %3707 = vmatpush.bf16.msra.mxu0 %v3654
    %3708 = vmatpush.bf16.msra.mxu0 %v3653
    %3709 = vmatpush.bf16.msra.mxu0 %v3652
    %3710 = vmatpush.bf16.msra.mxu0 %v3651
    %3711 = vmatpush.bf16.msra.mxu0 %v3650
    %3712 = vmatpush.bf16.msra.mxu0 %v3649
    %3713 = vmatmul.bf16.gmra.mxu0 %v3514
    %v3714 = vpop.f32.mrf.mxu0
    %v3715 = vadd.f32 0.0, %v3714
    %v3716 = vpop.f32.mrf.mxu0
    %v3717 = vadd.f32 0.0, %v3716
    %3718 = vmatmul.bf16.gmra.mxu0 %v3517
    %v3719 = vpop.f32.mrf.mxu0
    %v3720 = vadd.f32 0.0, %v3719
    %v3721 = vpop.f32.mrf.mxu0
    %v3722 = vadd.f32 0.0, %v3721
    %3723 = vmatmul.bf16.gmra.mxu0 %v3520
    %v3724 = vpop.f32.mrf.mxu0
    %v3725 = vadd.f32 0.0, %v3724
    %v3726 = vpop.f32.mrf.mxu0
    %v3727 = vadd.f32 0.0, %v3726
    %3728 = vmatmul.bf16.gmra.mxu0 %v3523
    %v3729 = vpop.f32.mrf.mxu0
    %v3730 = vadd.f32 0.0, %v3729
    %v3731 = vpop.f32.mrf.mxu0
    %v3732 = vadd.f32 0.0, %v3731
    %3733 = vmatmul.bf16.gmra.mxu0 %v3526
    %v3734 = vpop.f32.mrf.mxu0
    %v3735 = vadd.f32 0.0, %v3734
    %v3736 = vpop.f32.mrf.mxu0
    %v3737 = vadd.f32 0.0, %v3736
    %3738 = vdwg.mxu0
    %3739 = vmatpush.bf16.msra.mxu0 %v3664
    %3740 = vmatpush.bf16.msra.mxu0 %v3663
    %3741 = vmatpush.bf16.msra.mxu0 %v3662
    %3742 = vmatpush.bf16.msra.mxu0 %v3661
    %3743 = vmatpush.bf16.msra.mxu0 %v3660
    %3744 = vmatpush.bf16.msra.mxu0 %v3659
    %3745 = vmatpush.bf16.msra.mxu0 %v3658
    %3746 = vmatpush.bf16.msra.mxu0 %v3657
    %3747 = vmatmul.bf16.gmra.mxu0 %v3515
    %v3748 = vpop.f32.mrf.mxu0
    %v3749 = vadd.f32 %v3715, %v3748
    %v3750 = vpop.f32.mrf.mxu0
    %v3751 = vadd.f32 %v3717, %v3750
    %3752 = vmatmul.bf16.gmra.mxu0 %v3518
    %v3753 = vpop.f32.mrf.mxu0
    %v3754 = vadd.f32 %v3720, %v3753
    %v3755 = vpop.f32.mrf.mxu0
    %v3756 = vadd.f32 %v3722, %v3755
    %3757 = vmatmul.bf16.gmra.mxu0 %v3521
    %v3758 = vpop.f32.mrf.mxu0
    %v3759 = vadd.f32 %v3725, %v3758
    %v3760 = vpop.f32.mrf.mxu0
    %v3761 = vadd.f32 %v3727, %v3760
    %3762 = vmatmul.bf16.gmra.mxu0 %v3524
    %v3763 = vpop.f32.mrf.mxu0
    %v3764 = vadd.f32 %v3730, %v3763
    %v3765 = vpop.f32.mrf.mxu0
    %v3766 = vadd.f32 %v3732, %v3765
    %3767 = vmatmul.bf16.gmra.mxu0 %v3527
    %v3768 = vpop.f32.mrf.mxu0
    %v3769 = vadd.f32 %v3735, %v3768
    %v3770 = vpop.f32.mrf.mxu0
    %v3771 = vadd.f32 %v3737, %v3770
    %3772 = vdwg.mxu0
    %3773 = vmatpush.bf16.msra.mxu0 0
    %3774 = vmatpush.bf16.msra.mxu0 0
    %3775 = vmatpush.bf16.msra.mxu0 0
    %3776 = vmatpush.bf16.msra.mxu0 0
    %3777 = vmatpush.bf16.msra.mxu0 %v3668
    %3778 = vmatpush.bf16.msra.mxu0 %v3667
    %3779 = vmatpush.bf16.msra.mxu0 %v3666
    %3780 = vmatpush.bf16.msra.mxu0 %v3665
    %3781 = vmatmul.bf16.gmra.mxu0 %v3691
    %v3782 = vpop.f32.mrf.mxu0
    %v3783 = vadd.f32 %v3749, %v3782
    %v3784 = vpop.f32.mrf.mxu0
    %v3785 = vadd.f32 %v3751, %v3784
    %3786 = vmatmul.bf16.gmra.mxu0 %v3694
    %v3787 = vpop.f32.mrf.mxu0
    %v3788 = vadd.f32 %v3754, %v3787
    %v3789 = vpop.f32.mrf.mxu0
    %v3790 = vadd.f32 %v3756, %v3789
    %3791 = vmatmul.bf16.gmra.mxu0 %v3697
    %v3792 = vpop.f32.mrf.mxu0
    %v3793 = vadd.f32 %v3759, %v3792
    %v3794 = vpop.f32.mrf.mxu0
    %v3795 = vadd.f32 %v3761, %v3794
    %3796 = vmatmul.bf16.gmra.mxu0 %v3700
    %v3797 = vpop.f32.mrf.mxu0
    %v3798 = vadd.f32 %v3764, %v3797
    %v3799 = vpop.f32.mrf.mxu0
    %v3800 = vadd.f32 %v3766, %v3799
    %3801 = vmatmul.bf16.gmra.mxu0 %v3703
    %v3802 = vpop.f32.mrf.mxu0
    %v3803 = vadd.f32 %v3769, %v3802
    %v3804 = vpop.f32.mrf.mxu0
    %v3805 = vadd.f32 %v3771, %v3804
    %3806 = vdwg.mxu0
    %s3807 = scalar_lea.vmem %s12, 160
    %v3808 = vld [vmem:[%s3807] sm:$0xf]
    %v3809 = vld [vmem:[%s3807 + $0x4] sm:$0xf]
    %v3810 = vld [vmem:[%s3807 + $0x8] sm:$0xf]
    %v3811 = vld [vmem:[%s3807 + $0xc] sm:$0xf]
    %v3812 = vld [vmem:[%s3807 + $0x10] sm:$0xf]
    %v3813 = vld [vmem:[%s3807 + $0x14] sm:$0xf]
    %v3814 = vld [vmem:[%s3807 + $0x18] sm:$0xf]
    %v3815 = vld [vmem:[%s3807 + $0x1c] sm:$0xf]
    %v3816 = vld [vmem:[%s3807 + $0x20] sm:$0xf]
    %v3817 = vld [vmem:[%s3807 + $0x24] sm:$0xf]
    %v3818 = vld [vmem:[%s3807 + $0x28] sm:$0xf]
    %v3819 = vld [vmem:[%s3807 + $0x2c] sm:$0xf]
    %v3820 = vld [vmem:[%s3807 + $0x30] sm:$0xf]
    %v3821 = vld [vmem:[%s3807 + $0x34] sm:$0xf]
    %v3822 = vld [vmem:[%s3807 + $0x38] sm:$0xf]
    %v3823 = vld [vmem:[%s3807 + $0x3c] sm:$0xf]
    %v3824 = vld [vmem:[%s3807 + $0x40] sm:$0xf]
    %v3825 = vld [vmem:[%s3807 + $0x44] sm:$0xf]
    %v3826 = vld [vmem:[%s3807 + $0x48] sm:$0xf]
    %v3827 = vld [vmem:[%s3807 + $0x4c] sm:$0xf]
    %v3828 = vld [vmem:[%s3807 + $0x50] sm:$0xf]
    %v3829 = vld [vmem:[%s3807 + $0x54] sm:$0xf]
    %v3830 = vld [vmem:[%s3807 + $0x58] sm:$0xf]
    %v3831 = vld [vmem:[%s3807 + $0x5c] sm:$0xf]
    %v3832 = vld [vmem:[%s3807 + $0x60] sm:$0xf]
    %v3833 = vld [vmem:[%s3807 + $0x64] sm:$0xf]
    %v3834 = vld [vmem:[%s3807 + $0x68] sm:$0xf]
    %v3835 = vld [vmem:[%s3807 + $0x6c] sm:$0xf]
    %v3836 = vld [vmem:[%s3807 + $0x70] sm:$0xf]
    %v3837 = vld [vmem:[%s3807 + $0x74] sm:$0xf]
    %v3838 = vld [vmem:[%s3807 + $0x78] sm:$0xf]
    %v3839 = vld [vmem:[%s3807 + $0x7c] sm:$0xf]
    %v3840 = vld [vmem:[%s3807 + $0x80] sm:$0xf]
    %v3841 = vld [vmem:[%s3807 + $0x84] sm:$0xf]
    %v3842 = vld [vmem:[%s3807 + $0x88] sm:$0xf]
    %v3843 = vld [vmem:[%s3807 + $0x8c] sm:$0xf]
    %v3844 = vld [vmem:[%s3807 + $0x90] sm:$0xf]
    %v3845 = vld [vmem:[%s3807 + $0x94] sm:$0xf]
    %v3846 = vld [vmem:[%s3807 + $0x98] sm:$0xf]
    %v3847 = vld [vmem:[%s3807 + $0x9c] sm:$0xf]
    %s3848 = scalar_lea.vmem %s12, 320
    %v3849 = vld [vmem:[%s3848] sm:$0xf]
    %v3850 = vld [vmem:[%s3848 + $0x4] sm:$0xf]
    %v3851 = vld [vmem:[%s3848 + $0x8] sm:$0xf]
    %v3852 = vld [vmem:[%s3848 + $0xc] sm:$0xf]
    %v3853 = vld [vmem:[%s3848 + $0x10] sm:$0xf]
    %v3854 = vld [vmem:[%s3848 + $0x14] sm:$0xf]
    %v3855 = vld [vmem:[%s3848 + $0x18] sm:$0xf]
    %v3856 = vld [vmem:[%s3848 + $0x1c] sm:$0xf]
    %v3857 = vld [vmem:[%s3848 + $0x20] sm:$0xf]
    %v3858 = vld [vmem:[%s3848 + $0x24] sm:$0xf]
    %v3859 = vld [vmem:[%s3848 + $0x28] sm:$0xf]
    %v3860 = vld [vmem:[%s3848 + $0x2c] sm:$0xf]
    %v3861 = vld [vmem:[%s3848 + $0x30] sm:$0xf]
    %v3862 = vld [vmem:[%s3848 + $0x34] sm:$0xf]
    %v3863 = vld [vmem:[%s3848 + $0x38] sm:$0xf]
    %v3864 = vld [vmem:[%s3848 + $0x3c] sm:$0xf]
    %v3865 = vld [vmem:[%s3848 + $0x40] sm:$0xf]
    %v3866 = vld [vmem:[%s3848 + $0x44] sm:$0xf]
    %v3867 = vld [vmem:[%s3848 + $0x48] sm:$0xf]
    %v3868 = vld [vmem:[%s3848 + $0x4c] sm:$0xf]
    %v3869 = vld [vmem:[%s3848 + $0x50] sm:$0xf]
    %v3870 = vld [vmem:[%s3848 + $0x54] sm:$0xf]
    %v3871 = vld [vmem:[%s3848 + $0x58] sm:$0xf]
    %v3872 = vld [vmem:[%s3848 + $0x5c] sm:$0xf]
    %v3873 = vld [vmem:[%s3848 + $0x60] sm:$0xf]
    %v3874 = vld [vmem:[%s3848 + $0x64] sm:$0xf]
    %v3875 = vld [vmem:[%s3848 + $0x68] sm:$0xf]
    %v3876 = vld [vmem:[%s3848 + $0x6c] sm:$0xf]
    %v3877 = vld [vmem:[%s3848 + $0x70] sm:$0xf]
    %v3878 = vld [vmem:[%s3848 + $0x74] sm:$0xf]
    %v3879 = vld [vmem:[%s3848 + $0x78] sm:$0xf]
    %v3880 = vld [vmem:[%s3848 + $0x7c] sm:$0xf]
    %v3881 = vld [vmem:[%s3848 + $0x80] sm:$0xf]
    %v3882 = vld [vmem:[%s3848 + $0x84] sm:$0xf]
    %v3883 = vld [vmem:[%s3848 + $0x88] sm:$0xf]
    %v3884 = vld [vmem:[%s3848 + $0x8c] sm:$0xf]
    %v3885 = vld [vmem:[%s3848 + $0x90] sm:$0xf]
    %v3886 = vld [vmem:[%s3848 + $0x94] sm:$0xf]
    %v3887 = vld [vmem:[%s3848 + $0x98] sm:$0xf]
    %v3888 = vld [vmem:[%s3848 + $0x9c] sm:$0xf]
    %v3929 = vunpack.c.l.b16 %v3849
    %v3930 = vunpack.c.l.b16 %v3850
    %v3931 = vunpack.c.l.b16 %v3851
    %v3932 = vunpack.c.l.b16 %v3852
    %v3933 = vunpack.c.l.b16 %v3853
    %v3934 = vunpack.c.l.b16 %v3854
    %v3935 = vunpack.c.l.b16 %v3855
    %v3936 = vunpack.c.l.b16 %v3856
    %v3937 = vunpack.c.l.b16 %v3857
    %v3938 = vunpack.c.l.b16 %v3858
    %v3939 = vunpack.c.l.b16 %v3859
    %v3940 = vunpack.c.l.b16 %v3860
    %v3941 = vunpack.c.l.b16 %v3861
    %v3942 = vunpack.c.l.b16 %v3862
    %v3943 = vunpack.c.l.b16 %v3863
    %v3944 = vunpack.c.l.b16 %v3864
    %v3945 = vunpack.c.l.b16 %v3865
    %v3946 = vunpack.c.l.b16 %v3866
    %v3947 = vunpack.c.l.b16 %v3867
    %v3948 = vunpack.c.l.b16 %v3868
    %v3949 = vunpack.c.l.b16 %v3869
    %v3950 = vunpack.c.l.b16 %v3870
    %v3951 = vunpack.c.l.b16 %v3871
    %v3952 = vunpack.c.l.b16 %v3872
    %v3953 = vunpack.c.l.b16 %v3873
    %v3954 = vunpack.c.l.b16 %v3874
    %v3955 = vunpack.c.l.b16 %v3875
    %v3956 = vunpack.c.l.b16 %v3876
    %v3957 = vunpack.c.l.b16 %v3877
    %v3958 = vunpack.c.l.b16 %v3878
    %v3959 = vunpack.c.l.b16 %v3879
    %v3960 = vunpack.c.l.b16 %v3880
    %v3961 = vunpack.c.l.b16 %v3881
    %v3962 = vunpack.c.l.b16 %v3882
    %v3963 = vunpack.c.l.b16 %v3883
    %v3964 = vunpack.c.l.b16 %v3884
    %v3965 = vunpack.c.l.b16 %v3885
    %v3966 = vunpack.c.l.b16 %v3886
    %v3967 = vunpack.c.l.b16 %v3887
    %v3968 = vunpack.c.l.b16 %v3888
    %v3969 = vpack.c.b16 %v3930, %v3929
    %v3970 = vpack.c.b16 %v3932, %v3931
    %v3971 = vpack.c.b16 %v3934, %v3933
    %v3972 = vpack.c.b16 %v3936, %v3935
    %v3973 = vpack.c.b16 %v3938, %v3937
    %v3974 = vpack.c.b16 %v3940, %v3939
    %v3975 = vpack.c.b16 %v3942, %v3941
    %v3976 = vpack.c.b16 %v3944, %v3943
    %v3977 = vpack.c.b16 %v3946, %v3945
    %v3978 = vpack.c.b16 %v3948, %v3947
    %v3979 = vpack.c.b16 %v3950, %v3949
    %v3980 = vpack.c.b16 %v3952, %v3951
    %v3981 = vpack.c.b16 %v3954, %v3953
    %v3982 = vpack.c.b16 %v3956, %v3955
    %v3983 = vpack.c.b16 %v3958, %v3957
    %v3984 = vpack.c.b16 %v3960, %v3959
    %v3985 = vpack.c.b16 %v3962, %v3961
    %v3986 = vpack.c.b16 %v3964, %v3963
    %v3987 = vpack.c.b16 %v3966, %v3965
    %v3988 = vpack.c.b16 %v3968, %v3967
    %4009 = vmatpush.bf16.msra.mxu0 %v3976
    %4010 = vmatpush.bf16.msra.mxu0 %v3975
    %4011 = vmatpush.bf16.msra.mxu0 %v3974
    %4012 = vmatpush.bf16.msra.mxu0 %v3973
    %4013 = vmatpush.bf16.msra.mxu0 %v3972
    %4014 = vmatpush.bf16.msra.mxu0 %v3971
    %4015 = vmatpush.bf16.msra.mxu0 %v3970
    %4016 = vmatpush.bf16.msra.mxu0 %v3969
    %4017 = vmatmul.bf16.gmra.mxu0 %v3514
    %v4018 = vpop.f32.mrf.mxu0
    %v4019 = vadd.f32 0.0, %v4018
    %v4020 = vpop.f32.mrf.mxu0
    %v4021 = vadd.f32 0.0, %v4020
    %4022 = vmatmul.bf16.gmra.mxu0 %v3517
    %v4023 = vpop.f32.mrf.mxu0
    %v4024 = vadd.f32 0.0, %v4023
    %v4025 = vpop.f32.mrf.mxu0
    %v4026 = vadd.f32 0.0, %v4025
    %4027 = vmatmul.bf16.gmra.mxu0 %v3520
    %v4028 = vpop.f32.mrf.mxu0
    %v4029 = vadd.f32 0.0, %v4028
    %v4030 = vpop.f32.mrf.mxu0
    %v4031 = vadd.f32 0.0, %v4030
    %4032 = vmatmul.bf16.gmra.mxu0 %v3523
    %v4033 = vpop.f32.mrf.mxu0
    %v4034 = vadd.f32 0.0, %v4033
    %v4035 = vpop.f32.mrf.mxu0
    %v4036 = vadd.f32 0.0, %v4035
    %4037 = vmatmul.bf16.gmra.mxu0 %v3526
    %v4038 = vpop.f32.mrf.mxu0
    %v4039 = vadd.f32 0.0, %v4038
    %v4040 = vpop.f32.mrf.mxu0
    %v4041 = vadd.f32 0.0, %v4040
    %4042 = vdwg.mxu0
    %4043 = vmatpush.bf16.msra.mxu0 %v3984
    %4044 = vmatpush.bf16.msra.mxu0 %v3983
    %4045 = vmatpush.bf16.msra.mxu0 %v3982
    %4046 = vmatpush.bf16.msra.mxu0 %v3981
    %4047 = vmatpush.bf16.msra.mxu0 %v3980
    %4048 = vmatpush.bf16.msra.mxu0 %v3979
    %4049 = vmatpush.bf16.msra.mxu0 %v3978
    %4050 = vmatpush.bf16.msra.mxu0 %v3977
    %4051 = vmatmul.bf16.gmra.mxu0 %v3515
    %v4052 = vpop.f32.mrf.mxu0
    %v4053 = vadd.f32 %v4019, %v4052
    %v4054 = vpop.f32.mrf.mxu0
    %v4055 = vadd.f32 %v4021, %v4054
    %4056 = vmatmul.bf16.gmra.mxu0 %v3518
    %v4057 = vpop.f32.mrf.mxu0
    %v4058 = vadd.f32 %v4024, %v4057
    %v4059 = vpop.f32.mrf.mxu0
    %v4060 = vadd.f32 %v4026, %v4059
    %4061 = vmatmul.bf16.gmra.mxu0 %v3521
    %v4062 = vpop.f32.mrf.mxu0
    %v4063 = vadd.f32 %v4029, %v4062
    %v4064 = vpop.f32.mrf.mxu0
    %v4065 = vadd.f32 %v4031, %v4064
    %4066 = vmatmul.bf16.gmra.mxu0 %v3524
    %v4067 = vpop.f32.mrf.mxu0
    %v4068 = vadd.f32 %v4034, %v4067
    %v4069 = vpop.f32.mrf.mxu0
    %v4070 = vadd.f32 %v4036, %v4069
    %4071 = vmatmul.bf16.gmra.mxu0 %v3527
    %v4072 = vpop.f32.mrf.mxu0
    %v4073 = vadd.f32 %v4039, %v4072
    %v4074 = vpop.f32.mrf.mxu0
    %v4075 = vadd.f32 %v4041, %v4074
    %4076 = vdwg.mxu0
    %4077 = vmatpush.bf16.msra.mxu0 0
    %4078 = vmatpush.bf16.msra.mxu0 0
    %4079 = vmatpush.bf16.msra.mxu0 0
    %4080 = vmatpush.bf16.msra.mxu0 0
    %4081 = vmatpush.bf16.msra.mxu0 %v3988
    %4082 = vmatpush.bf16.msra.mxu0 %v3987
    %4083 = vmatpush.bf16.msra.mxu0 %v3986
    %4084 = vmatpush.bf16.msra.mxu0 %v3985
    %4085 = vmatmul.bf16.gmra.mxu0 %v3691
    %v4086 = vpop.f32.mrf.mxu0
    %v4087 = vadd.f32 %v4053, %v4086
    %v4088 = vpop.f32.mrf.mxu0
    %v4089 = vadd.f32 %v4055, %v4088
    %4090 = vmatmul.bf16.gmra.mxu0 %v3694
    %v4091 = vpop.f32.mrf.mxu0
    %v4092 = vadd.f32 %v4058, %v4091
    %v4093 = vpop.f32.mrf.mxu0
    %v4094 = vadd.f32 %v4060, %v4093
    %4095 = vmatmul.bf16.gmra.mxu0 %v3697
    %v4096 = vpop.f32.mrf.mxu0
    %v4097 = vadd.f32 %v4063, %v4096
    %v4098 = vpop.f32.mrf.mxu0
    %v4099 = vadd.f32 %v4065, %v4098
    %4100 = vmatmul.bf16.gmra.mxu0 %v3700
    %v4101 = vpop.f32.mrf.mxu0
    %v4102 = vadd.f32 %v4068, %v4101
    %v4103 = vpop.f32.mrf.mxu0
    %v4104 = vadd.f32 %v4070, %v4103
    %4105 = vmatmul.bf16.gmra.mxu0 %v3703
    %v4106 = vpop.f32.mrf.mxu0
    %v4107 = vadd.f32 %v4073, %v4106
    %v4108 = vpop.f32.mrf.mxu0
    %v4109 = vadd.f32 %v4075, %v4108
    %4110 = vdwg.mxu0
    %v4111 = vld [vmem:[%s13] sm:$0x1]
    %v4112 = vadd.f32 %v4087, 0.0
    %v4113 = vadd.f32 %v3783, %v4089
    %v4114 = vadd.f32 %v3785, %v4092
    %v4115 = vadd.f32 %v3788, %v4094
    %v4116 = vadd.f32 %v3790, %v4097
    %v4117 = vadd.f32 %v3793, %v4099
    %v4118 = vadd.f32 %v3795, %v4102
    %v4119 = vadd.f32 %v3798, %v4104
    %v4120 = vadd.f32 %v3800, %v4107
    %v4121 = vadd.f32 %v3803, %v4109
    %v4122 = vadd.f32 %v3805, 0.0
    %v4124 = vperm.slane %v4111, 0
    %v4126 = vadd.f32 %v4112, %v4124
    %v4127 = vadd.f32 %v4113, %v4124
    %v4128 = vadd.f32 %v4114, %v4124
    %v4129 = vadd.f32 %v4115, %v4124
    %v4130 = vadd.f32 %v4116, %v4124
    %v4131 = vadd.f32 %v4117, %v4124
    %v4132 = vadd.f32 %v4118, %v4124
    %v4133 = vadd.f32 %v4119, %v4124
    %v4134 = vadd.f32 %v4120, %v4124
    %v4135 = vadd.f32 %v4121, %v4124
    %v4136 = vadd.f32 %v4122, %v4124
    %4137 = vst [vmem:[%s16] sm:$0xff] %v4126
    %4138 = vst [vmem:[%s16 + $0x8] sm:$0xff] %v4127
    %4139 = vst [vmem:[%s16 + $0x10] sm:$0xff] %v4128
    %4140 = vst [vmem:[%s16 + $0x18] sm:$0xff] %v4129
    %4141 = vst [vmem:[%s16 + $0x20] sm:$0xff] %v4130
    %4142 = vst [vmem:[%s16 + $0x28] sm:$0xff] %v4131
    %4143 = vst [vmem:[%s16 + $0x30] sm:$0xff] %v4132
    %4144 = vst [vmem:[%s16 + $0x38] sm:$0xff] %v4133
    %4145 = vst [vmem:[%s16 + $0x40] sm:$0xff] %v4134
    %4146 = vst [vmem:[%s16 + $0x48] sm:$0xff] %v4135
    %4147 = vst [vmem:[%s16 + $0x50] sm:$0xff] %v4136
    %v4188 = vunpack.c.l.b16 %v3808
    %v4189 = vunpack.c.l.b16 %v3809
    %v4190 = vunpack.c.l.b16 %v3810
    %v4191 = vunpack.c.l.b16 %v3811
    %v4192 = vunpack.c.l.b16 %v3812
    %v4193 = vunpack.c.l.b16 %v3813
    %v4194 = vunpack.c.l.b16 %v3814
    %v4195 = vunpack.c.l.b16 %v3815
    %v4196 = vunpack.c.l.b16 %v3816
    %v4197 = vunpack.c.l.b16 %v3817
    %v4198 = vunpack.c.l.b16 %v3818
    %v4199 = vunpack.c.l.b16 %v3819
    %v4200 = vunpack.c.l.b16 %v3820
    %v4201 = vunpack.c.l.b16 %v3821
    %v4202 = vunpack.c.l.b16 %v3822
    %v4203 = vunpack.c.l.b16 %v3823
    %v4204 = vunpack.c.l.b16 %v3824
    %v4205 = vunpack.c.l.b16 %v3825
    %v4206 = vunpack.c.l.b16 %v3826
    %v4207 = vunpack.c.l.b16 %v3827
    %v4208 = vunpack.c.l.b16 %v3828
    %v4209 = vunpack.c.l.b16 %v3829
    %v4210 = vunpack.c.l.b16 %v3830
    %v4211 = vunpack.c.l.b16 %v3831
    %v4212 = vunpack.c.l.b16 %v3832
    %v4213 = vunpack.c.l.b16 %v3833
    %v4214 = vunpack.c.l.b16 %v3834
    %v4215 = vunpack.c.l.b16 %v3835
    %v4216 = vunpack.c.l.b16 %v3836
    %v4217 = vunpack.c.l.b16 %v3837
    %v4218 = vunpack.c.l.b16 %v3838
    %v4219 = vunpack.c.l.b16 %v3839
    %v4220 = vunpack.c.l.b16 %v3840
    %v4221 = vunpack.c.l.b16 %v3841
    %v4222 = vunpack.c.l.b16 %v3842
    %v4223 = vunpack.c.l.b16 %v3843
    %v4224 = vunpack.c.l.b16 %v3844
    %v4225 = vunpack.c.l.b16 %v3845
    %v4226 = vunpack.c.l.b16 %v3846
    %v4227 = vunpack.c.l.b16 %v3847
    %v4228 = vpack.c.b16 %v4189, %v4188
    %v4229 = vpack.c.b16 %v4191, %v4190
    %v4230 = vpack.c.b16 %v4193, %v4192
    %v4231 = vpack.c.b16 %v4195, %v4194
    %v4232 = vpack.c.b16 %v4197, %v4196
    %v4233 = vpack.c.b16 %v4199, %v4198
    %v4234 = vpack.c.b16 %v4201, %v4200
    %v4235 = vpack.c.b16 %v4203, %v4202
    %v4236 = vpack.c.b16 %v4205, %v4204
    %v4237 = vpack.c.b16 %v4207, %v4206
    %v4238 = vpack.c.b16 %v4209, %v4208
    %v4239 = vpack.c.b16 %v4211, %v4210
    %v4240 = vpack.c.b16 %v4213, %v4212
    %v4241 = vpack.c.b16 %v4215, %v4214
    %v4242 = vpack.c.b16 %v4217, %v4216
    %v4243 = vpack.c.b16 %v4219, %v4218
    %v4244 = vpack.c.b16 %v4221, %v4220
    %v4245 = vpack.c.b16 %v4223, %v4222
    %v4246 = vpack.c.b16 %v4225, %v4224
    %v4247 = vpack.c.b16 %v4227, %v4226
    %4268 = vmatpush.bf16.msra.mxu0 %v4235
    %4269 = vmatpush.bf16.msra.mxu0 %v4234
    %4270 = vmatpush.bf16.msra.mxu0 %v4233
    %4271 = vmatpush.bf16.msra.mxu0 %v4232
    %4272 = vmatpush.bf16.msra.mxu0 %v4231
    %4273 = vmatpush.bf16.msra.mxu0 %v4230
    %4274 = vmatpush.bf16.msra.mxu0 %v4229
    %4275 = vmatpush.bf16.msra.mxu0 %v4228
    %4276 = vmatmul.bf16.gmra.mxu0 %v3514
    %v4277 = vpop.f32.mrf.mxu0
    %v4278 = vadd.f32 %v4124, %v4277
    %v4279 = vpop.f32.mrf.mxu0
    %v4280 = vadd.f32 %v4124, %v4279
    %4281 = vmatmul.bf16.gmra.mxu0 %v3517
    %v4282 = vpop.f32.mrf.mxu0
    %v4283 = vadd.f32 %v4124, %v4282
    %v4284 = vpop.f32.mrf.mxu0
    %v4285 = vadd.f32 %v4124, %v4284
    %4286 = vmatmul.bf16.gmra.mxu0 %v3520
    %v4287 = vpop.f32.mrf.mxu0
    %v4288 = vadd.f32 %v4124, %v4287
    %v4289 = vpop.f32.mrf.mxu0
    %v4290 = vadd.f32 %v4124, %v4289
    %4291 = vmatmul.bf16.gmra.mxu0 %v3523
    %v4292 = vpop.f32.mrf.mxu0
    %v4293 = vadd.f32 %v4124, %v4292
    %v4294 = vpop.f32.mrf.mxu0
    %v4295 = vadd.f32 %v4124, %v4294
    %4296 = vmatmul.bf16.gmra.mxu0 %v3526
    %v4297 = vpop.f32.mrf.mxu0
    %v4298 = vadd.f32 %v4124, %v4297
    %v4299 = vpop.f32.mrf.mxu0
    %v4300 = vadd.f32 %v4124, %v4299
    %4301 = vdwg.mxu0
    %4302 = vmatpush.bf16.msra.mxu0 %v4243
    %4303 = vmatpush.bf16.msra.mxu0 %v4242
    %4304 = vmatpush.bf16.msra.mxu0 %v4241
    %4305 = vmatpush.bf16.msra.mxu0 %v4240
    %4306 = vmatpush.bf16.msra.mxu0 %v4239
    %4307 = vmatpush.bf16.msra.mxu0 %v4238
    %4308 = vmatpush.bf16.msra.mxu0 %v4237
    %4309 = vmatpush.bf16.msra.mxu0 %v4236
    %4310 = vmatmul.bf16.gmra.mxu0 %v3515
    %v4311 = vpop.f32.mrf.mxu0
    %v4312 = vadd.f32 %v4278, %v4311
    %v4313 = vpop.f32.mrf.mxu0
    %v4314 = vadd.f32 %v4280, %v4313
    %4315 = vmatmul.bf16.gmra.mxu0 %v3518
    %v4316 = vpop.f32.mrf.mxu0
    %v4317 = vadd.f32 %v4283, %v4316
    %v4318 = vpop.f32.mrf.mxu0
    %v4319 = vadd.f32 %v4285, %v4318
    %4320 = vmatmul.bf16.gmra.mxu0 %v3521
    %v4321 = vpop.f32.mrf.mxu0
    %v4322 = vadd.f32 %v4288, %v4321
    %v4323 = vpop.f32.mrf.mxu0
    %v4324 = vadd.f32 %v4290, %v4323
    %4325 = vmatmul.bf16.gmra.mxu0 %v3524
    %v4326 = vpop.f32.mrf.mxu0
    %v4327 = vadd.f32 %v4293, %v4326
    %v4328 = vpop.f32.mrf.mxu0
    %v4329 = vadd.f32 %v4295, %v4328
    %4330 = vmatmul.bf16.gmra.mxu0 %v3527
    %v4331 = vpop.f32.mrf.mxu0
    %v4332 = vadd.f32 %v4298, %v4331
    %v4333 = vpop.f32.mrf.mxu0
    %v4334 = vadd.f32 %v4300, %v4333
    %4335 = vdwg.mxu0
    %4336 = vmatpush.bf16.msra.mxu0 0
    %4337 = vmatpush.bf16.msra.mxu0 0
    %4338 = vmatpush.bf16.msra.mxu0 0
    %4339 = vmatpush.bf16.msra.mxu0 0
    %4340 = vmatpush.bf16.msra.mxu0 %v4247
    %4341 = vmatpush.bf16.msra.mxu0 %v4246
    %4342 = vmatpush.bf16.msra.mxu0 %v4245
    %4343 = vmatpush.bf16.msra.mxu0 %v4244
    %4344 = vmatmul.bf16.gmra.mxu0 %v3691
    %v4345 = vpop.f32.mrf.mxu0
    %v4346 = vadd.f32 %v4312, %v4345
    %v4347 = vpop.f32.mrf.mxu0
    %v4348 = vadd.f32 %v4314, %v4347
    %4349 = vmatmul.bf16.gmra.mxu0 %v3694
    %v4350 = vpop.f32.mrf.mxu0
    %v4351 = vadd.f32 %v4317, %v4350
    %v4352 = vpop.f32.mrf.mxu0
    %v4353 = vadd.f32 %v4319, %v4352
    %4354 = vmatmul.bf16.gmra.mxu0 %v3697
    %v4355 = vpop.f32.mrf.mxu0
    %v4356 = vadd.f32 %v4322, %v4355
    %v4357 = vpop.f32.mrf.mxu0
    %v4358 = vadd.f32 %v4324, %v4357
    %4359 = vmatmul.bf16.gmra.mxu0 %v3700
    %v4360 = vpop.f32.mrf.mxu0
    %v4361 = vadd.f32 %v4327, %v4360
    %v4362 = vpop.f32.mrf.mxu0
    %v4363 = vadd.f32 %v4329, %v4362
    %4364 = vmatmul.bf16.gmra.mxu0 %v3703
    %v4365 = vpop.f32.mrf.mxu0
    %v4366 = vadd.f32 %v4332, %v4365
    %v4367 = vpop.f32.mrf.mxu0
    %v4368 = vadd.f32 %v4334, %v4367
    %4369 = vdwg.mxu0
    %4370 = vst [vmem:[%s17] sm:$0xff] %v4346
    %4371 = vst [vmem:[%s17 + $0x8] sm:$0xff] %v4348
    %4372 = vst [vmem:[%s17 + $0x10] sm:$0xff] %v4351
    %4373 = vst [vmem:[%s17 + $0x18] sm:$0xff] %v4353
    %4374 = vst [vmem:[%s17 + $0x20] sm:$0xff] %v4356
    %4375 = vst [vmem:[%s17 + $0x28] sm:$0xff] %v4358
    %4376 = vst [vmem:[%s17 + $0x30] sm:$0xff] %v4361
    %4377 = vst [vmem:[%s17 + $0x38] sm:$0xff] %v4363
    %4378 = vst [vmem:[%s17 + $0x40] sm:$0xff] %v4366
    %4379 = vst [vmem:[%s17 + $0x48] sm:$0xff] %v4368
    // Predicated region
    $region66: #{unreal_forward.1} parent=1 // pred_check
      _
    $region67: #{unreal_forward.1} parent=1 // pred_check_branch
      %4381 = sbr.rel (0) target = $region69
    $region68: #{unreal_forward.1} parent=1 // pred_region
      _
    $region69: #{unreal_forward.1} parent=1 // pred_fallthru
      _
    // Predicated region
    $region70: #{unreal_forward.1} parent=1 // pred_check
      _
    $region71: #{unreal_forward.1} parent=1 // pred_check_branch
      %4383 = sbr.rel (0) target = $region73
    $region72: #{unreal_forward.1} parent=1 // pred_region
      _
    $region73: #{unreal_forward.1} parent=1 // pred_fallthru
      _
    // Predicated region
    $region74: #{unreal_forward.1} parent=1 // pred_check
      _
    $region75: #{unreal_forward.1} parent=1 // pred_check_branch
      %4385 = sbr.rel (0) target = $region77
    $region76: #{unreal_forward.1} parent=1 // pred_region
      _
    $region77: #{unreal_forward.1} parent=1 // pred_fallthru
      _
    // Predicated region
    $region78: #{unreal_forward.1} parent=1 // pred_check
      _
    $region79: #{unreal_forward.1} parent=1 // pred_check_branch
      %4387 = sbr.rel (0) target = $region81
    $region80: #{unreal_forward.1} parent=1 // pred_region
      _
    $region81: #{unreal_forward.1} parent=1 // pred_fallthru
      _
    // Predicated region
    $region82: #{unreal_forward.1} parent=1 // pred_check
      _
    $region83: #{unreal_forward.1} parent=1 // pred_check_branch
      %4389 = sbr.rel (0) target = $region85
    $region84: #{unreal_forward.1} parent=1 // pred_region
      _
    $region85: #{unreal_forward.1} parent=1 // pred_fallthru
      _
    // Predicated region
    $region86: #{unreal_forward.1} parent=1 // pred_check
      _
    $region87: #{unreal_forward.1} parent=1 // pred_check_branch
      %4391 = sbr.rel (0) target = $region89
    $region88: #{unreal_forward.1} parent=1 // pred_region
      _
    $region89: #{unreal_forward.1} parent=1 // pred_fallthru
      _
    // Predicated region
    $region90: #{unreal_forward.1} parent=1 // pred_check
      _
    $region91: #{unreal_forward.1} parent=1 // pred_check_branch
      %4393 = sbr.rel (0) target = $region93
    $region92: #{unreal_forward.1} parent=1 // pred_region
      _
    $region93: #{unreal_forward.1} parent=1 // pred_fallthru
      _
    // Predicated region
    $region94: #{unreal_forward.1} parent=1 // pred_check
      _
    $region95: #{unreal_forward.1} parent=1 // pred_check_branch
      %4395 = sbr.rel (0) target = $region97
    $region96: #{unreal_forward.1} parent=1 // pred_region
      _
    $region97: #{unreal_forward.1} parent=1 // pred_fallthru
      _
    %4396 = vsyncpa [#allocation3], 1
    %4397 = vsyncpa [#allocation5], 1

</llo_original>
